<compile_context>
chip_gen: v7x
topology: tpu7x:2x2x1
jax: 0.10.0
libtpu: 0.0.40
codegen_flags: <defaults>
</compile_context>

<pallas_src>
import jax
import jax.numpy as jnp
from jax.experimental import pallas as pl
from jax.experimental.pallas import tpu as pltpu


# ----------------------------------------------------------------------------
# Pallas kernel (whole model fused)
# ----------------------------------------------------------------------------
def _lstm_cell(gates, c, H):
    """PyTorch gate order i, f, g, o.  gates: (Bp, 4H) f32, c: (Bp, H) f32."""
    i = jax.nn.sigmoid(gates[:, 0 * H:1 * H])
    f = jax.nn.sigmoid(gates[:, 1 * H:2 * H])
    g = jnp.tanh(gates[:, 2 * H:3 * H])
    o = jax.nn.sigmoid(gates[:, 3 * H:4 * H])
    c_new = f * c + i * g
    h_new = o * jnp.tanh(c_new)
    return h_new, c_new


def make_fused_model_kernel(num_layers, T, Bp, H):
    """Build the fused bidirectional-LSTM + MLP-head kernel.

    Input refs (all VMEM resident):
      refs[0]              : x_flat  (T*Bp, D0p) f32, time-major rows (t*Bp + b)
      per layer l (4 refs) : wih_cat (D_l, 8H) bf16  [fwd gates | bwd gates]
                             b_cat   (1, 8H)   f32   (b_ih + b_hh, both dirs)
                             whh_f_t (H, 4H)   bf16
                             whh_b_t (H, 4H)   bf16
      head (4 refs)        : fc1_w_t (2H, H) bf16, fc1_b (1, H) f32,
                             fc2_w_t (H, O)  bf16, fc2_b (1, O) f32
    Output ref: (Bp, O) f32.
    Scratch: gx (T*Bp, 8H) f32, out_f (T*Bp, H) f32, out_b (T*Bp, H) f32.
    """
    G = 4 * H
    n_in = 1 + 4 * num_layers + 4

    def kernel(*refs):
        x_ref = refs[0]
        layer_refs = refs[1:1 + 4 * num_layers]
        w1_ref, b1_ref, w2_ref, b2_ref = refs[n_in - 4:n_in]
        out_ref = refs[n_in]
        gx_scr = refs[n_in + 1]      # (T*Bp, 8H) fused gate pre-activations
        outf_scr = refs[n_in + 2]    # (T*Bp, H)  fwd layer output sequence
        outb_scr = refs[n_in + 3]    # (T*Bp, H)  bwd layer output sequence

        h_f_last = None   # fwd hidden at time T-1 of the last layer
        h_b_last = None   # bwd hidden at (original) time T-1 of the last layer

        for layer in range(num_layers):
            wih_ref, b_ref, whhf_ref, whhb_ref = layer_refs[4 * layer:4 * layer + 4]
            wih = wih_ref[...]                                     # (D_l, 8H) bf16

            # Hoisted, fused input projection (one matmul for both directions).
            if layer == 0:
                gx = jnp.dot(x_ref[...].astype(jnp.bfloat16), wih,
                             preferred_element_type=jnp.float32)
            else:
                # Next-layer input is [out_f | out_b]; split the weight rows
                # instead of concatenating activations.
                gx = (jnp.dot(outf_scr[...].astype(jnp.bfloat16), wih[:H, :],
                              preferred_element_type=jnp.float32)
                      + jnp.dot(outb_scr[...].astype(jnp.bfloat16), wih[H:, :],
                                preferred_element_type=jnp.float32))
            gx_scr[...] = gx + b_ref[...]

            whh_f = whhf_ref[...]                                  # (H, 4H) bf16
            whh_b = whhb_ref[...]                                  # (H, 4H) bf16

            # Register-resident per-direction state (no VMEM round trip).
            h_f = jnp.zeros((Bp, H), jnp.float32)
            h_b = jnp.zeros((Bp, H), jnp.float32)
            c_f = jnp.zeros((Bp, H), jnp.float32)
            c_b = jnp.zeros((Bp, H), jnp.float32)

            is_last_layer = layer == num_layers - 1

            # Fully unrolled serial time loop (T static & small here).
            # Forward consumes time s, backward consumes time T-1-s.
            for s in range(T):
                tb = T - 1 - s
                hp_f = jnp.dot(h_f.astype(jnp.bfloat16), whh_f,
                               preferred_element_type=jnp.float32)   # (Bp, 4H)
                hp_b = jnp.dot(h_b.astype(jnp.bfloat16), whh_b,
                               preferred_element_type=jnp.float32)   # (Bp, 4H)
                gates_f = gx_scr[s * Bp:(s + 1) * Bp, :G] + hp_f
                gates_b = gx_scr[tb * Bp:(tb + 1) * Bp, G:] + hp_b
                h_f, c_f = _lstm_cell(gates_f, c_f, H)
                h_b, c_b = _lstm_cell(gates_b, c_b, H)
                if is_last_layer:
                    if s == 0:
                        h_b_last = h_b        # bwd hidden at original time T-1
                    if s == T - 1:
                        h_f_last = h_f        # fwd hidden at time T-1
                else:
                    # Lane-dense, sublane-aligned stores (row offsets are
                    # multiples of Bp which is a multiple of 8).
                    outf_scr[s * Bp:(s + 1) * Bp, :] = h_f
                    outb_scr[tb * Bp:(tb + 1) * Bp, :] = h_b

        # Head on out[:, -1, :] = [h_fwd(T-1) | h_bwd(T-1)].  fc1 split over
        # the two direction halves to avoid an in-kernel lane concat.
        w1 = w1_ref[...]                                           # (2H, H) bf16
        h1 = (jnp.dot(h_f_last.astype(jnp.bfloat16), w1[:H, :],
                      preferred_element_type=jnp.float32)
              + jnp.dot(h_b_last.astype(jnp.bfloat16), w1[H:, :],
                        preferred_element_type=jnp.float32)
              + b1_ref[...])
        h1 = jnp.maximum(h1, 0.0)
        y = jnp.dot(h1.astype(jnp.bfloat16), w2_ref[...],
                    preferred_element_type=jnp.float32) + b2_ref[...]
        out_ref[...] = y.astype(out_ref.dtype)

    return kernel


# ----------------------------------------------------------------------------
# pallas_call wrapper
# ----------------------------------------------------------------------------
def _cost_estimate(num_layers, T, Bp, H, d_in0, out_dim, args):
    flops = 0
    d_in = d_in0
    for _ in range(num_layers):
        flops += 2 * (T * Bp) * d_in * (8 * H)           # fused input projection
        flops += T * 2 * (2 * Bp * H * (4 * H))          # recurrent matmuls (2 dirs)
        flops += T * 2 * Bp * 12 * H                     # gate elementwise (approx)
        d_in = 2 * H
    flops += 2 * Bp * (2 * H) * H + 2 * Bp * H * out_dim  # MLP head
    transcendentals = num_layers * T * 2 * Bp * 5 * H
    bytes_accessed = sum(int(a.size) * a.dtype.itemsize for a in args)
    bytes_accessed += Bp * out_dim * 4
    return pl.CostEstimate(flops=int(flops),
                           transcendentals=int(transcendentals),
                           bytes_accessed=int(bytes_accessed))


def run_fused_model(x_flat, params, T, Bp):
    H = params["fc1_w_t"].shape[1]
    out_dim = params["fc2_w_t"].shape[1]
    num_layers = len(params["lstm"])

    args = [x_flat]
    for lp in params["lstm"]:
        args += [lp["wih_cat"], lp["b_cat"], lp["whh_f_t"], lp["whh_b_t"]]
    args += [params["fc1_w_t"], params["fc1_b"], params["fc2_w_t"], params["fc2_b"]]

    vmem = pl.BlockSpec(memory_space=pltpu.MemorySpace.VMEM)
    kernel = make_fused_model_kernel(num_layers, T, Bp, H)

    scratch_shapes = [
        pltpu.VMEM((T * Bp, 8 * H), jnp.float32),   # gx (fused gate pre-acts)
        pltpu.VMEM((T * Bp, H), jnp.float32),       # fwd layer output sequence
        pltpu.VMEM((T * Bp, H), jnp.float32),       # bwd layer output sequence
    ]

    # Explicit VMEM budget (v7x has only 64 MiB/TC; default scoped limit is
    # 16/32 MiB).  Footprint = resident args + output + scratch, with slack.
    arg_bytes = sum(int(a.size) * a.dtype.itemsize for a in args)
    scratch_bytes = (T * Bp * 8 * H + 2 * T * Bp * H) * 4
    out_bytes = Bp * out_dim * 4
    vmem_limit = int(min(64 * 1024 * 1024,
                         max(16 * 1024 * 1024,
                             2 * (arg_bytes + scratch_bytes + out_bytes))))

    return pl.pallas_call(
        kernel,
        out_shape=jax.ShapeDtypeStruct((Bp, out_dim), jnp.float32),
        in_specs=[vmem] * len(args),
        out_specs=vmem,
        scratch_shapes=scratch_shapes,
        compiler_params=pltpu.CompilerParams(vmem_limit_bytes=vmem_limit),
        cost_estimate=_cost_estimate(num_layers, T, Bp, H,
                                     x_flat.shape[1], out_dim, args),
    )(*args)


@jax.jit
def lstm_model_forward(x, params):
    """x: (B, T, input_size) batch_first, like the PyTorch module."""
    B, T, D = x.shape
    # Pad batch to the sublane width and layer-0 features to the padded weight
    # rows (zero rows in the weight make the padding exact, not approximate).
    Bp = max(8, ((B + 7) // 8) * 8)
    D0p = params["lstm"][0]["wih_cat"].shape[0]
    x_pad = jnp.zeros((Bp, T, D0p), jnp.float32).at[:B, :, :D].set(
        x.astype(jnp.float32))
    # Only layout glue outside the kernel: batch-first -> time-major flat rows.
    x_flat = jnp.transpose(x_pad, (1, 0, 2)).reshape(T * Bp, D0p)
    y = run_fused_model(x_flat, params, T, Bp)
    return y[:B]


# ----------------------------------------------------------------------------
# Parameters (mimics PyTorch's U(-1/sqrt(fan), 1/sqrt(fan)) init)
# ----------------------------------------------------------------------------
def init_params(key, input_size, hidden_size, output_size, num_layers):
    H = hidden_size
    bound = 1.0 / float(H) ** 0.5

    def unif(k, shape, b):
        return jax.random.uniform(k, shape, jnp.float32, -b, b)

    d0p = ((input_size + 7) // 8) * 8          # layer-0 input dim padded to >= 8

    params = {"lstm": []}
    for layer in range(num_layers):
        d_in = input_size if layer == 0 else 2 * H
        d_in_p = d0p if layer == 0 else 2 * H
        dir_p = []
        for _direction in range(2):
            key, k1, k2, k3, k4 = jax.random.split(key, 5)
            w_ih = unif(k1, (4 * H, d_in), bound)        # PyTorch layout
            w_hh = unif(k2, (4 * H, H), bound)
            b_ih = unif(k3, (4 * H,), bound)
            b_hh = unif(k4, (4 * H,), bound)
            w_ih_t = jnp.zeros((d_in_p, 4 * H), jnp.float32)
            w_ih_t = w_ih_t.at[:d_in, :].set(jnp.transpose(w_ih))    # (d_in_p, 4H)
            dir_p.append((w_ih_t,
                          jnp.transpose(w_hh),                       # (H, 4H)
                          (b_ih + b_hh).reshape(1, 4 * H)))          # (1, 4H)
        (wih_f_t, whh_f_t, b_f), (wih_b_t, whh_b_t, b_b) = dir_p
        params["lstm"].append({
            # Fused input-projection weight: [fwd gates | bwd gates] columns.
            "wih_cat": jnp.concatenate([wih_f_t, wih_b_t], axis=1).astype(jnp.bfloat16),
            "b_cat": jnp.concatenate([b_f, b_b], axis=1),            # (1, 8H) f32
            "whh_f_t": whh_f_t.astype(jnp.bfloat16),                 # (H, 4H)
            "whh_b_t": whh_b_t.astype(jnp.bfloat16),                 # (H, 4H)
        })

    bound1 = 1.0 / float(2 * H) ** 0.5
    key, k1, k2 = jax.random.split(key, 3)
    fc1_w = unif(k1, (H, 2 * H), bound1)
    fc1_b = unif(k2, (H,), bound1)
    bound2 = 1.0 / float(H) ** 0.5
    key, k1, k2 = jax.random.split(key, 3)
    fc2_w = unif(k1, (output_size, H), bound2)
    fc2_b = unif(k2, (output_size,), bound2)

    params["fc1_w_t"] = jnp.transpose(fc1_w).astype(jnp.bfloat16)    # (2H, H)
    params["fc1_b"] = fc1_b.reshape(1, H)
    params["fc2_w_t"] = jnp.transpose(fc2_w).astype(jnp.bfloat16)    # (H, O)
    params["fc2_b"] = fc2_b.reshape(1, output_size)
    return params


# ----------------------------------------------------------------------------
# Pure-JAX f32 reference (same math as torch.nn.LSTM + head), for sanity check
# ----------------------------------------------------------------------------
def _reference_forward(x, params):
    x = x.astype(jnp.float32)
    H = params["fc1_w_t"].shape[1]
    G = 4 * H

    def run_dir(x_btd, wih_t, whh_t, b):
        Br, Tr, _ = x_btd.shape
        h = jnp.zeros((Br, H), jnp.float32)
        c = jnp.zeros((Br, H), jnp.float32)
        outs = []
        for t in range(Tr):
            g = x_btd[:, t] @ wih_t + h @ whh_t + b
            i = jax.nn.sigmoid(g[:, :H])
            f = jax.nn.sigmoid(g[:, H:2 * H])
            gg = jnp.tanh(g[:, 2 * H:3 * H])
            o = jax.nn.sigmoid(g[:, 3 * H:])
            c = f * c + i * gg
            h = o * jnp.tanh(c)
            outs.append(h)
        return jnp.stack(outs, axis=1)                 # (B, T, H)

    h_in = x
    for lp in params["lstm"]:
        d = h_in.shape[-1]
        wih = lp["wih_cat"].astype(jnp.float32)[:d]    # drop zero-pad rows
        b = lp["b_cat"]
        out_f = run_dir(h_in, wih[:, :G],
                        lp["whh_f_t"].astype(jnp.float32), b[:, :G])
        out_b = run_dir(h_in[:, ::-1], wih[:, G:],
                        lp["whh_b_t"].astype(jnp.float32), b[:, G:])[:, ::-1]
        h_in = jnp.concatenate([out_f, out_b], axis=-1)
    last = h_in[:, -1]
    h1 = jnp.maximum(last @ params["fc1_w_t"].astype(jnp.float32)
                     + params["fc1_b"], 0.0)
    return h1 @ params["fc2_w_t"].astype(jnp.float32) + params["fc2_b"]


# ----------------------------------------------------------------------------
if __name__ == "__main__":
    INPUT_SIZE = 4
    HIDDEN_SIZE = 32
    OUTPUT_SIZE = 3
    NUM_LAYERS = 2
    BATCH = 2
    SEQ = 8

    key = jax.random.PRNGKey(0)
    key, pkey, xkey = jax.random.split(key, 3)

    params = init_params(pkey, INPUT_SIZE, HIDDEN_SIZE, OUTPUT_SIZE, NUM_LAYERS)
    x = jax.random.normal(xkey, (BATCH, SEQ, INPUT_SIZE), dtype=jnp.float32)

    y = lstm_model_forward(x, params)
    jax.block_until_ready(y)
    assert y.shape == (BATCH, OUTPUT_SIZE), y.shape

    # Sanity check vs a pure-JAX f32 reference (tolerance covers the bf16
    # matmul operands / MXU rounding; elementwise math is f32 in both paths).
    y_ref = _reference_forward(x, params)
    err = float(jnp.max(jnp.abs(y - y_ref)))
    assert err < 5e-2, f"mismatch vs reference: {err}"

    print("KERNEL_OK")
</pallas_src>

<mosaic_0001>
module attributes {stable_mosaic.version = 11 : i64} {
  func.func @kernel(%arg0: memref<64x8xf32, #tpu.memory_space<vmem>>, %arg1: memref<8x256xbf16, #tpu.memory_space<vmem>>, %arg2: memref<1x256xf32, #tpu.memory_space<vmem>>, %arg3: memref<32x128xbf16, #tpu.memory_space<vmem>>, %arg4: memref<32x128xbf16, #tpu.memory_space<vmem>>, %arg5: memref<64x256xbf16, #tpu.memory_space<vmem>>, %arg6: memref<1x256xf32, #tpu.memory_space<vmem>>, %arg7: memref<32x128xbf16, #tpu.memory_space<vmem>>, %arg8: memref<32x128xbf16, #tpu.memory_space<vmem>>, %arg9: memref<64x32xbf16, #tpu.memory_space<vmem>>, %arg10: memref<1x32xf32, #tpu.memory_space<vmem>>, %arg11: memref<32x3xbf16, #tpu.memory_space<vmem>>, %arg12: memref<1x3xf32, #tpu.memory_space<vmem>>, %arg13: memref<8x3xf32, #tpu.memory_space<vmem>>, %arg14: memref<64x256xf32, #tpu.memory_space<vmem>>, %arg15: memref<64x32xf32, #tpu.memory_space<vmem>>, %arg16: memref<64x32xf32, #tpu.memory_space<vmem>>) attributes {dimension_semantics = [], scalar_prefetch = 0 : i64, scratch_operands = 3 : i64, tpu.core_type = #tpu.core_type<tc>} {
    %c0 = arith.constant 0 : index
    %c0_0 = arith.constant 0 : index
    %0 = vector.load %arg1[%c0, %c0_0] : memref<8x256xbf16, #tpu.memory_space<vmem>>, vector<8x256xbf16>
    %c0_1 = arith.constant 0 : index
    %c0_2 = arith.constant 0 : index
    %1 = vector.load %arg0[%c0_1, %c0_2] : memref<64x8xf32, #tpu.memory_space<vmem>>, vector<64x8xf32>
    %2 = arith.truncf %1 : vector<64x8xf32> to vector<64x8xbf16>
    %cst = arith.constant dense<0.000000e+00> : vector<64x256xf32>
    %3 = tpu.matmul %2, %0, %cst {dimension_numbers = #tpu.dot_dimension_numbers<[1], [0], [0], [1], [0, 0, 1, 1], [], []>} : vector<64x8xbf16>, vector<8x256xbf16>, vector<64x256xf32> -> vector<64x256xf32>
    %c0_3 = arith.constant 0 : index
    %c0_4 = arith.constant 0 : index
    %4 = vector.load %arg2[%c0_3, %c0_4] : memref<1x256xf32, #tpu.memory_space<vmem>>, vector<1x256xf32>
    %5 = vector.broadcast %4 : vector<1x256xf32> to vector<64x256xf32>
    %6 = arith.addf %3, %5 : vector<64x256xf32>
    %c0_5 = arith.constant 0 : index
    %c0_6 = arith.constant 0 : index
    %7 = vector.load %arg14[%c0_5, %c0_6] : memref<64x256xf32, #tpu.memory_space<vmem>>, vector<64x256xf32>
    tpu.vector_store %arg14[%c0_5, %c0_6], %6 {strides = array<i32>} : memref<64x256xf32, #tpu.memory_space<vmem>>, vector<64x256xf32>,
    %c0_7 = arith.constant 0 : index
    %c0_8 = arith.constant 0 : index
    %8 = vector.load %arg3[%c0_7, %c0_8] : memref<32x128xbf16, #tpu.memory_space<vmem>>, vector<32x128xbf16>
    %c0_9 = arith.constant 0 : index
    %c0_10 = arith.constant 0 : index
    %9 = vector.load %arg4[%c0_9, %c0_10] : memref<32x128xbf16, #tpu.memory_space<vmem>>, vector<32x128xbf16>
    %cst_11 = arith.constant 0.000000e+00 : f32
    %10 = vector.broadcast %cst_11 : f32 to vector<8x32xf32>
    %cst_12 = arith.constant 0.000000e+00 : f32
    %11 = vector.broadcast %cst_12 : f32 to vector<8x32xf32>
    %cst_13 = arith.constant 0.000000e+00 : f32
    %12 = vector.broadcast %cst_13 : f32 to vector<8x32xf32>
    %cst_14 = arith.constant 0.000000e+00 : f32
    %13 = vector.broadcast %cst_14 : f32 to vector<8x32xf32>
    %14 = arith.truncf %10 : vector<8x32xf32> to vector<8x32xbf16>
    %cst_15 = arith.constant dense<0.000000e+00> : vector<8x128xf32>
    %15 = tpu.matmul %14, %8, %cst_15 {dimension_numbers = #tpu.dot_dimension_numbers<[1], [0], [0], [1], [0, 0, 1, 1], [], []>} : vector<8x32xbf16>, vector<32x128xbf16>, vector<8x128xf32> -> vector<8x128xf32>
    %16 = arith.truncf %11 : vector<8x32xf32> to vector<8x32xbf16>
    %cst_16 = arith.constant dense<0.000000e+00> : vector<8x128xf32>
    %17 = tpu.matmul %16, %9, %cst_16 {dimension_numbers = #tpu.dot_dimension_numbers<[1], [0], [0], [1], [0, 0, 1, 1], [], []>} : vector<8x32xbf16>, vector<32x128xbf16>, vector<8x128xf32> -> vector<8x128xf32>
    %c0_17 = arith.constant 0 : index
    %c0_18 = arith.constant 0 : index
    %18 = vector.load %arg14[%c0_17, %c0_18] : memref<64x256xf32, #tpu.memory_space<vmem>>, vector<8x128xf32>
    %19 = arith.addf %18, %15 : vector<8x128xf32>
    %c56 = arith.constant 56 : index
    %c128 = arith.constant 128 : index
    %20 = vector.load %arg14[%c56, %c128] : memref<64x256xf32, #tpu.memory_space<vmem>>, vector<8x128xf32>
    %21 = arith.addf %20, %17 : vector<8x128xf32>
    %22 = vector.extract_strided_slice %19 {offsets = [0, 0], sizes = [8, 32], strides = [1, 1]} : vector<8x128xf32> to vector<8x32xf32>
    %23 = arith.negf %22 : vector<8x32xf32>
    %24 = math.exp %23 : vector<8x32xf32>
    %cst_19 = arith.constant 1.000000e+00 : f32
    %25 = vector.broadcast %cst_19 : f32 to vector<8x32xf32>
    %26 = arith.addf %25, %24 : vector<8x32xf32>
    %27 = arith.divf %25, %26 : vector<8x32xf32>
    %28 = vector.extract_strided_slice %19 {offsets = [0, 32], sizes = [8, 32], strides = [1, 1]} : vector<8x128xf32> to vector<8x32xf32>
    %29 = arith.negf %28 : vector<8x32xf32>
    %30 = math.exp %29 : vector<8x32xf32>
    %cst_20 = arith.constant 1.000000e+00 : f32
    %31 = vector.broadcast %cst_20 : f32 to vector<8x32xf32>
    %32 = arith.addf %31, %30 : vector<8x32xf32>
    %33 = arith.divf %31, %32 : vector<8x32xf32>
    %34 = vector.extract_strided_slice %19 {offsets = [0, 64], sizes = [8, 32], strides = [1, 1]} : vector<8x128xf32> to vector<8x32xf32>
    %35 = math.tanh %34 : vector<8x32xf32>
    %36 = vector.extract_strided_slice %19 {offsets = [0, 96], sizes = [8, 32], strides = [1, 1]} : vector<8x128xf32> to vector<8x32xf32>
    %37 = arith.negf %36 : vector<8x32xf32>
    %38 = math.exp %37 : vector<8x32xf32>
    %cst_21 = arith.constant 1.000000e+00 : f32
    %39 = vector.broadcast %cst_21 : f32 to vector<8x32xf32>
    %40 = arith.addf %39, %38 : vector<8x32xf32>
    %41 = arith.divf %39, %40 : vector<8x32xf32>
    %42 = arith.mulf %33, %12 : vector<8x32xf32>
    %43 = arith.mulf %27, %35 : vector<8x32xf32>
    %44 = arith.addf %42, %43 : vector<8x32xf32>
    %45 = math.tanh %44 : vector<8x32xf32>
    %46 = arith.mulf %41, %45 : vector<8x32xf32>
    %47 = vector.extract_strided_slice %21 {offsets = [0, 0], sizes = [8, 32], strides = [1, 1]} : vector<8x128xf32> to vector<8x32xf32>
    %48 = arith.negf %47 : vector<8x32xf32>
    %49 = math.exp %48 : vector<8x32xf32>
    %cst_22 = arith.constant 1.000000e+00 : f32
    %50 = vector.broadcast %cst_22 : f32 to vector<8x32xf32>
    %51 = arith.addf %50, %49 : vector<8x32xf32>
    %52 = arith.divf %50, %51 : vector<8x32xf32>
    %53 = vector.extract_strided_slice %21 {offsets = [0, 32], sizes = [8, 32], strides = [1, 1]} : vector<8x128xf32> to vector<8x32xf32>
    %54 = arith.negf %53 : vector<8x32xf32>
    %55 = math.exp %54 : vector<8x32xf32>
    %cst_23 = arith.constant 1.000000e+00 : f32
    %56 = vector.broadcast %cst_23 : f32 to vector<8x32xf32>
    %57 = arith.addf %56, %55 : vector<8x32xf32>
    %58 = arith.divf %56, %57 : vector<8x32xf32>
    %59 = vector.extract_strided_slice %21 {offsets = [0, 64], sizes = [8, 32], strides = [1, 1]} : vector<8x128xf32> to vector<8x32xf32>
    %60 = math.tanh %59 : vector<8x32xf32>
    %61 = vector.extract_strided_slice %21 {offsets = [0, 96], sizes = [8, 32], strides = [1, 1]} : vector<8x128xf32> to vector<8x32xf32>
    %62 = arith.negf %61 : vector<8x32xf32>
    %63 = math.exp %62 : vector<8x32xf32>
    %cst_24 = arith.constant 1.000000e+00 : f32
    %64 = vector.broadcast %cst_24 : f32 to vector<8x32xf32>
    %65 = arith.addf %64, %63 : vector<8x32xf32>
    %66 = arith.divf %64, %65 : vector<8x32xf32>
    %67 = arith.mulf %58, %13 : vector<8x32xf32>
    %68 = arith.mulf %52, %60 : vector<8x32xf32>
    %69 = arith.addf %67, %68 : vector<8x32xf32>
    %70 = math.tanh %69 : vector<8x32xf32>
    %71 = arith.mulf %66, %70 : vector<8x32xf32>
    %c0_25 = arith.constant 0 : index
    %c0_26 = arith.constant 0 : index
    %72 = vector.load %arg15[%c0_25, %c0_26] : memref<64x32xf32, #tpu.memory_space<vmem>>, vector<8x32xf32>
    tpu.vector_store %arg15[%c0_25, %c0_26], %46 {strides = array<i32>} : memref<64x32xf32, #tpu.memory_space<vmem>>, vector<8x32xf32>,
    %c56_27 = arith.constant 56 : index
    %c0_28 = arith.constant 0 : index
    %73 = vector.load %arg16[%c56_27, %c0_28] : memref<64x32xf32, #tpu.memory_space<vmem>>, vector<8x32xf32>
    tpu.vector_store %arg16[%c56_27, %c0_28], %71 {strides = array<i32>} : memref<64x32xf32, #tpu.memory_space<vmem>>, vector<8x32xf32>,
    %74 = arith.truncf %46 : vector<8x32xf32> to vector<8x32xbf16>
    %cst_29 = arith.constant dense<0.000000e+00> : vector<8x128xf32>
    %75 = tpu.matmul %74, %8, %cst_29 {dimension_numbers = #tpu.dot_dimension_numbers<[1], [0], [0], [1], [0, 0, 1, 1], [], []>} : vector<8x32xbf16>, vector<32x128xbf16>, vector<8x128xf32> -> vector<8x128xf32>
    %76 = arith.truncf %71 : vector<8x32xf32> to vector<8x32xbf16>
    %cst_30 = arith.constant dense<0.000000e+00> : vector<8x128xf32>
    %77 = tpu.matmul %76, %9, %cst_30 {dimension_numbers = #tpu.dot_dimension_numbers<[1], [0], [0], [1], [0, 0, 1, 1], [], []>} : vector<8x32xbf16>, vector<32x128xbf16>, vector<8x128xf32> -> vector<8x128xf32>
    %c8 = arith.constant 8 : index
    %c0_31 = arith.constant 0 : index
    %78 = vector.load %arg14[%c8, %c0_31] : memref<64x256xf32, #tpu.memory_space<vmem>>, vector<8x128xf32>
    %79 = arith.addf %78, %75 : vector<8x128xf32>
    %c48 = arith.constant 48 : index
    %c128_32 = arith.constant 128 : index
    %80 = vector.load %arg14[%c48, %c128_32] : memref<64x256xf32, #tpu.memory_space<vmem>>, vector<8x128xf32>
    %81 = arith.addf %80, %77 : vector<8x128xf32>
    %82 = vector.extract_strided_slice %79 {offsets = [0, 0], sizes = [8, 32], strides = [1, 1]} : vector<8x128xf32> to vector<8x32xf32>
    %83 = arith.negf %82 : vector<8x32xf32>
    %84 = math.exp %83 : vector<8x32xf32>
    %cst_33 = arith.constant 1.000000e+00 : f32
    %85 = vector.broadcast %cst_33 : f32 to vector<8x32xf32>
    %86 = arith.addf %85, %84 : vector<8x32xf32>
    %87 = arith.divf %85, %86 : vector<8x32xf32>
    %88 = vector.extract_strided_slice %79 {offsets = [0, 32], sizes = [8, 32], strides = [1, 1]} : vector<8x128xf32> to vector<8x32xf32>
    %89 = arith.negf %88 : vector<8x32xf32>
    %90 = math.exp %89 : vector<8x32xf32>
    %cst_34 = arith.constant 1.000000e+00 : f32
    %91 = vector.broadcast %cst_34 : f32 to vector<8x32xf32>
    %92 = arith.addf %91, %90 : vector<8x32xf32>
    %93 = arith.divf %91, %92 : vector<8x32xf32>
    %94 = vector.extract_strided_slice %79 {offsets = [0, 64], sizes = [8, 32], strides = [1, 1]} : vector<8x128xf32> to vector<8x32xf32>
    %95 = math.tanh %94 : vector<8x32xf32>
    %96 = vector.extract_strided_slice %79 {offsets = [0, 96], sizes = [8, 32], strides = [1, 1]} : vector<8x128xf32> to vector<8x32xf32>
    %97 = arith.negf %96 : vector<8x32xf32>
    %98 = math.exp %97 : vector<8x32xf32>
    %cst_35 = arith.constant 1.000000e+00 : f32
    %99 = vector.broadcast %cst_35 : f32 to vector<8x32xf32>
    %100 = arith.addf %99, %98 : vector<8x32xf32>
    %101 = arith.divf %99, %100 : vector<8x32xf32>
    %102 = arith.mulf %93, %44 : vector<8x32xf32>
    %103 = arith.mulf %87, %95 : vector<8x32xf32>
    %104 = arith.addf %102, %103 : vector<8x32xf32>
    %105 = math.tanh %104 : vector<8x32xf32>
    %106 = arith.mulf %101, %105 : vector<8x32xf32>
    %107 = vector.extract_strided_slice %81 {offsets = [0, 0], sizes = [8, 32], strides = [1, 1]} : vector<8x128xf32> to vector<8x32xf32>
    %108 = arith.negf %107 : vector<8x32xf32>
    %109 = math.exp %108 : vector<8x32xf32>
    %cst_36 = arith.constant 1.000000e+00 : f32
    %110 = vector.broadcast %cst_36 : f32 to vector<8x32xf32>
    %111 = arith.addf %110, %109 : vector<8x32xf32>
    %112 = arith.divf %110, %111 : vector<8x32xf32>
    %113 = vector.extract_strided_slice %81 {offsets = [0, 32], sizes = [8, 32], strides = [1, 1]} : vector<8x128xf32> to vector<8x32xf32>
    %114 = arith.negf %113 : vector<8x32xf32>
    %115 = math.exp %114 : vector<8x32xf32>
    %cst_37 = arith.constant 1.000000e+00 : f32
    %116 = vector.broadcast %cst_37 : f32 to vector<8x32xf32>
    %117 = arith.addf %116, %115 : vector<8x32xf32>
    %118 = arith.divf %116, %117 : vector<8x32xf32>
    %119 = vector.extract_strided_slice %81 {offsets = [0, 64], sizes = [8, 32], strides = [1, 1]} : vector<8x128xf32> to vector<8x32xf32>
    %120 = math.tanh %119 : vector<8x32xf32>
    %121 = vector.extract_strided_slice %81 {offsets = [0, 96], sizes = [8, 32], strides = [1, 1]} : vector<8x128xf32> to vector<8x32xf32>
    %122 = arith.negf %121 : vector<8x32xf32>
    %123 = math.exp %122 : vector<8x32xf32>
    %cst_38 = arith.constant 1.000000e+00 : f32
    %124 = vector.broadcast %cst_38 : f32 to vector<8x32xf32>
    %125 = arith.addf %124, %123 : vector<8x32xf32>
    %126 = arith.divf %124, %125 : vector<8x32xf32>
    %127 = arith.mulf %118, %69 : vector<8x32xf32>
    %128 = arith.mulf %112, %120 : vector<8x32xf32>
    %129 = arith.addf %127, %128 : vector<8x32xf32>
    %130 = math.tanh %129 : vector<8x32xf32>
    %131 = arith.mulf %126, %130 : vector<8x32xf32>
    %c8_39 = arith.constant 8 : index
    %c0_40 = arith.constant 0 : index
    %132 = vector.load %arg15[%c8_39, %c0_40] : memref<64x32xf32, #tpu.memory_space<vmem>>, vector<8x32xf32>
    tpu.vector_store %arg15[%c8_39, %c0_40], %106 {strides = array<i32>} : memref<64x32xf32, #tpu.memory_space<vmem>>, vector<8x32xf32>,
    %c48_41 = arith.constant 48 : index
    %c0_42 = arith.constant 0 : index
    %133 = vector.load %arg16[%c48_41, %c0_42] : memref<64x32xf32, #tpu.memory_space<vmem>>, vector<8x32xf32>
    tpu.vector_store %arg16[%c48_41, %c0_42], %131 {strides = array<i32>} : memref<64x32xf32, #tpu.memory_space<vmem>>, vector<8x32xf32>,
    %134 = arith.truncf %106 : vector<8x32xf32> to vector<8x32xbf16>
    %cst_43 = arith.constant dense<0.000000e+00> : vector<8x128xf32>
    %135 = tpu.matmul %134, %8, %cst_43 {dimension_numbers = #tpu.dot_dimension_numbers<[1], [0], [0], [1], [0, 0, 1, 1], [], []>} : vector<8x32xbf16>, vector<32x128xbf16>, vector<8x128xf32> -> vector<8x128xf32>
    %136 = arith.truncf %131 : vector<8x32xf32> to vector<8x32xbf16>
    %cst_44 = arith.constant dense<0.000000e+00> : vector<8x128xf32>
    %137 = tpu.matmul %136, %9, %cst_44 {dimension_numbers = #tpu.dot_dimension_numbers<[1], [0], [0], [1], [0, 0, 1, 1], [], []>} : vector<8x32xbf16>, vector<32x128xbf16>, vector<8x128xf32> -> vector<8x128xf32>
    %c16 = arith.constant 16 : index
    %c0_45 = arith.constant 0 : index
    %138 = vector.load %arg14[%c16, %c0_45] : memref<64x256xf32, #tpu.memory_space<vmem>>, vector<8x128xf32>
    %139 = arith.addf %138, %135 : vector<8x128xf32>
    %c40 = arith.constant 40 : index
    %c128_46 = arith.constant 128 : index
    %140 = vector.load %arg14[%c40, %c128_46] : memref<64x256xf32, #tpu.memory_space<vmem>>, vector<8x128xf32>
    %141 = arith.addf %140, %137 : vector<8x128xf32>
    %142 = vector.extract_strided_slice %139 {offsets = [0, 0], sizes = [8, 32], strides = [1, 1]} : vector<8x128xf32> to vector<8x32xf32>
    %143 = arith.negf %142 : vector<8x32xf32>
    %144 = math.exp %143 : vector<8x32xf32>
    %cst_47 = arith.constant 1.000000e+00 : f32
    %145 = vector.broadcast %cst_47 : f32 to vector<8x32xf32>
    %146 = arith.addf %145, %144 : vector<8x32xf32>
    %147 = arith.divf %145, %146 : vector<8x32xf32>
    %148 = vector.extract_strided_slice %139 {offsets = [0, 32], sizes = [8, 32], strides = [1, 1]} : vector<8x128xf32> to vector<8x32xf32>
    %149 = arith.negf %148 : vector<8x32xf32>
    %150 = math.exp %149 : vector<8x32xf32>
    %cst_48 = arith.constant 1.000000e+00 : f32
    %151 = vector.broadcast %cst_48 : f32 to vector<8x32xf32>
    %152 = arith.addf %151, %150 : vector<8x32xf32>
    %153 = arith.divf %151, %152 : vector<8x32xf32>
    %154 = vector.extract_strided_slice %139 {offsets = [0, 64], sizes = [8, 32], strides = [1, 1]} : vector<8x128xf32> to vector<8x32xf32>
    %155 = math.tanh %154 : vector<8x32xf32>
    %156 = vector.extract_strided_slice %139 {offsets = [0, 96], sizes = [8, 32], strides = [1, 1]} : vector<8x128xf32> to vector<8x32xf32>
    %157 = arith.negf %156 : vector<8x32xf32>
    %158 = math.exp %157 : vector<8x32xf32>
    %cst_49 = arith.constant 1.000000e+00 : f32
    %159 = vector.broadcast %cst_49 : f32 to vector<8x32xf32>
    %160 = arith.addf %159, %158 : vector<8x32xf32>
    %161 = arith.divf %159, %160 : vector<8x32xf32>
    %162 = arith.mulf %153, %104 : vector<8x32xf32>
    %163 = arith.mulf %147, %155 : vector<8x32xf32>
    %164 = arith.addf %162, %163 : vector<8x32xf32>
    %165 = math.tanh %164 : vector<8x32xf32>
    %166 = arith.mulf %161, %165 : vector<8x32xf32>
    %167 = vector.extract_strided_slice %141 {offsets = [0, 0], sizes = [8, 32], strides = [1, 1]} : vector<8x128xf32> to vector<8x32xf32>
    %168 = arith.negf %167 : vector<8x32xf32>
    %169 = math.exp %168 : vector<8x32xf32>
    %cst_50 = arith.constant 1.000000e+00 : f32
    %170 = vector.broadcast %cst_50 : f32 to vector<8x32xf32>
    %171 = arith.addf %170, %169 : vector<8x32xf32>
    %172 = arith.divf %170, %171 : vector<8x32xf32>
    %173 = vector.extract_strided_slice %141 {offsets = [0, 32], sizes = [8, 32], strides = [1, 1]} : vector<8x128xf32> to vector<8x32xf32>
    %174 = arith.negf %173 : vector<8x32xf32>
    %175 = math.exp %174 : vector<8x32xf32>
    %cst_51 = arith.constant 1.000000e+00 : f32
    %176 = vector.broadcast %cst_51 : f32 to vector<8x32xf32>
    %177 = arith.addf %176, %175 : vector<8x32xf32>
    %178 = arith.divf %176, %177 : vector<8x32xf32>
    %179 = vector.extract_strided_slice %141 {offsets = [0, 64], sizes = [8, 32], strides = [1, 1]} : vector<8x128xf32> to vector<8x32xf32>
    %180 = math.tanh %179 : vector<8x32xf32>
    %181 = vector.extract_strided_slice %141 {offsets = [0, 96], sizes = [8, 32], strides = [1, 1]} : vector<8x128xf32> to vector<8x32xf32>
    %182 = arith.negf %181 : vector<8x32xf32>
    %183 = math.exp %182 : vector<8x32xf32>
    %cst_52 = arith.constant 1.000000e+00 : f32
    %184 = vector.broadcast %cst_52 : f32 to vector<8x32xf32>
    %185 = arith.addf %184, %183 : vector<8x32xf32>
    %186 = arith.divf %184, %185 : vector<8x32xf32>
    %187 = arith.mulf %178, %129 : vector<8x32xf32>
    %188 = arith.mulf %172, %180 : vector<8x32xf32>
    %189 = arith.addf %187, %188 : vector<8x32xf32>
    %190 = math.tanh %189 : vector<8x32xf32>
    %191 = arith.mulf %186, %190 : vector<8x32xf32>
    %c16_53 = arith.constant 16 : index
    %c0_54 = arith.constant 0 : index
    %192 = vector.load %arg15[%c16_53, %c0_54] : memref<64x32xf32, #tpu.memory_space<vmem>>, vector<8x32xf32>
    tpu.vector_store %arg15[%c16_53, %c0_54], %166 {strides = array<i32>} : memref<64x32xf32, #tpu.memory_space<vmem>>, vector<8x32xf32>,
    %c40_55 = arith.constant 40 : index
    %c0_56 = arith.constant 0 : index
    %193 = vector.load %arg16[%c40_55, %c0_56] : memref<64x32xf32, #tpu.memory_space<vmem>>, vector<8x32xf32>
    tpu.vector_store %arg16[%c40_55, %c0_56], %191 {strides = array<i32>} : memref<64x32xf32, #tpu.memory_space<vmem>>, vector<8x32xf32>,
    %194 = arith.truncf %166 : vector<8x32xf32> to vector<8x32xbf16>
    %cst_57 = arith.constant dense<0.000000e+00> : vector<8x128xf32>
    %195 = tpu.matmul %194, %8, %cst_57 {dimension_numbers = #tpu.dot_dimension_numbers<[1], [0], [0], [1], [0, 0, 1, 1], [], []>} : vector<8x32xbf16>, vector<32x128xbf16>, vector<8x128xf32> -> vector<8x128xf32>
    %196 = arith.truncf %191 : vector<8x32xf32> to vector<8x32xbf16>
    %cst_58 = arith.constant dense<0.000000e+00> : vector<8x128xf32>
    %197 = tpu.matmul %196, %9, %cst_58 {dimension_numbers = #tpu.dot_dimension_numbers<[1], [0], [0], [1], [0, 0, 1, 1], [], []>} : vector<8x32xbf16>, vector<32x128xbf16>, vector<8x128xf32> -> vector<8x128xf32>
    %c24 = arith.constant 24 : index
    %c0_59 = arith.constant 0 : index
    %198 = vector.load %arg14[%c24, %c0_59] : memref<64x256xf32, #tpu.memory_space<vmem>>, vector<8x128xf32>
    %199 = arith.addf %198, %195 : vector<8x128xf32>
    %c32 = arith.constant 32 : index
    %c128_60 = arith.constant 128 : index
    %200 = vector.load %arg14[%c32, %c128_60] : memref<64x256xf32, #tpu.memory_space<vmem>>, vector<8x128xf32>
    %201 = arith.addf %200, %197 : vector<8x128xf32>
    %202 = vector.extract_strided_slice %199 {offsets = [0, 0], sizes = [8, 32], strides = [1, 1]} : vector<8x128xf32> to vector<8x32xf32>
    %203 = arith.negf %202 : vector<8x32xf32>
    %204 = math.exp %203 : vector<8x32xf32>
    %cst_61 = arith.constant 1.000000e+00 : f32
    %205 = vector.broadcast %cst_61 : f32 to vector<8x32xf32>
    %206 = arith.addf %205, %204 : vector<8x32xf32>
    %207 = arith.divf %205, %206 : vector<8x32xf32>
    %208 = vector.extract_strided_slice %199 {offsets = [0, 32], sizes = [8, 32], strides = [1, 1]} : vector<8x128xf32> to vector<8x32xf32>
    %209 = arith.negf %208 : vector<8x32xf32>
    %210 = math.exp %209 : vector<8x32xf32>
    %cst_62 = arith.constant 1.000000e+00 : f32
    %211 = vector.broadcast %cst_62 : f32 to vector<8x32xf32>
    %212 = arith.addf %211, %210 : vector<8x32xf32>
    %213 = arith.divf %211, %212 : vector<8x32xf32>
    %214 = vector.extract_strided_slice %199 {offsets = [0, 64], sizes = [8, 32], strides = [1, 1]} : vector<8x128xf32> to vector<8x32xf32>
    %215 = math.tanh %214 : vector<8x32xf32>
    %216 = vector.extract_strided_slice %199 {offsets = [0, 96], sizes = [8, 32], strides = [1, 1]} : vector<8x128xf32> to vector<8x32xf32>
    %217 = arith.negf %216 : vector<8x32xf32>
    %218 = math.exp %217 : vector<8x32xf32>
    %cst_63 = arith.constant 1.000000e+00 : f32
    %219 = vector.broadcast %cst_63 : f32 to vector<8x32xf32>
    %220 = arith.addf %219, %218 : vector<8x32xf32>
    %221 = arith.divf %219, %220 : vector<8x32xf32>
    %222 = arith.mulf %213, %164 : vector<8x32xf32>
    %223 = arith.mulf %207, %215 : vector<8x32xf32>
    %224 = arith.addf %222, %223 : vector<8x32xf32>
    %225 = math.tanh %224 : vector<8x32xf32>
    %226 = arith.mulf %221, %225 : vector<8x32xf32>
    %227 = vector.extract_strided_slice %201 {offsets = [0, 0], sizes = [8, 32], strides = [1, 1]} : vector<8x128xf32> to vector<8x32xf32>
    %228 = arith.negf %227 : vector<8x32xf32>
    %229 = math.exp %228 : vector<8x32xf32>
    %cst_64 = arith.constant 1.000000e+00 : f32
    %230 = vector.broadcast %cst_64 : f32 to vector<8x32xf32>
    %231 = arith.addf %230, %229 : vector<8x32xf32>
    %232 = arith.divf %230, %231 : vector<8x32xf32>
    %233 = vector.extract_strided_slice %201 {offsets = [0, 32], sizes = [8, 32], strides = [1, 1]} : vector<8x128xf32> to vector<8x32xf32>
    %234 = arith.negf %233 : vector<8x32xf32>
    %235 = math.exp %234 : vector<8x32xf32>
    %cst_65 = arith.constant 1.000000e+00 : f32
    %236 = vector.broadcast %cst_65 : f32 to vector<8x32xf32>
    %237 = arith.addf %236, %235 : vector<8x32xf32>
    %238 = arith.divf %236, %237 : vector<8x32xf32>
    %239 = vector.extract_strided_slice %201 {offsets = [0, 64], sizes = [8, 32], strides = [1, 1]} : vector<8x128xf32> to vector<8x32xf32>
    %240 = math.tanh %239 : vector<8x32xf32>
    %241 = vector.extract_strided_slice %201 {offsets = [0, 96], sizes = [8, 32], strides = [1, 1]} : vector<8x128xf32> to vector<8x32xf32>
    %242 = arith.negf %241 : vector<8x32xf32>
    %243 = math.exp %242 : vector<8x32xf32>
    %cst_66 = arith.constant 1.000000e+00 : f32
    %244 = vector.broadcast %cst_66 : f32 to vector<8x32xf32>
    %245 = arith.addf %244, %243 : vector<8x32xf32>
    %246 = arith.divf %244, %245 : vector<8x32xf32>
    %247 = arith.mulf %238, %189 : vector<8x32xf32>
    %248 = arith.mulf %232, %240 : vector<8x32xf32>
    %249 = arith.addf %247, %248 : vector<8x32xf32>
    %250 = math.tanh %249 : vector<8x32xf32>
    %251 = arith.mulf %246, %250 : vector<8x32xf32>
    %c24_67 = arith.constant 24 : index
    %c0_68 = arith.constant 0 : index
    %252 = vector.load %arg15[%c24_67, %c0_68] : memref<64x32xf32, #tpu.memory_space<vmem>>, vector<8x32xf32>
    tpu.vector_store %arg15[%c24_67, %c0_68], %226 {strides = array<i32>} : memref<64x32xf32, #tpu.memory_space<vmem>>, vector<8x32xf32>,
    %c32_69 = arith.constant 32 : index
    %c0_70 = arith.constant 0 : index
    %253 = vector.load %arg16[%c32_69, %c0_70] : memref<64x32xf32, #tpu.memory_space<vmem>>, vector<8x32xf32>
    tpu.vector_store %arg16[%c32_69, %c0_70], %251 {strides = array<i32>} : memref<64x32xf32, #tpu.memory_space<vmem>>, vector<8x32xf32>,
    %254 = arith.truncf %226 : vector<8x32xf32> to vector<8x32xbf16>
    %cst_71 = arith.constant dense<0.000000e+00> : vector<8x128xf32>
    %255 = tpu.matmul %254, %8, %cst_71 {dimension_numbers = #tpu.dot_dimension_numbers<[1], [0], [0], [1], [0, 0, 1, 1], [], []>} : vector<8x32xbf16>, vector<32x128xbf16>, vector<8x128xf32> -> vector<8x128xf32>
    %256 = arith.truncf %251 : vector<8x32xf32> to vector<8x32xbf16>
    %cst_72 = arith.constant dense<0.000000e+00> : vector<8x128xf32>
    %257 = tpu.matmul %256, %9, %cst_72 {dimension_numbers = #tpu.dot_dimension_numbers<[1], [0], [0], [1], [0, 0, 1, 1], [], []>} : vector<8x32xbf16>, vector<32x128xbf16>, vector<8x128xf32> -> vector<8x128xf32>
    %c32_73 = arith.constant 32 : index
    %c0_74 = arith.constant 0 : index
    %258 = vector.load %arg14[%c32_73, %c0_74] : memref<64x256xf32, #tpu.memory_space<vmem>>, vector<8x128xf32>
    %259 = arith.addf %258, %255 : vector<8x128xf32>
    %c24_75 = arith.constant 24 : index
    %c128_76 = arith.constant 128 : index
    %260 = vector.load %arg14[%c24_75, %c128_76] : memref<64x256xf32, #tpu.memory_space<vmem>>, vector<8x128xf32>
    %261 = arith.addf %260, %257 : vector<8x128xf32>
    %262 = vector.extract_strided_slice %259 {offsets = [0, 0], sizes = [8, 32], strides = [1, 1]} : vector<8x128xf32> to vector<8x32xf32>
    %263 = arith.negf %262 : vector<8x32xf32>
    %264 = math.exp %263 : vector<8x32xf32>
    %cst_77 = arith.constant 1.000000e+00 : f32
    %265 = vector.broadcast %cst_77 : f32 to vector<8x32xf32>
    %266 = arith.addf %265, %264 : vector<8x32xf32>
    %267 = arith.divf %265, %266 : vector<8x32xf32>
    %268 = vector.extract_strided_slice %259 {offsets = [0, 32], sizes = [8, 32], strides = [1, 1]} : vector<8x128xf32> to vector<8x32xf32>
    %269 = arith.negf %268 : vector<8x32xf32>
    %270 = math.exp %269 : vector<8x32xf32>
    %cst_78 = arith.constant 1.000000e+00 : f32
    %271 = vector.broadcast %cst_78 : f32 to vector<8x32xf32>
    %272 = arith.addf %271, %270 : vector<8x32xf32>
    %273 = arith.divf %271, %272 : vector<8x32xf32>
    %274 = vector.extract_strided_slice %259 {offsets = [0, 64], sizes = [8, 32], strides = [1, 1]} : vector<8x128xf32> to vector<8x32xf32>
    %275 = math.tanh %274 : vector<8x32xf32>
    %276 = vector.extract_strided_slice %259 {offsets = [0, 96], sizes = [8, 32], strides = [1, 1]} : vector<8x128xf32> to vector<8x32xf32>
    %277 = arith.negf %276 : vector<8x32xf32>
    %278 = math.exp %277 : vector<8x32xf32>
    %cst_79 = arith.constant 1.000000e+00 : f32
    %279 = vector.broadcast %cst_79 : f32 to vector<8x32xf32>
    %280 = arith.addf %279, %278 : vector<8x32xf32>
    %281 = arith.divf %279, %280 : vector<8x32xf32>
    %282 = arith.mulf %273, %224 : vector<8x32xf32>
    %283 = arith.mulf %267, %275 : vector<8x32xf32>
    %284 = arith.addf %282, %283 : vector<8x32xf32>
    %285 = math.tanh %284 : vector<8x32xf32>
    %286 = arith.mulf %281, %285 : vector<8x32xf32>
    %287 = vector.extract_strided_slice %261 {offsets = [0, 0], sizes = [8, 32], strides = [1, 1]} : vector<8x128xf32> to vector<8x32xf32>
    %288 = arith.negf %287 : vector<8x32xf32>
    %289 = math.exp %288 : vector<8x32xf32>
    %cst_80 = arith.constant 1.000000e+00 : f32
    %290 = vector.broadcast %cst_80 : f32 to vector<8x32xf32>
    %291 = arith.addf %290, %289 : vector<8x32xf32>
    %292 = arith.divf %290, %291 : vector<8x32xf32>
    %293 = vector.extract_strided_slice %261 {offsets = [0, 32], sizes = [8, 32], strides = [1, 1]} : vector<8x128xf32> to vector<8x32xf32>
    %294 = arith.negf %293 : vector<8x32xf32>
    %295 = math.exp %294 : vector<8x32xf32>
    %cst_81 = arith.constant 1.000000e+00 : f32
    %296 = vector.broadcast %cst_81 : f32 to vector<8x32xf32>
    %297 = arith.addf %296, %295 : vector<8x32xf32>
    %298 = arith.divf %296, %297 : vector<8x32xf32>
    %299 = vector.extract_strided_slice %261 {offsets = [0, 64], sizes = [8, 32], strides = [1, 1]} : vector<8x128xf32> to vector<8x32xf32>
    %300 = math.tanh %299 : vector<8x32xf32>
    %301 = vector.extract_strided_slice %261 {offsets = [0, 96], sizes = [8, 32], strides = [1, 1]} : vector<8x128xf32> to vector<8x32xf32>
    %302 = arith.negf %301 : vector<8x32xf32>
    %303 = math.exp %302 : vector<8x32xf32>
    %cst_82 = arith.constant 1.000000e+00 : f32
    %304 = vector.broadcast %cst_82 : f32 to vector<8x32xf32>
    %305 = arith.addf %304, %303 : vector<8x32xf32>
    %306 = arith.divf %304, %305 : vector<8x32xf32>
    %307 = arith.mulf %298, %249 : vector<8x32xf32>
    %308 = arith.mulf %292, %300 : vector<8x32xf32>
    %309 = arith.addf %307, %308 : vector<8x32xf32>
    %310 = math.tanh %309 : vector<8x32xf32>
    %311 = arith.mulf %306, %310 : vector<8x32xf32>
    %c32_83 = arith.constant 32 : index
    %c0_84 = arith.constant 0 : index
    %312 = vector.load %arg15[%c32_83, %c0_84] : memref<64x32xf32, #tpu.memory_space<vmem>>, vector<8x32xf32>
    tpu.vector_store %arg15[%c32_83, %c0_84], %286 {strides = array<i32>} : memref<64x32xf32, #tpu.memory_space<vmem>>, vector<8x32xf32>,
    %c24_85 = arith.constant 24 : index
    %c0_86 = arith.constant 0 : index
    %313 = vector.load %arg16[%c24_85, %c0_86] : memref<64x32xf32, #tpu.memory_space<vmem>>, vector<8x32xf32>
    tpu.vector_store %arg16[%c24_85, %c0_86], %311 {strides = array<i32>} : memref<64x32xf32, #tpu.memory_space<vmem>>, vector<8x32xf32>,
    %314 = arith.truncf %286 : vector<8x32xf32> to vector<8x32xbf16>
    %cst_87 = arith.constant dense<0.000000e+00> : vector<8x128xf32>
    %315 = tpu.matmul %314, %8, %cst_87 {dimension_numbers = #tpu.dot_dimension_numbers<[1], [0], [0], [1], [0, 0, 1, 1], [], []>} : vector<8x32xbf16>, vector<32x128xbf16>, vector<8x128xf32> -> vector<8x128xf32>
    %316 = arith.truncf %311 : vector<8x32xf32> to vector<8x32xbf16>
    %cst_88 = arith.constant dense<0.000000e+00> : vector<8x128xf32>
    %317 = tpu.matmul %316, %9, %cst_88 {dimension_numbers = #tpu.dot_dimension_numbers<[1], [0], [0], [1], [0, 0, 1, 1], [], []>} : vector<8x32xbf16>, vector<32x128xbf16>, vector<8x128xf32> -> vector<8x128xf32>
    %c40_89 = arith.constant 40 : index
    %c0_90 = arith.constant 0 : index
    %318 = vector.load %arg14[%c40_89, %c0_90] : memref<64x256xf32, #tpu.memory_space<vmem>>, vector<8x128xf32>
    %319 = arith.addf %318, %315 : vector<8x128xf32>
    %c16_91 = arith.constant 16 : index
    %c128_92 = arith.constant 128 : index
    %320 = vector.load %arg14[%c16_91, %c128_92] : memref<64x256xf32, #tpu.memory_space<vmem>>, vector<8x128xf32>
    %321 = arith.addf %320, %317 : vector<8x128xf32>
    %322 = vector.extract_strided_slice %319 {offsets = [0, 0], sizes = [8, 32], strides = [1, 1]} : vector<8x128xf32> to vector<8x32xf32>
    %323 = arith.negf %322 : vector<8x32xf32>
    %324 = math.exp %323 : vector<8x32xf32>
    %cst_93 = arith.constant 1.000000e+00 : f32
    %325 = vector.broadcast %cst_93 : f32 to vector<8x32xf32>
    %326 = arith.addf %325, %324 : vector<8x32xf32>
    %327 = arith.divf %325, %326 : vector<8x32xf32>
    %328 = vector.extract_strided_slice %319 {offsets = [0, 32], sizes = [8, 32], strides = [1, 1]} : vector<8x128xf32> to vector<8x32xf32>
    %329 = arith.negf %328 : vector<8x32xf32>
    %330 = math.exp %329 : vector<8x32xf32>
    %cst_94 = arith.constant 1.000000e+00 : f32
    %331 = vector.broadcast %cst_94 : f32 to vector<8x32xf32>
    %332 = arith.addf %331, %330 : vector<8x32xf32>
    %333 = arith.divf %331, %332 : vector<8x32xf32>
    %334 = vector.extract_strided_slice %319 {offsets = [0, 64], sizes = [8, 32], strides = [1, 1]} : vector<8x128xf32> to vector<8x32xf32>
    %335 = math.tanh %334 : vector<8x32xf32>
    %336 = vector.extract_strided_slice %319 {offsets = [0, 96], sizes = [8, 32], strides = [1, 1]} : vector<8x128xf32> to vector<8x32xf32>
    %337 = arith.negf %336 : vector<8x32xf32>
    %338 = math.exp %337 : vector<8x32xf32>
    %cst_95 = arith.constant 1.000000e+00 : f32
    %339 = vector.broadcast %cst_95 : f32 to vector<8x32xf32>
    %340 = arith.addf %339, %338 : vector<8x32xf32>
    %341 = arith.divf %339, %340 : vector<8x32xf32>
    %342 = arith.mulf %333, %284 : vector<8x32xf32>
    %343 = arith.mulf %327, %335 : vector<8x32xf32>
    %344 = arith.addf %342, %343 : vector<8x32xf32>
    %345 = math.tanh %344 : vector<8x32xf32>
    %346 = arith.mulf %341, %345 : vector<8x32xf32>
    %347 = vector.extract_strided_slice %321 {offsets = [0, 0], sizes = [8, 32], strides = [1, 1]} : vector<8x128xf32> to vector<8x32xf32>
    %348 = arith.negf %347 : vector<8x32xf32>
    %349 = math.exp %348 : vector<8x32xf32>
    %cst_96 = arith.constant 1.000000e+00 : f32
    %350 = vector.broadcast %cst_96 : f32 to vector<8x32xf32>
    %351 = arith.addf %350, %349 : vector<8x32xf32>
    %352 = arith.divf %350, %351 : vector<8x32xf32>
    %353 = vector.extract_strided_slice %321 {offsets = [0, 32], sizes = [8, 32], strides = [1, 1]} : vector<8x128xf32> to vector<8x32xf32>
    %354 = arith.negf %353 : vector<8x32xf32>
    %355 = math.exp %354 : vector<8x32xf32>
    %cst_97 = arith.constant 1.000000e+00 : f32
    %356 = vector.broadcast %cst_97 : f32 to vector<8x32xf32>
    %357 = arith.addf %356, %355 : vector<8x32xf32>
    %358 = arith.divf %356, %357 : vector<8x32xf32>
    %359 = vector.extract_strided_slice %321 {offsets = [0, 64], sizes = [8, 32], strides = [1, 1]} : vector<8x128xf32> to vector<8x32xf32>
    %360 = math.tanh %359 : vector<8x32xf32>
    %361 = vector.extract_strided_slice %321 {offsets = [0, 96], sizes = [8, 32], strides = [1, 1]} : vector<8x128xf32> to vector<8x32xf32>
    %362 = arith.negf %361 : vector<8x32xf32>
    %363 = math.exp %362 : vector<8x32xf32>
    %cst_98 = arith.constant 1.000000e+00 : f32
    %364 = vector.broadcast %cst_98 : f32 to vector<8x32xf32>
    %365 = arith.addf %364, %363 : vector<8x32xf32>
    %366 = arith.divf %364, %365 : vector<8x32xf32>
    %367 = arith.mulf %358, %309 : vector<8x32xf32>
    %368 = arith.mulf %352, %360 : vector<8x32xf32>
    %369 = arith.addf %367, %368 : vector<8x32xf32>
    %370 = math.tanh %369 : vector<8x32xf32>
    %371 = arith.mulf %366, %370 : vector<8x32xf32>
    %c40_99 = arith.constant 40 : index
    %c0_100 = arith.constant 0 : index
    %372 = vector.load %arg15[%c40_99, %c0_100] : memref<64x32xf32, #tpu.memory_space<vmem>>, vector<8x32xf32>
    tpu.vector_store %arg15[%c40_99, %c0_100], %346 {strides = array<i32>} : memref<64x32xf32, #tpu.memory_space<vmem>>, vector<8x32xf32>,
    %c16_101 = arith.constant 16 : index
    %c0_102 = arith.constant 0 : index
    %373 = vector.load %arg16[%c16_101, %c0_102] : memref<64x32xf32, #tpu.memory_space<vmem>>, vector<8x32xf32>
    tpu.vector_store %arg16[%c16_101, %c0_102], %371 {strides = array<i32>} : memref<64x32xf32, #tpu.memory_space<vmem>>, vector<8x32xf32>,
    %374 = arith.truncf %346 : vector<8x32xf32> to vector<8x32xbf16>
    %cst_103 = arith.constant dense<0.000000e+00> : vector<8x128xf32>
    %375 = tpu.matmul %374, %8, %cst_103 {dimension_numbers = #tpu.dot_dimension_numbers<[1], [0], [0], [1], [0, 0, 1, 1], [], []>} : vector<8x32xbf16>, vector<32x128xbf16>, vector<8x128xf32> -> vector<8x128xf32>
    %376 = arith.truncf %371 : vector<8x32xf32> to vector<8x32xbf16>
    %cst_104 = arith.constant dense<0.000000e+00> : vector<8x128xf32>
    %377 = tpu.matmul %376, %9, %cst_104 {dimension_numbers = #tpu.dot_dimension_numbers<[1], [0], [0], [1], [0, 0, 1, 1], [], []>} : vector<8x32xbf16>, vector<32x128xbf16>, vector<8x128xf32> -> vector<8x128xf32>
    %c48_105 = arith.constant 48 : index
    %c0_106 = arith.constant 0 : index
    %378 = vector.load %arg14[%c48_105, %c0_106] : memref<64x256xf32, #tpu.memory_space<vmem>>, vector<8x128xf32>
    %379 = arith.addf %378, %375 : vector<8x128xf32>
    %c8_107 = arith.constant 8 : index
    %c128_108 = arith.constant 128 : index
    %380 = vector.load %arg14[%c8_107, %c128_108] : memref<64x256xf32, #tpu.memory_space<vmem>>, vector<8x128xf32>
    %381 = arith.addf %380, %377 : vector<8x128xf32>
    %382 = vector.extract_strided_slice %379 {offsets = [0, 0], sizes = [8, 32], strides = [1, 1]} : vector<8x128xf32> to vector<8x32xf32>
    %383 = arith.negf %382 : vector<8x32xf32>
    %384 = math.exp %383 : vector<8x32xf32>
    %cst_109 = arith.constant 1.000000e+00 : f32
    %385 = vector.broadcast %cst_109 : f32 to vector<8x32xf32>
    %386 = arith.addf %385, %384 : vector<8x32xf32>
    %387 = arith.divf %385, %386 : vector<8x32xf32>
    %388 = vector.extract_strided_slice %379 {offsets = [0, 32], sizes = [8, 32], strides = [1, 1]} : vector<8x128xf32> to vector<8x32xf32>
    %389 = arith.negf %388 : vector<8x32xf32>
    %390 = math.exp %389 : vector<8x32xf32>
    %cst_110 = arith.constant 1.000000e+00 : f32
    %391 = vector.broadcast %cst_110 : f32 to vector<8x32xf32>
    %392 = arith.addf %391, %390 : vector<8x32xf32>
    %393 = arith.divf %391, %392 : vector<8x32xf32>
    %394 = vector.extract_strided_slice %379 {offsets = [0, 64], sizes = [8, 32], strides = [1, 1]} : vector<8x128xf32> to vector<8x32xf32>
    %395 = math.tanh %394 : vector<8x32xf32>
    %396 = vector.extract_strided_slice %379 {offsets = [0, 96], sizes = [8, 32], strides = [1, 1]} : vector<8x128xf32> to vector<8x32xf32>
    %397 = arith.negf %396 : vector<8x32xf32>
    %398 = math.exp %397 : vector<8x32xf32>
    %cst_111 = arith.constant 1.000000e+00 : f32
    %399 = vector.broadcast %cst_111 : f32 to vector<8x32xf32>
    %400 = arith.addf %399, %398 : vector<8x32xf32>
    %401 = arith.divf %399, %400 : vector<8x32xf32>
    %402 = arith.mulf %393, %344 : vector<8x32xf32>
    %403 = arith.mulf %387, %395 : vector<8x32xf32>
    %404 = arith.addf %402, %403 : vector<8x32xf32>
    %405 = math.tanh %404 : vector<8x32xf32>
    %406 = arith.mulf %401, %405 : vector<8x32xf32>
    %407 = vector.extract_strided_slice %381 {offsets = [0, 0], sizes = [8, 32], strides = [1, 1]} : vector<8x128xf32> to vector<8x32xf32>
    %408 = arith.negf %407 : vector<8x32xf32>
    %409 = math.exp %408 : vector<8x32xf32>
    %cst_112 = arith.constant 1.000000e+00 : f32
    %410 = vector.broadcast %cst_112 : f32 to vector<8x32xf32>
    %411 = arith.addf %410, %409 : vector<8x32xf32>
    %412 = arith.divf %410, %411 : vector<8x32xf32>
    %413 = vector.extract_strided_slice %381 {offsets = [0, 32], sizes = [8, 32], strides = [1, 1]} : vector<8x128xf32> to vector<8x32xf32>
    %414 = arith.negf %413 : vector<8x32xf32>
    %415 = math.exp %414 : vector<8x32xf32>
    %cst_113 = arith.constant 1.000000e+00 : f32
    %416 = vector.broadcast %cst_113 : f32 to vector<8x32xf32>
    %417 = arith.addf %416, %415 : vector<8x32xf32>
    %418 = arith.divf %416, %417 : vector<8x32xf32>
    %419 = vector.extract_strided_slice %381 {offsets = [0, 64], sizes = [8, 32], strides = [1, 1]} : vector<8x128xf32> to vector<8x32xf32>
    %420 = math.tanh %419 : vector<8x32xf32>
    %421 = vector.extract_strided_slice %381 {offsets = [0, 96], sizes = [8, 32], strides = [1, 1]} : vector<8x128xf32> to vector<8x32xf32>
    %422 = arith.negf %421 : vector<8x32xf32>
    %423 = math.exp %422 : vector<8x32xf32>
    %cst_114 = arith.constant 1.000000e+00 : f32
    %424 = vector.broadcast %cst_114 : f32 to vector<8x32xf32>
    %425 = arith.addf %424, %423 : vector<8x32xf32>
    %426 = arith.divf %424, %425 : vector<8x32xf32>
    %427 = arith.mulf %418, %369 : vector<8x32xf32>
    %428 = arith.mulf %412, %420 : vector<8x32xf32>
    %429 = arith.addf %427, %428 : vector<8x32xf32>
    %430 = math.tanh %429 : vector<8x32xf32>
    %431 = arith.mulf %426, %430 : vector<8x32xf32>
    %c48_115 = arith.constant 48 : index
    %c0_116 = arith.constant 0 : index
    %432 = vector.load %arg15[%c48_115, %c0_116] : memref<64x32xf32, #tpu.memory_space<vmem>>, vector<8x32xf32>
    tpu.vector_store %arg15[%c48_115, %c0_116], %406 {strides = array<i32>} : memref<64x32xf32, #tpu.memory_space<vmem>>, vector<8x32xf32>,
    %c8_117 = arith.constant 8 : index
    %c0_118 = arith.constant 0 : index
    %433 = vector.load %arg16[%c8_117, %c0_118] : memref<64x32xf32, #tpu.memory_space<vmem>>, vector<8x32xf32>
    tpu.vector_store %arg16[%c8_117, %c0_118], %431 {strides = array<i32>} : memref<64x32xf32, #tpu.memory_space<vmem>>, vector<8x32xf32>,
    %434 = arith.truncf %406 : vector<8x32xf32> to vector<8x32xbf16>
    %cst_119 = arith.constant dense<0.000000e+00> : vector<8x128xf32>
    %435 = tpu.matmul %434, %8, %cst_119 {dimension_numbers = #tpu.dot_dimension_numbers<[1], [0], [0], [1], [0, 0, 1, 1], [], []>} : vector<8x32xbf16>, vector<32x128xbf16>, vector<8x128xf32> -> vector<8x128xf32>
    %436 = arith.truncf %431 : vector<8x32xf32> to vector<8x32xbf16>
    %cst_120 = arith.constant dense<0.000000e+00> : vector<8x128xf32>
    %437 = tpu.matmul %436, %9, %cst_120 {dimension_numbers = #tpu.dot_dimension_numbers<[1], [0], [0], [1], [0, 0, 1, 1], [], []>} : vector<8x32xbf16>, vector<32x128xbf16>, vector<8x128xf32> -> vector<8x128xf32>
    %c56_121 = arith.constant 56 : index
    %c0_122 = arith.constant 0 : index
    %438 = vector.load %arg14[%c56_121, %c0_122] : memref<64x256xf32, #tpu.memory_space<vmem>>, vector<8x128xf32>
    %439 = arith.addf %438, %435 : vector<8x128xf32>
    %c0_123 = arith.constant 0 : index
    %c128_124 = arith.constant 128 : index
    %440 = vector.load %arg14[%c0_123, %c128_124] : memref<64x256xf32, #tpu.memory_space<vmem>>, vector<8x128xf32>
    %441 = arith.addf %440, %437 : vector<8x128xf32>
    %442 = vector.extract_strided_slice %439 {offsets = [0, 0], sizes = [8, 32], strides = [1, 1]} : vector<8x128xf32> to vector<8x32xf32>
    %443 = arith.negf %442 : vector<8x32xf32>
    %444 = math.exp %443 : vector<8x32xf32>
    %cst_125 = arith.constant 1.000000e+00 : f32
    %445 = vector.broadcast %cst_125 : f32 to vector<8x32xf32>
    %446 = arith.addf %445, %444 : vector<8x32xf32>
    %447 = arith.divf %445, %446 : vector<8x32xf32>
    %448 = vector.extract_strided_slice %439 {offsets = [0, 32], sizes = [8, 32], strides = [1, 1]} : vector<8x128xf32> to vector<8x32xf32>
    %449 = arith.negf %448 : vector<8x32xf32>
    %450 = math.exp %449 : vector<8x32xf32>
    %cst_126 = arith.constant 1.000000e+00 : f32
    %451 = vector.broadcast %cst_126 : f32 to vector<8x32xf32>
    %452 = arith.addf %451, %450 : vector<8x32xf32>
    %453 = arith.divf %451, %452 : vector<8x32xf32>
    %454 = vector.extract_strided_slice %439 {offsets = [0, 64], sizes = [8, 32], strides = [1, 1]} : vector<8x128xf32> to vector<8x32xf32>
    %455 = math.tanh %454 : vector<8x32xf32>
    %456 = vector.extract_strided_slice %439 {offsets = [0, 96], sizes = [8, 32], strides = [1, 1]} : vector<8x128xf32> to vector<8x32xf32>
    %457 = arith.negf %456 : vector<8x32xf32>
    %458 = math.exp %457 : vector<8x32xf32>
    %cst_127 = arith.constant 1.000000e+00 : f32
    %459 = vector.broadcast %cst_127 : f32 to vector<8x32xf32>
    %460 = arith.addf %459, %458 : vector<8x32xf32>
    %461 = arith.divf %459, %460 : vector<8x32xf32>
    %462 = arith.mulf %453, %404 : vector<8x32xf32>
    %463 = arith.mulf %447, %455 : vector<8x32xf32>
    %464 = arith.addf %462, %463 : vector<8x32xf32>
    %465 = math.tanh %464 : vector<8x32xf32>
    %466 = arith.mulf %461, %465 : vector<8x32xf32>
    %467 = vector.extract_strided_slice %441 {offsets = [0, 0], sizes = [8, 32], strides = [1, 1]} : vector<8x128xf32> to vector<8x32xf32>
    %468 = arith.negf %467 : vector<8x32xf32>
    %469 = math.exp %468 : vector<8x32xf32>
    %cst_128 = arith.constant 1.000000e+00 : f32
    %470 = vector.broadcast %cst_128 : f32 to vector<8x32xf32>
    %471 = arith.addf %470, %469 : vector<8x32xf32>
    %472 = arith.divf %470, %471 : vector<8x32xf32>
    %473 = vector.extract_strided_slice %441 {offsets = [0, 32], sizes = [8, 32], strides = [1, 1]} : vector<8x128xf32> to vector<8x32xf32>
    %474 = arith.negf %473 : vector<8x32xf32>
    %475 = math.exp %474 : vector<8x32xf32>
    %cst_129 = arith.constant 1.000000e+00 : f32
    %476 = vector.broadcast %cst_129 : f32 to vector<8x32xf32>
    %477 = arith.addf %476, %475 : vector<8x32xf32>
    %478 = arith.divf %476, %477 : vector<8x32xf32>
    %479 = vector.extract_strided_slice %441 {offsets = [0, 64], sizes = [8, 32], strides = [1, 1]} : vector<8x128xf32> to vector<8x32xf32>
    %480 = math.tanh %479 : vector<8x32xf32>
    %481 = vector.extract_strided_slice %441 {offsets = [0, 96], sizes = [8, 32], strides = [1, 1]} : vector<8x128xf32> to vector<8x32xf32>
    %482 = arith.negf %481 : vector<8x32xf32>
    %483 = math.exp %482 : vector<8x32xf32>
    %cst_130 = arith.constant 1.000000e+00 : f32
    %484 = vector.broadcast %cst_130 : f32 to vector<8x32xf32>
    %485 = arith.addf %484, %483 : vector<8x32xf32>
    %486 = arith.divf %484, %485 : vector<8x32xf32>
    %487 = arith.mulf %478, %429 : vector<8x32xf32>
    %488 = arith.mulf %472, %480 : vector<8x32xf32>
    %489 = arith.addf %487, %488 : vector<8x32xf32>
    %490 = math.tanh %489 : vector<8x32xf32>
    %491 = arith.mulf %486, %490 : vector<8x32xf32>
    %c56_131 = arith.constant 56 : index
    %c0_132 = arith.constant 0 : index
    %492 = vector.load %arg15[%c56_131, %c0_132] : memref<64x32xf32, #tpu.memory_space<vmem>>, vector<8x32xf32>
    tpu.vector_store %arg15[%c56_131, %c0_132], %466 {strides = array<i32>} : memref<64x32xf32, #tpu.memory_space<vmem>>, vector<8x32xf32>,
    %c0_133 = arith.constant 0 : index
    %c0_134 = arith.constant 0 : index
    %493 = vector.load %arg16[%c0_133, %c0_134] : memref<64x32xf32, #tpu.memory_space<vmem>>, vector<8x32xf32>
    tpu.vector_store %arg16[%c0_133, %c0_134], %491 {strides = array<i32>} : memref<64x32xf32, #tpu.memory_space<vmem>>, vector<8x32xf32>,
    %c0_135 = arith.constant 0 : index
    %c0_136 = arith.constant 0 : index
    %494 = vector.load %arg5[%c0_135, %c0_136] : memref<64x256xbf16, #tpu.memory_space<vmem>>, vector<64x256xbf16>
    %c0_137 = arith.constant 0 : index
    %c0_138 = arith.constant 0 : index
    %495 = vector.load %arg15[%c0_137, %c0_138] : memref<64x32xf32, #tpu.memory_space<vmem>>, vector<64x32xf32>
    %496 = arith.truncf %495 : vector<64x32xf32> to vector<64x32xbf16>
    %497 = vector.extract_strided_slice %494 {offsets = [0, 0], sizes = [32, 256], strides = [1, 1]} : vector<64x256xbf16> to vector<32x256xbf16>
    %cst_139 = arith.constant dense<0.000000e+00> : vector<64x256xf32>
    %498 = tpu.matmul %496, %497, %cst_139 {dimension_numbers = #tpu.dot_dimension_numbers<[1], [0], [0], [1], [0, 0, 1, 1], [], []>} : vector<64x32xbf16>, vector<32x256xbf16>, vector<64x256xf32> -> vector<64x256xf32>
    %c0_140 = arith.constant 0 : index
    %c0_141 = arith.constant 0 : index
    %499 = vector.load %arg16[%c0_140, %c0_141] : memref<64x32xf32, #tpu.memory_space<vmem>>, vector<64x32xf32>
    %500 = arith.truncf %499 : vector<64x32xf32> to vector<64x32xbf16>
    %501 = vector.extract_strided_slice %494 {offsets = [32, 0], sizes = [32, 256], strides = [1, 1]} : vector<64x256xbf16> to vector<32x256xbf16>
    %cst_142 = arith.constant dense<0.000000e+00> : vector<64x256xf32>
    %502 = tpu.matmul %500, %501, %cst_142 {dimension_numbers = #tpu.dot_dimension_numbers<[1], [0], [0], [1], [0, 0, 1, 1], [], []>} : vector<64x32xbf16>, vector<32x256xbf16>, vector<64x256xf32> -> vector<64x256xf32>
    %503 = arith.addf %498, %502 : vector<64x256xf32>
    %c0_143 = arith.constant 0 : index
    %c0_144 = arith.constant 0 : index
    %504 = vector.load %arg6[%c0_143, %c0_144] : memref<1x256xf32, #tpu.memory_space<vmem>>, vector<1x256xf32>
    %505 = vector.broadcast %504 : vector<1x256xf32> to vector<64x256xf32>
    %506 = arith.addf %503, %505 : vector<64x256xf32>
    %c0_145 = arith.constant 0 : index
    %c0_146 = arith.constant 0 : index
    %507 = vector.load %arg14[%c0_145, %c0_146] : memref<64x256xf32, #tpu.memory_space<vmem>>, vector<64x256xf32>
    tpu.vector_store %arg14[%c0_145, %c0_146], %506 {strides = array<i32>} : memref<64x256xf32, #tpu.memory_space<vmem>>, vector<64x256xf32>,
    %c0_147 = arith.constant 0 : index
    %c0_148 = arith.constant 0 : index
    %508 = vector.load %arg7[%c0_147, %c0_148] : memref<32x128xbf16, #tpu.memory_space<vmem>>, vector<32x128xbf16>
    %c0_149 = arith.constant 0 : index
    %c0_150 = arith.constant 0 : index
    %509 = vector.load %arg8[%c0_149, %c0_150] : memref<32x128xbf16, #tpu.memory_space<vmem>>, vector<32x128xbf16>
    %cst_151 = arith.constant 0.000000e+00 : f32
    %510 = vector.broadcast %cst_151 : f32 to vector<8x32xf32>
    %cst_152 = arith.constant 0.000000e+00 : f32
    %511 = vector.broadcast %cst_152 : f32 to vector<8x32xf32>
    %cst_153 = arith.constant 0.000000e+00 : f32
    %512 = vector.broadcast %cst_153 : f32 to vector<8x32xf32>
    %cst_154 = arith.constant 0.000000e+00 : f32
    %513 = vector.broadcast %cst_154 : f32 to vector<8x32xf32>
    %514 = arith.truncf %510 : vector<8x32xf32> to vector<8x32xbf16>
    %cst_155 = arith.constant dense<0.000000e+00> : vector<8x128xf32>
    %515 = tpu.matmul %514, %508, %cst_155 {dimension_numbers = #tpu.dot_dimension_numbers<[1], [0], [0], [1], [0, 0, 1, 1], [], []>} : vector<8x32xbf16>, vector<32x128xbf16>, vector<8x128xf32> -> vector<8x128xf32>
    %516 = arith.truncf %511 : vector<8x32xf32> to vector<8x32xbf16>
    %cst_156 = arith.constant dense<0.000000e+00> : vector<8x128xf32>
    %517 = tpu.matmul %516, %509, %cst_156 {dimension_numbers = #tpu.dot_dimension_numbers<[1], [0], [0], [1], [0, 0, 1, 1], [], []>} : vector<8x32xbf16>, vector<32x128xbf16>, vector<8x128xf32> -> vector<8x128xf32>
    %c0_157 = arith.constant 0 : index
    %c0_158 = arith.constant 0 : index
    %518 = vector.load %arg14[%c0_157, %c0_158] : memref<64x256xf32, #tpu.memory_space<vmem>>, vector<8x128xf32>
    %519 = arith.addf %518, %515 : vector<8x128xf32>
    %c56_159 = arith.constant 56 : index
    %c128_160 = arith.constant 128 : index
    %520 = vector.load %arg14[%c56_159, %c128_160] : memref<64x256xf32, #tpu.memory_space<vmem>>, vector<8x128xf32>
    %521 = arith.addf %520, %517 : vector<8x128xf32>
    %522 = vector.extract_strided_slice %519 {offsets = [0, 0], sizes = [8, 32], strides = [1, 1]} : vector<8x128xf32> to vector<8x32xf32>
    %523 = arith.negf %522 : vector<8x32xf32>
    %524 = math.exp %523 : vector<8x32xf32>
    %cst_161 = arith.constant 1.000000e+00 : f32
    %525 = vector.broadcast %cst_161 : f32 to vector<8x32xf32>
    %526 = arith.addf %525, %524 : vector<8x32xf32>
    %527 = arith.divf %525, %526 : vector<8x32xf32>
    %528 = vector.extract_strided_slice %519 {offsets = [0, 32], sizes = [8, 32], strides = [1, 1]} : vector<8x128xf32> to vector<8x32xf32>
    %529 = arith.negf %528 : vector<8x32xf32>
    %530 = math.exp %529 : vector<8x32xf32>
    %cst_162 = arith.constant 1.000000e+00 : f32
    %531 = vector.broadcast %cst_162 : f32 to vector<8x32xf32>
    %532 = arith.addf %531, %530 : vector<8x32xf32>
    %533 = arith.divf %531, %532 : vector<8x32xf32>
    %534 = vector.extract_strided_slice %519 {offsets = [0, 64], sizes = [8, 32], strides = [1, 1]} : vector<8x128xf32> to vector<8x32xf32>
    %535 = math.tanh %534 : vector<8x32xf32>
    %536 = vector.extract_strided_slice %519 {offsets = [0, 96], sizes = [8, 32], strides = [1, 1]} : vector<8x128xf32> to vector<8x32xf32>
    %537 = arith.negf %536 : vector<8x32xf32>
    %538 = math.exp %537 : vector<8x32xf32>
    %cst_163 = arith.constant 1.000000e+00 : f32
    %539 = vector.broadcast %cst_163 : f32 to vector<8x32xf32>
    %540 = arith.addf %539, %538 : vector<8x32xf32>
    %541 = arith.divf %539, %540 : vector<8x32xf32>
    %542 = arith.mulf %533, %512 : vector<8x32xf32>
    %543 = arith.mulf %527, %535 : vector<8x32xf32>
    %544 = arith.addf %542, %543 : vector<8x32xf32>
    %545 = math.tanh %544 : vector<8x32xf32>
    %546 = arith.mulf %541, %545 : vector<8x32xf32>
    %547 = vector.extract_strided_slice %521 {offsets = [0, 0], sizes = [8, 32], strides = [1, 1]} : vector<8x128xf32> to vector<8x32xf32>
    %548 = arith.negf %547 : vector<8x32xf32>
    %549 = math.exp %548 : vector<8x32xf32>
    %cst_164 = arith.constant 1.000000e+00 : f32
    %550 = vector.broadcast %cst_164 : f32 to vector<8x32xf32>
    %551 = arith.addf %550, %549 : vector<8x32xf32>
    %552 = arith.divf %550, %551 : vector<8x32xf32>
    %553 = vector.extract_strided_slice %521 {offsets = [0, 32], sizes = [8, 32], strides = [1, 1]} : vector<8x128xf32> to vector<8x32xf32>
    %554 = arith.negf %553 : vector<8x32xf32>
    %555 = math.exp %554 : vector<8x32xf32>
    %cst_165 = arith.constant 1.000000e+00 : f32
    %556 = vector.broadcast %cst_165 : f32 to vector<8x32xf32>
    %557 = arith.addf %556, %555 : vector<8x32xf32>
    %558 = arith.divf %556, %557 : vector<8x32xf32>
    %559 = vector.extract_strided_slice %521 {offsets = [0, 64], sizes = [8, 32], strides = [1, 1]} : vector<8x128xf32> to vector<8x32xf32>
    %560 = math.tanh %559 : vector<8x32xf32>
    %561 = vector.extract_strided_slice %521 {offsets = [0, 96], sizes = [8, 32], strides = [1, 1]} : vector<8x128xf32> to vector<8x32xf32>
    %562 = arith.negf %561 : vector<8x32xf32>
    %563 = math.exp %562 : vector<8x32xf32>
    %cst_166 = arith.constant 1.000000e+00 : f32
    %564 = vector.broadcast %cst_166 : f32 to vector<8x32xf32>
    %565 = arith.addf %564, %563 : vector<8x32xf32>
    %566 = arith.divf %564, %565 : vector<8x32xf32>
    %567 = arith.mulf %558, %513 : vector<8x32xf32>
    %568 = arith.mulf %552, %560 : vector<8x32xf32>
    %569 = arith.addf %567, %568 : vector<8x32xf32>
    %570 = math.tanh %569 : vector<8x32xf32>
    %571 = arith.mulf %566, %570 : vector<8x32xf32>
    %572 = arith.truncf %546 : vector<8x32xf32> to vector<8x32xbf16>
    %cst_167 = arith.constant dense<0.000000e+00> : vector<8x128xf32>
    %573 = tpu.matmul %572, %508, %cst_167 {dimension_numbers = #tpu.dot_dimension_numbers<[1], [0], [0], [1], [0, 0, 1, 1], [], []>} : vector<8x32xbf16>, vector<32x128xbf16>, vector<8x128xf32> -> vector<8x128xf32>
    %c8_168 = arith.constant 8 : index
    %c0_169 = arith.constant 0 : index
    %574 = vector.load %arg14[%c8_168, %c0_169] : memref<64x256xf32, #tpu.memory_space<vmem>>, vector<8x128xf32>
    %575 = arith.addf %574, %573 : vector<8x128xf32>
    %576 = vector.extract_strided_slice %575 {offsets = [0, 0], sizes = [8, 32], strides = [1, 1]} : vector<8x128xf32> to vector<8x32xf32>
    %577 = arith.negf %576 : vector<8x32xf32>
    %578 = math.exp %577 : vector<8x32xf32>
    %cst_170 = arith.constant 1.000000e+00 : f32
    %579 = vector.broadcast %cst_170 : f32 to vector<8x32xf32>
    %580 = arith.addf %579, %578 : vector<8x32xf32>
    %581 = arith.divf %579, %580 : vector<8x32xf32>
    %582 = vector.extract_strided_slice %575 {offsets = [0, 32], sizes = [8, 32], strides = [1, 1]} : vector<8x128xf32> to vector<8x32xf32>
    %583 = arith.negf %582 : vector<8x32xf32>
    %584 = math.exp %583 : vector<8x32xf32>
    %cst_171 = arith.constant 1.000000e+00 : f32
    %585 = vector.broadcast %cst_171 : f32 to vector<8x32xf32>
    %586 = arith.addf %585, %584 : vector<8x32xf32>
    %587 = arith.divf %585, %586 : vector<8x32xf32>
    %588 = vector.extract_strided_slice %575 {offsets = [0, 64], sizes = [8, 32], strides = [1, 1]} : vector<8x128xf32> to vector<8x32xf32>
    %589 = math.tanh %588 : vector<8x32xf32>
    %590 = vector.extract_strided_slice %575 {offsets = [0, 96], sizes = [8, 32], strides = [1, 1]} : vector<8x128xf32> to vector<8x32xf32>
    %591 = arith.negf %590 : vector<8x32xf32>
    %592 = math.exp %591 : vector<8x32xf32>
    %cst_172 = arith.constant 1.000000e+00 : f32
    %593 = vector.broadcast %cst_172 : f32 to vector<8x32xf32>
    %594 = arith.addf %593, %592 : vector<8x32xf32>
    %595 = arith.divf %593, %594 : vector<8x32xf32>
    %596 = arith.mulf %587, %544 : vector<8x32xf32>
    %597 = arith.mulf %581, %589 : vector<8x32xf32>
    %598 = arith.addf %596, %597 : vector<8x32xf32>
    %599 = math.tanh %598 : vector<8x32xf32>
    %600 = arith.mulf %595, %599 : vector<8x32xf32>
    %601 = arith.truncf %600 : vector<8x32xf32> to vector<8x32xbf16>
    %cst_173 = arith.constant dense<0.000000e+00> : vector<8x128xf32>
    %602 = tpu.matmul %601, %508, %cst_173 {dimension_numbers = #tpu.dot_dimension_numbers<[1], [0], [0], [1], [0, 0, 1, 1], [], []>} : vector<8x32xbf16>, vector<32x128xbf16>, vector<8x128xf32> -> vector<8x128xf32>
    %c16_174 = arith.constant 16 : index
    %c0_175 = arith.constant 0 : index
    %603 = vector.load %arg14[%c16_174, %c0_175] : memref<64x256xf32, #tpu.memory_space<vmem>>, vector<8x128xf32>
    %604 = arith.addf %603, %602 : vector<8x128xf32>
    %605 = vector.extract_strided_slice %604 {offsets = [0, 0], sizes = [8, 32], strides = [1, 1]} : vector<8x128xf32> to vector<8x32xf32>
    %606 = arith.negf %605 : vector<8x32xf32>
    %607 = math.exp %606 : vector<8x32xf32>
    %cst_176 = arith.constant 1.000000e+00 : f32
    %608 = vector.broadcast %cst_176 : f32 to vector<8x32xf32>
    %609 = arith.addf %608, %607 : vector<8x32xf32>
    %610 = arith.divf %608, %609 : vector<8x32xf32>
    %611 = vector.extract_strided_slice %604 {offsets = [0, 32], sizes = [8, 32], strides = [1, 1]} : vector<8x128xf32> to vector<8x32xf32>
    %612 = arith.negf %611 : vector<8x32xf32>
    %613 = math.exp %612 : vector<8x32xf32>
    %cst_177 = arith.constant 1.000000e+00 : f32
    %614 = vector.broadcast %cst_177 : f32 to vector<8x32xf32>
    %615 = arith.addf %614, %613 : vector<8x32xf32>
    %616 = arith.divf %614, %615 : vector<8x32xf32>
    %617 = vector.extract_strided_slice %604 {offsets = [0, 64], sizes = [8, 32], strides = [1, 1]} : vector<8x128xf32> to vector<8x32xf32>
    %618 = math.tanh %617 : vector<8x32xf32>
    %619 = vector.extract_strided_slice %604 {offsets = [0, 96], sizes = [8, 32], strides = [1, 1]} : vector<8x128xf32> to vector<8x32xf32>
    %620 = arith.negf %619 : vector<8x32xf32>
    %621 = math.exp %620 : vector<8x32xf32>
    %cst_178 = arith.constant 1.000000e+00 : f32
    %622 = vector.broadcast %cst_178 : f32 to vector<8x32xf32>
    %623 = arith.addf %622, %621 : vector<8x32xf32>
    %624 = arith.divf %622, %623 : vector<8x32xf32>
    %625 = arith.mulf %616, %598 : vector<8x32xf32>
    %626 = arith.mulf %610, %618 : vector<8x32xf32>
    %627 = arith.addf %625, %626 : vector<8x32xf32>
    %628 = math.tanh %627 : vector<8x32xf32>
    %629 = arith.mulf %624, %628 : vector<8x32xf32>
    %630 = arith.truncf %629 : vector<8x32xf32> to vector<8x32xbf16>
    %cst_179 = arith.constant dense<0.000000e+00> : vector<8x128xf32>
    %631 = tpu.matmul %630, %508, %cst_179 {dimension_numbers = #tpu.dot_dimension_numbers<[1], [0], [0], [1], [0, 0, 1, 1], [], []>} : vector<8x32xbf16>, vector<32x128xbf16>, vector<8x128xf32> -> vector<8x128xf32>
    %c24_180 = arith.constant 24 : index
    %c0_181 = arith.constant 0 : index
    %632 = vector.load %arg14[%c24_180, %c0_181] : memref<64x256xf32, #tpu.memory_space<vmem>>, vector<8x128xf32>
    %633 = arith.addf %632, %631 : vector<8x128xf32>
    %634 = vector.extract_strided_slice %633 {offsets = [0, 0], sizes = [8, 32], strides = [1, 1]} : vector<8x128xf32> to vector<8x32xf32>
    %635 = arith.negf %634 : vector<8x32xf32>
    %636 = math.exp %635 : vector<8x32xf32>
    %cst_182 = arith.constant 1.000000e+00 : f32
    %637 = vector.broadcast %cst_182 : f32 to vector<8x32xf32>
    %638 = arith.addf %637, %636 : vector<8x32xf32>
    %639 = arith.divf %637, %638 : vector<8x32xf32>
    %640 = vector.extract_strided_slice %633 {offsets = [0, 32], sizes = [8, 32], strides = [1, 1]} : vector<8x128xf32> to vector<8x32xf32>
    %641 = arith.negf %640 : vector<8x32xf32>
    %642 = math.exp %641 : vector<8x32xf32>
    %cst_183 = arith.constant 1.000000e+00 : f32
    %643 = vector.broadcast %cst_183 : f32 to vector<8x32xf32>
    %644 = arith.addf %643, %642 : vector<8x32xf32>
    %645 = arith.divf %643, %644 : vector<8x32xf32>
    %646 = vector.extract_strided_slice %633 {offsets = [0, 64], sizes = [8, 32], strides = [1, 1]} : vector<8x128xf32> to vector<8x32xf32>
    %647 = math.tanh %646 : vector<8x32xf32>
    %648 = vector.extract_strided_slice %633 {offsets = [0, 96], sizes = [8, 32], strides = [1, 1]} : vector<8x128xf32> to vector<8x32xf32>
    %649 = arith.negf %648 : vector<8x32xf32>
    %650 = math.exp %649 : vector<8x32xf32>
    %cst_184 = arith.constant 1.000000e+00 : f32
    %651 = vector.broadcast %cst_184 : f32 to vector<8x32xf32>
    %652 = arith.addf %651, %650 : vector<8x32xf32>
    %653 = arith.divf %651, %652 : vector<8x32xf32>
    %654 = arith.mulf %645, %627 : vector<8x32xf32>
    %655 = arith.mulf %639, %647 : vector<8x32xf32>
    %656 = arith.addf %654, %655 : vector<8x32xf32>
    %657 = math.tanh %656 : vector<8x32xf32>
    %658 = arith.mulf %653, %657 : vector<8x32xf32>
    %659 = arith.truncf %658 : vector<8x32xf32> to vector<8x32xbf16>
    %cst_185 = arith.constant dense<0.000000e+00> : vector<8x128xf32>
    %660 = tpu.matmul %659, %508, %cst_185 {dimension_numbers = #tpu.dot_dimension_numbers<[1], [0], [0], [1], [0, 0, 1, 1], [], []>} : vector<8x32xbf16>, vector<32x128xbf16>, vector<8x128xf32> -> vector<8x128xf32>
    %c32_186 = arith.constant 32 : index
    %c0_187 = arith.constant 0 : index
    %661 = vector.load %arg14[%c32_186, %c0_187] : memref<64x256xf32, #tpu.memory_space<vmem>>, vector<8x128xf32>
    %662 = arith.addf %661, %660 : vector<8x128xf32>
    %663 = vector.extract_strided_slice %662 {offsets = [0, 0], sizes = [8, 32], strides = [1, 1]} : vector<8x128xf32> to vector<8x32xf32>
    %664 = arith.negf %663 : vector<8x32xf32>
    %665 = math.exp %664 : vector<8x32xf32>
    %cst_188 = arith.constant 1.000000e+00 : f32
    %666 = vector.broadcast %cst_188 : f32 to vector<8x32xf32>
    %667 = arith.addf %666, %665 : vector<8x32xf32>
    %668 = arith.divf %666, %667 : vector<8x32xf32>
    %669 = vector.extract_strided_slice %662 {offsets = [0, 32], sizes = [8, 32], strides = [1, 1]} : vector<8x128xf32> to vector<8x32xf32>
    %670 = arith.negf %669 : vector<8x32xf32>
    %671 = math.exp %670 : vector<8x32xf32>
    %cst_189 = arith.constant 1.000000e+00 : f32
    %672 = vector.broadcast %cst_189 : f32 to vector<8x32xf32>
    %673 = arith.addf %672, %671 : vector<8x32xf32>
    %674 = arith.divf %672, %673 : vector<8x32xf32>
    %675 = vector.extract_strided_slice %662 {offsets = [0, 64], sizes = [8, 32], strides = [1, 1]} : vector<8x128xf32> to vector<8x32xf32>
    %676 = math.tanh %675 : vector<8x32xf32>
    %677 = vector.extract_strided_slice %662 {offsets = [0, 96], sizes = [8, 32], strides = [1, 1]} : vector<8x128xf32> to vector<8x32xf32>
    %678 = arith.negf %677 : vector<8x32xf32>
    %679 = math.exp %678 : vector<8x32xf32>
    %cst_190 = arith.constant 1.000000e+00 : f32
    %680 = vector.broadcast %cst_190 : f32 to vector<8x32xf32>
    %681 = arith.addf %680, %679 : vector<8x32xf32>
    %682 = arith.divf %680, %681 : vector<8x32xf32>
    %683 = arith.mulf %674, %656 : vector<8x32xf32>
    %684 = arith.mulf %668, %676 : vector<8x32xf32>
    %685 = arith.addf %683, %684 : vector<8x32xf32>
    %686 = math.tanh %685 : vector<8x32xf32>
    %687 = arith.mulf %682, %686 : vector<8x32xf32>
    %688 = arith.truncf %687 : vector<8x32xf32> to vector<8x32xbf16>
    %cst_191 = arith.constant dense<0.000000e+00> : vector<8x128xf32>
    %689 = tpu.matmul %688, %508, %cst_191 {dimension_numbers = #tpu.dot_dimension_numbers<[1], [0], [0], [1], [0, 0, 1, 1], [], []>} : vector<8x32xbf16>, vector<32x128xbf16>, vector<8x128xf32> -> vector<8x128xf32>
    %c40_192 = arith.constant 40 : index
    %c0_193 = arith.constant 0 : index
    %690 = vector.load %arg14[%c40_192, %c0_193] : memref<64x256xf32, #tpu.memory_space<vmem>>, vector<8x128xf32>
    %691 = arith.addf %690, %689 : vector<8x128xf32>
    %692 = vector.extract_strided_slice %691 {offsets = [0, 0], sizes = [8, 32], strides = [1, 1]} : vector<8x128xf32> to vector<8x32xf32>
    %693 = arith.negf %692 : vector<8x32xf32>
    %694 = math.exp %693 : vector<8x32xf32>
    %cst_194 = arith.constant 1.000000e+00 : f32
    %695 = vector.broadcast %cst_194 : f32 to vector<8x32xf32>
    %696 = arith.addf %695, %694 : vector<8x32xf32>
    %697 = arith.divf %695, %696 : vector<8x32xf32>
    %698 = vector.extract_strided_slice %691 {offsets = [0, 32], sizes = [8, 32], strides = [1, 1]} : vector<8x128xf32> to vector<8x32xf32>
    %699 = arith.negf %698 : vector<8x32xf32>
    %700 = math.exp %699 : vector<8x32xf32>
    %cst_195 = arith.constant 1.000000e+00 : f32
    %701 = vector.broadcast %cst_195 : f32 to vector<8x32xf32>
    %702 = arith.addf %701, %700 : vector<8x32xf32>
    %703 = arith.divf %701, %702 : vector<8x32xf32>
    %704 = vector.extract_strided_slice %691 {offsets = [0, 64], sizes = [8, 32], strides = [1, 1]} : vector<8x128xf32> to vector<8x32xf32>
    %705 = math.tanh %704 : vector<8x32xf32>
    %706 = vector.extract_strided_slice %691 {offsets = [0, 96], sizes = [8, 32], strides = [1, 1]} : vector<8x128xf32> to vector<8x32xf32>
    %707 = arith.negf %706 : vector<8x32xf32>
    %708 = math.exp %707 : vector<8x32xf32>
    %cst_196 = arith.constant 1.000000e+00 : f32
    %709 = vector.broadcast %cst_196 : f32 to vector<8x32xf32>
    %710 = arith.addf %709, %708 : vector<8x32xf32>
    %711 = arith.divf %709, %710 : vector<8x32xf32>
    %712 = arith.mulf %703, %685 : vector<8x32xf32>
    %713 = arith.mulf %697, %705 : vector<8x32xf32>
    %714 = arith.addf %712, %713 : vector<8x32xf32>
    %715 = math.tanh %714 : vector<8x32xf32>
    %716 = arith.mulf %711, %715 : vector<8x32xf32>
    %717 = arith.truncf %716 : vector<8x32xf32> to vector<8x32xbf16>
    %cst_197 = arith.constant dense<0.000000e+00> : vector<8x128xf32>
    %718 = tpu.matmul %717, %508, %cst_197 {dimension_numbers = #tpu.dot_dimension_numbers<[1], [0], [0], [1], [0, 0, 1, 1], [], []>} : vector<8x32xbf16>, vector<32x128xbf16>, vector<8x128xf32> -> vector<8x128xf32>
    %c48_198 = arith.constant 48 : index
    %c0_199 = arith.constant 0 : index
    %719 = vector.load %arg14[%c48_198, %c0_199] : memref<64x256xf32, #tpu.memory_space<vmem>>, vector<8x128xf32>
    %720 = arith.addf %719, %718 : vector<8x128xf32>
    %721 = vector.extract_strided_slice %720 {offsets = [0, 0], sizes = [8, 32], strides = [1, 1]} : vector<8x128xf32> to vector<8x32xf32>
    %722 = arith.negf %721 : vector<8x32xf32>
    %723 = math.exp %722 : vector<8x32xf32>
    %cst_200 = arith.constant 1.000000e+00 : f32
    %724 = vector.broadcast %cst_200 : f32 to vector<8x32xf32>
    %725 = arith.addf %724, %723 : vector<8x32xf32>
    %726 = arith.divf %724, %725 : vector<8x32xf32>
    %727 = vector.extract_strided_slice %720 {offsets = [0, 32], sizes = [8, 32], strides = [1, 1]} : vector<8x128xf32> to vector<8x32xf32>
    %728 = arith.negf %727 : vector<8x32xf32>
    %729 = math.exp %728 : vector<8x32xf32>
    %cst_201 = arith.constant 1.000000e+00 : f32
    %730 = vector.broadcast %cst_201 : f32 to vector<8x32xf32>
    %731 = arith.addf %730, %729 : vector<8x32xf32>
    %732 = arith.divf %730, %731 : vector<8x32xf32>
    %733 = vector.extract_strided_slice %720 {offsets = [0, 64], sizes = [8, 32], strides = [1, 1]} : vector<8x128xf32> to vector<8x32xf32>
    %734 = math.tanh %733 : vector<8x32xf32>
    %735 = vector.extract_strided_slice %720 {offsets = [0, 96], sizes = [8, 32], strides = [1, 1]} : vector<8x128xf32> to vector<8x32xf32>
    %736 = arith.negf %735 : vector<8x32xf32>
    %737 = math.exp %736 : vector<8x32xf32>
    %cst_202 = arith.constant 1.000000e+00 : f32
    %738 = vector.broadcast %cst_202 : f32 to vector<8x32xf32>
    %739 = arith.addf %738, %737 : vector<8x32xf32>
    %740 = arith.divf %738, %739 : vector<8x32xf32>
    %741 = arith.mulf %732, %714 : vector<8x32xf32>
    %742 = arith.mulf %726, %734 : vector<8x32xf32>
    %743 = arith.addf %741, %742 : vector<8x32xf32>
    %744 = math.tanh %743 : vector<8x32xf32>
    %745 = arith.mulf %740, %744 : vector<8x32xf32>
    %746 = arith.truncf %745 : vector<8x32xf32> to vector<8x32xbf16>
    %cst_203 = arith.constant dense<0.000000e+00> : vector<8x128xf32>
    %747 = tpu.matmul %746, %508, %cst_203 {dimension_numbers = #tpu.dot_dimension_numbers<[1], [0], [0], [1], [0, 0, 1, 1], [], []>} : vector<8x32xbf16>, vector<32x128xbf16>, vector<8x128xf32> -> vector<8x128xf32>
    %c56_204 = arith.constant 56 : index
    %c0_205 = arith.constant 0 : index
    %748 = vector.load %arg14[%c56_204, %c0_205] : memref<64x256xf32, #tpu.memory_space<vmem>>, vector<8x128xf32>
    %749 = arith.addf %748, %747 : vector<8x128xf32>
    %750 = vector.extract_strided_slice %749 {offsets = [0, 0], sizes = [8, 32], strides = [1, 1]} : vector<8x128xf32> to vector<8x32xf32>
    %751 = arith.negf %750 : vector<8x32xf32>
    %752 = math.exp %751 : vector<8x32xf32>
    %cst_206 = arith.constant 1.000000e+00 : f32
    %753 = vector.broadcast %cst_206 : f32 to vector<8x32xf32>
    %754 = arith.addf %753, %752 : vector<8x32xf32>
    %755 = arith.divf %753, %754 : vector<8x32xf32>
    %756 = vector.extract_strided_slice %749 {offsets = [0, 32], sizes = [8, 32], strides = [1, 1]} : vector<8x128xf32> to vector<8x32xf32>
    %757 = arith.negf %756 : vector<8x32xf32>
    %758 = math.exp %757 : vector<8x32xf32>
    %cst_207 = arith.constant 1.000000e+00 : f32
    %759 = vector.broadcast %cst_207 : f32 to vector<8x32xf32>
    %760 = arith.addf %759, %758 : vector<8x32xf32>
    %761 = arith.divf %759, %760 : vector<8x32xf32>
    %762 = vector.extract_strided_slice %749 {offsets = [0, 64], sizes = [8, 32], strides = [1, 1]} : vector<8x128xf32> to vector<8x32xf32>
    %763 = math.tanh %762 : vector<8x32xf32>
    %764 = vector.extract_strided_slice %749 {offsets = [0, 96], sizes = [8, 32], strides = [1, 1]} : vector<8x128xf32> to vector<8x32xf32>
    %765 = arith.negf %764 : vector<8x32xf32>
    %766 = math.exp %765 : vector<8x32xf32>
    %cst_208 = arith.constant 1.000000e+00 : f32
    %767 = vector.broadcast %cst_208 : f32 to vector<8x32xf32>
    %768 = arith.addf %767, %766 : vector<8x32xf32>
    %769 = arith.divf %767, %768 : vector<8x32xf32>
    %770 = arith.mulf %761, %743 : vector<8x32xf32>
    %771 = arith.mulf %755, %763 : vector<8x32xf32>
    %772 = arith.addf %770, %771 : vector<8x32xf32>
    %773 = math.tanh %772 : vector<8x32xf32>
    %774 = arith.mulf %769, %773 : vector<8x32xf32>
    %c0_209 = arith.constant 0 : index
    %c0_210 = arith.constant 0 : index
    %775 = vector.load %arg9[%c0_209, %c0_210] : memref<64x32xbf16, #tpu.memory_space<vmem>>, vector<64x32xbf16>
    %776 = arith.truncf %774 : vector<8x32xf32> to vector<8x32xbf16>
    %777 = vector.extract_strided_slice %775 {offsets = [0, 0], sizes = [32, 32], strides = [1, 1]} : vector<64x32xbf16> to vector<32x32xbf16>
    %cst_211 = arith.constant dense<0.000000e+00> : vector<8x32xf32>
    %778 = tpu.matmul %776, %777, %cst_211 {dimension_numbers = #tpu.dot_dimension_numbers<[1], [0], [0], [1], [0, 0, 1, 1], [], []>} : vector<8x32xbf16>, vector<32x32xbf16>, vector<8x32xf32> -> vector<8x32xf32>
    %779 = arith.truncf %571 : vector<8x32xf32> to vector<8x32xbf16>
    %780 = vector.extract_strided_slice %775 {offsets = [32, 0], sizes = [32, 32], strides = [1, 1]} : vector<64x32xbf16> to vector<32x32xbf16>
    %cst_212 = arith.constant dense<0.000000e+00> : vector<8x32xf32>
    %781 = tpu.matmul %779, %780, %cst_212 {dimension_numbers = #tpu.dot_dimension_numbers<[1], [0], [0], [1], [0, 0, 1, 1], [], []>} : vector<8x32xbf16>, vector<32x32xbf16>, vector<8x32xf32> -> vector<8x32xf32>
    %782 = arith.addf %778, %781 : vector<8x32xf32>
    %c0_213 = arith.constant 0 : index
    %c0_214 = arith.constant 0 : index
    %783 = vector.load %arg10[%c0_213, %c0_214] : memref<1x32xf32, #tpu.memory_space<vmem>>, vector<1x32xf32>
    %784 = vector.broadcast %783 : vector<1x32xf32> to vector<8x32xf32>
    %785 = arith.addf %782, %784 : vector<8x32xf32>
    %cst_215 = arith.constant 0.000000e+00 : f32
    %786 = vector.broadcast %cst_215 : f32 to vector<8x32xf32>
    %787 = arith.maximumf %785, %786 : vector<8x32xf32>
    %788 = arith.truncf %787 : vector<8x32xf32> to vector<8x32xbf16>
    %c0_216 = arith.constant 0 : index
    %c0_217 = arith.constant 0 : index
    %789 = vector.load %arg11[%c0_216, %c0_217] : memref<32x3xbf16, #tpu.memory_space<vmem>>, vector<32x3xbf16>
    %cst_218 = arith.constant dense<0.000000e+00> : vector<8x3xf32>
    %790 = tpu.matmul %788, %789, %cst_218 {dimension_numbers = #tpu.dot_dimension_numbers<[1], [0], [0], [1], [0, 0, 1, 1], [], []>} : vector<8x32xbf16>, vector<32x3xbf16>, vector<8x3xf32> -> vector<8x3xf32>
    %c0_219 = arith.constant 0 : index
    %c0_220 = arith.constant 0 : index
    %791 = vector.load %arg12[%c0_219, %c0_220] : memref<1x3xf32, #tpu.memory_space<vmem>>, vector<1x3xf32>
    %792 = vector.broadcast %791 : vector<1x3xf32> to vector<8x3xf32>
    %793 = arith.addf %790, %792 : vector<8x3xf32>
    %c0_221 = arith.constant 0 : index
    %c0_222 = arith.constant 0 : index
    %794 = vector.load %arg13[%c0_221, %c0_222] : memref<8x3xf32, #tpu.memory_space<vmem>>, vector<8x3xf32>
    tpu.vector_store %arg13[%c0_221, %c0_222], %793 {strides = array<i32>} : memref<8x3xf32, #tpu.memory_space<vmem>>, vector<8x3xf32>,
    return
  }
}

</mosaic_0001>

<llo_original>
// kernel: lstm_model_forward.1
$region0: #{lstm_model_forward.1}
  #allocation0 [shape = 'u32[]', space=smem, size = 0x4, offset = 0x4, fixed_abs, tag = 'smem constant byte address 0x4 - core index']
  #allocation1 [shape = 'u32[144,128]{1,0:T(1,128)}', space=vmem, size = 0x12000, scoped, tag = 'internal scratch']
  #allocation2 [shape = 'f32[64,256]{1,0:T(8,128)}', space=vmem, size = 0x10000, scoped, tag = 'scratch operand']
  #allocation3 [shape = 'f32[64,32]{1,0:T(8,128)}', space=vmem, size = 0x8000, scoped, tag = 'scratch operand']
  #allocation4 [shape = 'f32[64,32]{1,0:T(8,128)}', space=vmem, size = 0x8000, scoped, tag = 'scratch operand']
  %s0 = inlined_call_operand.vmem [shape: f32[64,8], index: 0, kind: input, shape index: {}]
  %s1 = inlined_call_operand.vmem [shape: bf16[8,256], index: 1, kind: input, shape index: {}]
  %s2 = inlined_call_operand.vmem [shape: f32[1,256], index: 2, kind: input, shape index: {}]
  %s3 = inlined_call_operand.vmem [shape: bf16[32,128], index: 3, kind: input, shape index: {}]
  %s4 = inlined_call_operand.vmem [shape: bf16[32,128], index: 4, kind: input, shape index: {}]
  %s5 = inlined_call_operand.vmem [shape: bf16[64,256], index: 5, kind: input, shape index: {}]
  %s6 = inlined_call_operand.vmem [shape: f32[1,256], index: 6, kind: input, shape index: {}]
  %s7 = inlined_call_operand.vmem [shape: bf16[32,128], index: 7, kind: input, shape index: {}]
  %s8 = inlined_call_operand.vmem [shape: bf16[32,128], index: 8, kind: input, shape index: {}]
  %s9 = inlined_call_operand.vmem [shape: bf16[64,32], index: 9, kind: input, shape index: {}]
  %s10 = inlined_call_operand.vmem [shape: f32[1,32], index: 10, kind: input, shape index: {}]
  %s11 = inlined_call_operand.vmem [shape: bf16[32,3], index: 11, kind: input, shape index: {}]
  %s12 = inlined_call_operand.vmem [shape: f32[1,3], index: 12, kind: input, shape index: {}]
  %s13 = inlined_call_operand.vmem [shape: f32[8,3], index: 13, kind: output, shape index: {}]
  %s14 = sld [smem:[#allocation0]]
  $region62: #{lstm_model_forward.1} parent=0
    _
  %s16 = ssub.s32 1, %s14
  %s17 = scalar_select 0, %s16, %s14
  // Predicated region
  $region2: #{lstm_model_forward.1} parent=0 // pred_check
    _
  $region3: #{lstm_model_forward.1} parent=0 // pred_check_branch
    %19 = sbr.rel (0) target = $region5
  $region4: #{lstm_model_forward.1} parent=0 // pred_region
    _
  $region5: #{lstm_model_forward.1} parent=0 // pred_fallthru
    _
  // Predicated region
  $region6: #{lstm_model_forward.1} parent=0 // pred_check
    _
  $region7: #{lstm_model_forward.1} parent=0 // pred_check_branch
    %21 = sbr.rel (0) target = $region9
  $region8: #{lstm_model_forward.1} parent=0 // pred_region
    _
  $region9: #{lstm_model_forward.1} parent=0 // pred_fallthru
    _
  // Predicated region
  $region10: #{lstm_model_forward.1} parent=0 // pred_check
    _
  $region11: #{lstm_model_forward.1} parent=0 // pred_check_branch
    %23 = sbr.rel (0) target = $region13
  $region12: #{lstm_model_forward.1} parent=0 // pred_region
    _
  $region13: #{lstm_model_forward.1} parent=0 // pred_fallthru
    _
  // Predicated region
  $region14: #{lstm_model_forward.1} parent=0 // pred_check
    _
  $region15: #{lstm_model_forward.1} parent=0 // pred_check_branch
    %25 = sbr.rel (0) target = $region17
  $region16: #{lstm_model_forward.1} parent=0 // pred_region
    _
  $region17: #{lstm_model_forward.1} parent=0 // pred_fallthru
    _
  // Predicated region
  $region18: #{lstm_model_forward.1} parent=0 // pred_check
    _
  $region19: #{lstm_model_forward.1} parent=0 // pred_check_branch
    %27 = sbr.rel (0) target = $region21
  $region20: #{lstm_model_forward.1} parent=0 // pred_region
    _
  $region21: #{lstm_model_forward.1} parent=0 // pred_fallthru
    _
  // Predicated region
  $region22: #{lstm_model_forward.1} parent=0 // pred_check
    _
  $region23: #{lstm_model_forward.1} parent=0 // pred_check_branch
    %29 = sbr.rel (0) target = $region25
  $region24: #{lstm_model_forward.1} parent=0 // pred_region
    _
  $region25: #{lstm_model_forward.1} parent=0 // pred_fallthru
    _
  // Predicated region
  $region26: #{lstm_model_forward.1} parent=0 // pred_check
    _
  $region27: #{lstm_model_forward.1} parent=0 // pred_check_branch
    %31 = sbr.rel (0) target = $region29
  $region28: #{lstm_model_forward.1} parent=0 // pred_region
    _
  $region29: #{lstm_model_forward.1} parent=0 // pred_fallthru
    _
  // Predicated region
  $region30: #{lstm_model_forward.1} parent=0 // pred_check
    _
  $region31: #{lstm_model_forward.1} parent=0 // pred_check_branch
    %33 = sbr.rel (0) target = $region33
  $region32: #{lstm_model_forward.1} parent=0 // pred_region
    _
  $region33: #{lstm_model_forward.1} parent=0 // pred_fallthru
    _
  // Predicated region
  $region34: #{lstm_model_forward.1} parent=0 // pred_check
    _
  $region35: #{lstm_model_forward.1} parent=0 // pred_check_branch
    %35 = sbr.rel (0) target = $region37
  $region36: #{lstm_model_forward.1} parent=0 // pred_region
    _
  $region37: #{lstm_model_forward.1} parent=0 // pred_fallthru
    _
  // Predicated region
  $region38: #{lstm_model_forward.1} parent=0 // pred_check
    _
  $region39: #{lstm_model_forward.1} parent=0 // pred_check_branch
    %37 = sbr.rel (0) target = $region41
  $region40: #{lstm_model_forward.1} parent=0 // pred_region
    _
  $region41: #{lstm_model_forward.1} parent=0 // pred_fallthru
    _
  // Predicated region
  $region42: #{lstm_model_forward.1} parent=0 // pred_check
    _
  $region43: #{lstm_model_forward.1} parent=0 // pred_check_branch
    %39 = sbr.rel (0) target = $region45
  $region44: #{lstm_model_forward.1} parent=0 // pred_region
    _
  $region45: #{lstm_model_forward.1} parent=0 // pred_fallthru
    _
  // Predicated region
  $region46: #{lstm_model_forward.1} parent=0 // pred_check
    _
  $region47: #{lstm_model_forward.1} parent=0 // pred_check_branch
    %41 = sbr.rel (0) target = $region49
  $region48: #{lstm_model_forward.1} parent=0 // pred_region
    _
  $region49: #{lstm_model_forward.1} parent=0 // pred_fallthru
    _
  // Predicated region
  $region50: #{lstm_model_forward.1} parent=0 // pred_check
    _
  $region51: #{lstm_model_forward.1} parent=0 // pred_check_branch
    %43 = sbr.rel (0) target = $region53
  $region52: #{lstm_model_forward.1} parent=0 // pred_region
    _
  $region53: #{lstm_model_forward.1} parent=0 // pred_fallthru
    _
  %v45 = vld [vmem:[%s1] sm:$0xff]
  %v46 = vld [vmem:[%s0] sm:$0xff]
  %v47 = vld [vmem:[%s0 + $0x8] sm:$0xff]
  %v48 = vld [vmem:[%s0 + $0x10] sm:$0xff]
  %v49 = vld [vmem:[%s0 + $0x18] sm:$0xff]
  %v50 = vld [vmem:[%s0 + $0x20] sm:$0xff]
  %v51 = vld [vmem:[%s0 + $0x28] sm:$0xff]
  %v52 = vld [vmem:[%s0 + $0x30] sm:$0xff]
  %v53 = vld [vmem:[%s0 + $0x38] sm:$0xff]
  %v54 = vpack.c.bf16 %v47, %v46
  %v55 = vpack.c.bf16 %v49, %v48
  %v56 = vpack.c.bf16 %v51, %v50
  %v57 = vpack.c.bf16 %v53, %v52
  %v58 = vld [vmem:[%s2] sm:$0x3]
  %v60 = vlaneseq
  %v61 = vshrl.u32 %v60, 7
  %v62 = vsub.s32 0, %v61
  %v63 = vrot.slane %v58, %v62
  %v64 = vlaneseq
  %v65 = vshrl.u32 %v64, 7
  %v66 = vsub.s32 1, %v65
  %v67 = vrot.slane %v58, %v66
  %v71 = vunpack.c.l.b16 %v45
  %v72 = vunpack.c.h.b16 %v45
  %v73 = vpack.c.b16 %v71, %v71
  %v74 = vpack.c.b16 %v72, %v72
  %vm75 = vcmask 64512
  %v77 = vsel %vm75, %v54, 0
  %v80 = vsel %vm75, %v55, 0
  %v83 = vsel %vm75, %v56, 0
  %v86 = vsel %vm75, %v57, 0
  %vm88 = vcmask 1043456
  %v90 = vsel %vm88, %v73, 0
  %v93 = vsel %vm88, %v74, 0
  %95 = vmatprep.subr.bf16.mxu0 %v93
  %96 = vmatpush1.bf16.msra.mxu0 %v90
  %97 = vmatprep.subr.bf16.mxu0 0
  %98 = vmatpush1.bf16.msra.mxu0 0
  %99 = vmatprep.subr.bf16.mxu0 0
  %100 = vmatpush1.bf16.msra.mxu0 0
  %101 = vmatprep.subr.bf16.mxu0 0
  %102 = vmatpush1.bf16.msra.mxu0 0
  %103 = vmatprep.subr.bf16.mxu0 0
  %104 = vmatpush1.bf16.msra.mxu0 0
  %105 = vmatprep.subr.bf16.mxu0 0
  %106 = vmatpush1.bf16.msra.mxu0 0
  %107 = vmatprep.subr.bf16.mxu0 0
  %108 = vmatpush1.bf16.msra.mxu0 0
  %109 = vmatprep.subr.bf16.mxu0 0
  %110 = vmatpush1.bf16.msra.mxu0 0
  %111 = vmatprep.subr.bf16.mxu0 0
  %112 = vmatpush1.bf16.msra.mxu0 0
  %113 = vmatprep.subr.bf16.mxu0 0
  %114 = vmatpush1.bf16.msra.mxu0 0
  %115 = vmatprep.subr.bf16.mxu0 0
  %116 = vmatpush1.bf16.msra.mxu0 0
  %117 = vmatprep.subr.bf16.mxu0 0
  %118 = vmatpush1.bf16.msra.mxu0 0
  %119 = vmatprep.subr.bf16.mxu0 0
  %120 = vmatpush1.bf16.msra.mxu0 0
  %121 = vmatprep.subr.bf16.mxu0 0
  %122 = vmatpush1.bf16.msra.mxu0 0
  %123 = vmatprep.subr.bf16.mxu0 0
  %124 = vmatpush1.bf16.msra.mxu0 0
  %125 = vmatprep.subr.bf16.mxu0 0
  %126 = vmatpush1.bf16.msra.mxu0 0
  %127 = vmatprep.mubr.bf16.mxu0 0
  %128 = vmatmul.mubr.bf16.gmra.mrb[0].mxu0 %v77
  %v129 = vpop.f32.mrb[0].mxu0
  %v130 = vadd.f32 %v63, %v129
  %v131 = vpop.f32.mrb[0].mxu0
  %v132 = vadd.f32 %v67, %v131
  %v133 = vpop.f32.mrb[0].mxu0
  %v134 = vadd.f32 %v63, %v133
  %v135 = vpop.f32.mrb[0].mxu0
  %v136 = vadd.f32 %v67, %v135
  %137 = vmatprep.mubr.bf16.mxu0 0
  %138 = vmatmul.mubr.bf16.gmra.mrb[0].mxu0 %v80
  %v139 = vpop.f32.mrb[0].mxu0
  %v140 = vadd.f32 %v63, %v139
  %v141 = vpop.f32.mrb[0].mxu0
  %v142 = vadd.f32 %v67, %v141
  %v143 = vpop.f32.mrb[0].mxu0
  %v144 = vadd.f32 %v63, %v143
  %v145 = vpop.f32.mrb[0].mxu0
  %v146 = vadd.f32 %v67, %v145
  %147 = vmatprep.mubr.bf16.mxu0 0
  %148 = vmatmul.mubr.bf16.gmra.mrb[0].mxu0 %v83
  %v149 = vpop.f32.mrb[0].mxu0
  %v150 = vadd.f32 %v63, %v149
  %v151 = vpop.f32.mrb[0].mxu0
  %v152 = vadd.f32 %v67, %v151
  %v153 = vpop.f32.mrb[0].mxu0
  %v154 = vadd.f32 %v63, %v153
  %v155 = vpop.f32.mrb[0].mxu0
  %v156 = vadd.f32 %v67, %v155
  %157 = vmatprep.mubr.bf16.mxu0 0
  %158 = vmatmul.mubr.bf16.gmra.mrb[0].mxu0 %v86
  %v159 = vpop.f32.mrb[0].mxu0
  %v160 = vadd.f32 %v63, %v159
  %v161 = vpop.f32.mrb[0].mxu0
  %v162 = vadd.f32 %v67, %v161
  %v163 = vpop.f32.mrb[0].mxu0
  %v164 = vadd.f32 %v63, %v163
  %v165 = vpop.f32.mrb[0].mxu0
  %v166 = vadd.f32 %v67, %v165
  %167 = vdwg.mxu0
  %168 = vst [vmem:[#allocation2] sm:$0xff] %v130
  %169 = vst [vmem:[#allocation2 + $0x8] sm:$0xff] %v132
  %170 = vst [vmem:[#allocation2 + $0x10] sm:$0xff] %v134
  %171 = vst [vmem:[#allocation2 + $0x18] sm:$0xff] %v136
  %172 = vst [vmem:[#allocation2 + $0x20] sm:$0xff] %v140
  %173 = vst [vmem:[#allocation2 + $0x28] sm:$0xff] %v142
  %174 = vst [vmem:[#allocation2 + $0x30] sm:$0xff] %v144
  %175 = vst [vmem:[#allocation2 + $0x38] sm:$0xff] %v146
  %176 = vst [vmem:[#allocation2 + $0x40] sm:$0xff] %v150
  %177 = vst [vmem:[#allocation2 + $0x48] sm:$0xff] %v152
  %178 = vst [vmem:[#allocation2 + $0x50] sm:$0xff] %v154
  %179 = vst [vmem:[#allocation2 + $0x58] sm:$0xff] %v156
  %180 = vst [vmem:[#allocation2 + $0x60] sm:$0xff] %v160
  %181 = vst [vmem:[#allocation2 + $0x68] sm:$0xff] %v162
  %182 = vst [vmem:[#allocation2 + $0x70] sm:$0xff] %v164
  %183 = vst [vmem:[#allocation2 + $0x78] sm:$0xff] %v166
  %v184 = vld [vmem:[%s3] sm:$0xf]
  %v185 = vld [vmem:[%s3 + $0x4] sm:$0xf]
  %v186 = vld [vmem:[%s3 + $0x8] sm:$0xf]
  %v187 = vld [vmem:[%s3 + $0xc] sm:$0xf]
  %v188 = vld [vmem:[%s4] sm:$0xf]
  %v189 = vld [vmem:[%s4 + $0x4] sm:$0xf]
  %v190 = vld [vmem:[%s4 + $0x8] sm:$0xf]
  %v191 = vld [vmem:[%s4 + $0xc] sm:$0xf]
  %v196 = vunpack.c.l.b16 %v184
  %v197 = vunpack.c.l.b16 %v185
  %v198 = vunpack.c.l.b16 %v186
  %v199 = vunpack.c.l.b16 %v187
  %v200 = vpack.c.b16 %v197, %v196
  %v201 = vpack.c.b16 %v199, %v198
  %vm204 = vcmask 261120
  %v206 = vsel %vm204, 0, 0
  %208 = vmatprep.subr.bf16.mxu0 0
  %209 = vmatpush1.bf16.msra.mxu0 %v200
  %210 = vmatprep.subr.bf16.mxu0 0
  %211 = vmatpush1.bf16.msra.mxu0 %v201
  %212 = vmatprep.subr.bf16.mxu0 0
  %213 = vmatpush1.bf16.msra.mxu0 0
  %214 = vmatprep.subr.bf16.mxu0 0
  %215 = vmatpush1.bf16.msra.mxu0 0
  %216 = vmatprep.subr.bf16.mxu0 0
  %217 = vmatpush1.bf16.msra.mxu0 0
  %218 = vmatprep.subr.bf16.mxu0 0
  %219 = vmatpush1.bf16.msra.mxu0 0
  %220 = vmatprep.subr.bf16.mxu0 0
  %221 = vmatpush1.bf16.msra.mxu0 0
  %222 = vmatprep.subr.bf16.mxu0 0
  %223 = vmatpush1.bf16.msra.mxu0 0
  %224 = vmatprep.subr.bf16.mxu0 0
  %225 = vmatpush1.bf16.msra.mxu0 0
  %226 = vmatprep.subr.bf16.mxu0 0
  %227 = vmatpush1.bf16.msra.mxu0 0
  %228 = vmatprep.subr.bf16.mxu0 0
  %229 = vmatpush1.bf16.msra.mxu0 0
  %230 = vmatprep.subr.bf16.mxu0 0
  %231 = vmatpush1.bf16.msra.mxu0 0
  %232 = vmatprep.subr.bf16.mxu0 0
  %233 = vmatpush1.bf16.msra.mxu0 0
  %234 = vmatprep.subr.bf16.mxu0 0
  %235 = vmatpush1.bf16.msra.mxu0 0
  %236 = vmatprep.subr.bf16.mxu0 0
  %237 = vmatpush1.bf16.msra.mxu0 0
  %238 = vmatprep.subr.bf16.mxu0 0
  %239 = vmatpush1.bf16.msra.mxu0 0
  %240 = vmatprep.mubr.bf16.mxu0 0
  %241 = vmatmul.mubr.bf16.gmra.mrb[0].mxu0 %v206
  %v242 = vpop.f32.mrb[0].mxu0
  %v243 = vadd.f32 0.0, %v242
  %v244 = vpop.f32.mrb[0].mxu0
  %v245 = vpop.f32.mrb[0].mxu0
  %v246 = vpop.f32.mrb[0].mxu0
  %247 = vdwg.mxu0
  %v252 = vunpack.c.l.b16 %v188
  %v253 = vunpack.c.l.b16 %v189
  %v254 = vunpack.c.l.b16 %v190
  %v255 = vunpack.c.l.b16 %v191
  %v256 = vpack.c.b16 %v253, %v252
  %v257 = vpack.c.b16 %v255, %v254
  %260 = vmatprep.subr.bf16.mxu0 0
  %261 = vmatpush1.bf16.msra.mxu0 %v256
  %262 = vmatprep.subr.bf16.mxu0 0
  %263 = vmatpush1.bf16.msra.mxu0 %v257
  %264 = vmatprep.subr.bf16.mxu0 0
  %265 = vmatpush1.bf16.msra.mxu0 0
  %266 = vmatprep.subr.bf16.mxu0 0
  %267 = vmatpush1.bf16.msra.mxu0 0
  %268 = vmatprep.subr.bf16.mxu0 0
  %269 = vmatpush1.bf16.msra.mxu0 0
  %270 = vmatprep.subr.bf16.mxu0 0
  %271 = vmatpush1.bf16.msra.mxu0 0
  %272 = vmatprep.subr.bf16.mxu0 0
  %273 = vmatpush1.bf16.msra.mxu0 0
  %274 = vmatprep.subr.bf16.mxu0 0
  %275 = vmatpush1.bf16.msra.mxu0 0
  %276 = vmatprep.subr.bf16.mxu0 0
  %277 = vmatpush1.bf16.msra.mxu0 0
  %278 = vmatprep.subr.bf16.mxu0 0
  %279 = vmatpush1.bf16.msra.mxu0 0
  %280 = vmatprep.subr.bf16.mxu0 0
  %281 = vmatpush1.bf16.msra.mxu0 0
  %282 = vmatprep.subr.bf16.mxu0 0
  %283 = vmatpush1.bf16.msra.mxu0 0
  %284 = vmatprep.subr.bf16.mxu0 0
  %285 = vmatpush1.bf16.msra.mxu0 0
  %286 = vmatprep.subr.bf16.mxu0 0
  %287 = vmatpush1.bf16.msra.mxu0 0
  %288 = vmatprep.subr.bf16.mxu0 0
  %289 = vmatpush1.bf16.msra.mxu0 0
  %290 = vmatprep.subr.bf16.mxu0 0
  %291 = vmatpush1.bf16.msra.mxu0 0
  %292 = vmatprep.mubr.bf16.mxu0 0
  %293 = vmatmul.mubr.bf16.gmra.mrb[0].mxu0 %v206
  %v294 = vpop.f32.mrb[0].mxu0
  %v295 = vadd.f32 0.0, %v294
  %v296 = vpop.f32.mrb[0].mxu0
  %v297 = vpop.f32.mrb[0].mxu0
  %v298 = vpop.f32.mrb[0].mxu0
  %299 = vdwg.mxu0
  %v300 = vld [vmem:[#allocation2] sm:$0xff]
  %v301 = vadd.f32 %v300, %v243
  %v302 = vld [vmem:[#allocation2 + $0x78] sm:$0xff]
  %v303 = vadd.f32 %v302, %v295
  %v304 = vxor.u32 %v301, 2147483648
  %v305 = vmul.f32 %v304, 1.442695
  %v306 = vpow.pop %v305
  %v307 = vadd.f32 %v306, 1.0
  %v308 = vrcp.pop %v307
  %v309 = vmul.f32 1.0, %v308
  %v310 = vtanh.pop %v301
  %v311 = vmul.f32 %v309, 0.0
  %313 = vrot.lane.b32.xlu0 %v310, 64
  %v314 = vpop.permute.xlu0 %313
  %v316 = vmul.f32 %v309, %v314
  %318 = vrot.lane.b32.xlu0 %v316, 32
  %v319 = vpop.permute.xlu0 %318
  %v321 = vadd.f32 %v311, %v319
  %v322 = vtanh.pop %v321
  %324 = vrot.lane.b32.xlu0 %v322, 64
  %v325 = vpop.permute.xlu0 %324
  %v327 = vmul.f32 %v309, %v325
  %v328 = vxor.u32 %v303, 2147483648
  %v329 = vmul.f32 %v328, 1.442695
  %v330 = vpow.pop %v329
  %v331 = vadd.f32 %v330, 1.0
  %v332 = vrcp.pop %v331
  %v333 = vmul.f32 1.0, %v332
  %v334 = vtanh.pop %v303
  %v335 = vmul.f32 %v333, 0.0
  %337 = vrot.lane.b32.xlu0 %v334, 64
  %v338 = vpop.permute.xlu0 %337
  %v340 = vmul.f32 %v333, %v338
  %342 = vrot.lane.b32.xlu0 %v340, 32
  %v343 = vpop.permute.xlu0 %342
  %v345 = vadd.f32 %v335, %v343
  %v346 = vtanh.pop %v345
  %348 = vrot.lane.b32.xlu0 %v346, 64
  %v349 = vpop.permute.xlu0 %348
  %v351 = vmul.f32 %v333, %v349
  %353 = vrot.lane.b32.xlu0 %v327, 32
  %v354 = vpop.permute.xlu0 %353
  %356 = vst.msk [vmem:[#allocation3] sm:$0xff] %vm204, %v354
  %358 = vrot.lane.b32.xlu0 %v351, 32
  %v359 = vpop.permute.xlu0 %358
  %361 = vst.msk [vmem:[#allocation4 + $0x38] sm:$0xff] %vm204, %v359
  %v362 = vpack.c.bf16 %v327, %v327
  %364 = vrot.lane.b32.xlu0 %v362, 32
  %v365 = vpop.permute.xlu0 %364
  %v367 = vsel %vm204, %v365, 0
  %369 = vmatprep.subr.bf16.mxu0 0
  %370 = vmatpush1.bf16.msra.mxu0 %v200
  %371 = vmatprep.subr.bf16.mxu0 0
  %372 = vmatpush1.bf16.msra.mxu0 %v201
  %373 = vmatprep.subr.bf16.mxu0 0
  %374 = vmatpush1.bf16.msra.mxu0 0
  %375 = vmatprep.subr.bf16.mxu0 0
  %376 = vmatpush1.bf16.msra.mxu0 0
  %377 = vmatprep.subr.bf16.mxu0 0
  %378 = vmatpush1.bf16.msra.mxu0 0
  %379 = vmatprep.subr.bf16.mxu0 0
  %380 = vmatpush1.bf16.msra.mxu0 0
  %381 = vmatprep.subr.bf16.mxu0 0
  %382 = vmatpush1.bf16.msra.mxu0 0
  %383 = vmatprep.subr.bf16.mxu0 0
  %384 = vmatpush1.bf16.msra.mxu0 0
  %385 = vmatprep.subr.bf16.mxu0 0
  %386 = vmatpush1.bf16.msra.mxu0 0
  %387 = vmatprep.subr.bf16.mxu0 0
  %388 = vmatpush1.bf16.msra.mxu0 0
  %389 = vmatprep.subr.bf16.mxu0 0
  %390 = vmatpush1.bf16.msra.mxu0 0
  %391 = vmatprep.subr.bf16.mxu0 0
  %392 = vmatpush1.bf16.msra.mxu0 0
  %393 = vmatprep.subr.bf16.mxu0 0
  %394 = vmatpush1.bf16.msra.mxu0 0
  %395 = vmatprep.subr.bf16.mxu0 0
  %396 = vmatpush1.bf16.msra.mxu0 0
  %397 = vmatprep.subr.bf16.mxu0 0
  %398 = vmatpush1.bf16.msra.mxu0 0
  %399 = vmatprep.subr.bf16.mxu0 0
  %400 = vmatpush1.bf16.msra.mxu0 0
  %401 = vmatprep.mubr.bf16.mxu0 0
  %402 = vmatmul.mubr.bf16.gmra.mrb[0].mxu0 %v367
  %v403 = vpop.f32.mrb[0].mxu0
  %v404 = vadd.f32 0.0, %v403
  %v405 = vpop.f32.mrb[0].mxu0
  %v406 = vpop.f32.mrb[0].mxu0
  %v407 = vpop.f32.mrb[0].mxu0
  %408 = vdwg.mxu0
  %v409 = vpack.c.bf16 %v351, %v351
  %411 = vrot.lane.b32.xlu0 %v409, 32
  %v412 = vpop.permute.xlu0 %411
  %v414 = vsel %vm204, %v412, 0
  %416 = vmatprep.subr.bf16.mxu0 0
  %417 = vmatpush1.bf16.msra.mxu0 %v256
  %418 = vmatprep.subr.bf16.mxu0 0
  %419 = vmatpush1.bf16.msra.mxu0 %v257
  %420 = vmatprep.subr.bf16.mxu0 0
  %421 = vmatpush1.bf16.msra.mxu0 0
  %422 = vmatprep.subr.bf16.mxu0 0
  %423 = vmatpush1.bf16.msra.mxu0 0
  %424 = vmatprep.subr.bf16.mxu0 0
  %425 = vmatpush1.bf16.msra.mxu0 0
  %426 = vmatprep.subr.bf16.mxu0 0
  %427 = vmatpush1.bf16.msra.mxu0 0
  %428 = vmatprep.subr.bf16.mxu0 0
  %429 = vmatpush1.bf16.msra.mxu0 0
  %430 = vmatprep.subr.bf16.mxu0 0
  %431 = vmatpush1.bf16.msra.mxu0 0
  %432 = vmatprep.subr.bf16.mxu0 0
  %433 = vmatpush1.bf16.msra.mxu0 0
  %434 = vmatprep.subr.bf16.mxu0 0
  %435 = vmatpush1.bf16.msra.mxu0 0
  %436 = vmatprep.subr.bf16.mxu0 0
  %437 = vmatpush1.bf16.msra.mxu0 0
  %438 = vmatprep.subr.bf16.mxu0 0
  %439 = vmatpush1.bf16.msra.mxu0 0
  %440 = vmatprep.subr.bf16.mxu0 0
  %441 = vmatpush1.bf16.msra.mxu0 0
  %442 = vmatprep.subr.bf16.mxu0 0
  %443 = vmatpush1.bf16.msra.mxu0 0
  %444 = vmatprep.subr.bf16.mxu0 0
  %445 = vmatpush1.bf16.msra.mxu0 0
  %446 = vmatprep.subr.bf16.mxu0 0
  %447 = vmatpush1.bf16.msra.mxu0 0
  %448 = vmatprep.mubr.bf16.mxu0 0
  %449 = vmatmul.mubr.bf16.gmra.mrb[0].mxu0 %v414
  %v450 = vpop.f32.mrb[0].mxu0
  %v451 = vadd.f32 0.0, %v450
  %v452 = vpop.f32.mrb[0].mxu0
  %v453 = vpop.f32.mrb[0].mxu0
  %v454 = vpop.f32.mrb[0].mxu0
  %455 = vdwg.mxu0
  %v456 = vld [vmem:[#allocation2 + $0x10] sm:$0xff]
  %v457 = vadd.f32 %v456, %v404
  %v458 = vld [vmem:[#allocation2 + $0x68] sm:$0xff]
  %v459 = vadd.f32 %v458, %v451
  %v460 = vxor.u32 %v457, 2147483648
  %v461 = vmul.f32 %v460, 1.442695
  %v462 = vpow.pop %v461
  %v463 = vadd.f32 %v462, 1.0
  %v464 = vrcp.pop %v463
  %v465 = vmul.f32 1.0, %v464
  %v466 = vtanh.pop %v457
  %v467 = vmul.f32 %v465, %v321
  %469 = vrot.lane.b32.xlu0 %v466, 64
  %v470 = vpop.permute.xlu0 %469
  %v472 = vmul.f32 %v465, %v470
  %474 = vrot.lane.b32.xlu0 %v472, 32
  %v475 = vpop.permute.xlu0 %474
  %v477 = vadd.f32 %v467, %v475
  %v478 = vtanh.pop %v477
  %480 = vrot.lane.b32.xlu0 %v478, 64
  %v481 = vpop.permute.xlu0 %480
  %v483 = vmul.f32 %v465, %v481
  %v484 = vxor.u32 %v459, 2147483648
  %v485 = vmul.f32 %v484, 1.442695
  %v486 = vpow.pop %v485
  %v487 = vadd.f32 %v486, 1.0
  %v488 = vrcp.pop %v487
  %v489 = vmul.f32 1.0, %v488
  %v490 = vtanh.pop %v459
  %v491 = vmul.f32 %v489, %v345
  %493 = vrot.lane.b32.xlu0 %v490, 64
  %v494 = vpop.permute.xlu0 %493
  %v496 = vmul.f32 %v489, %v494
  %498 = vrot.lane.b32.xlu0 %v496, 32
  %v499 = vpop.permute.xlu0 %498
  %v501 = vadd.f32 %v491, %v499
  %v502 = vtanh.pop %v501
  %504 = vrot.lane.b32.xlu0 %v502, 64
  %v505 = vpop.permute.xlu0 %504
  %v507 = vmul.f32 %v489, %v505
  %509 = vrot.lane.b32.xlu0 %v483, 32
  %v510 = vpop.permute.xlu0 %509
  %512 = vst.msk [vmem:[#allocation3 + $0x8] sm:$0xff] %vm204, %v510
  %514 = vrot.lane.b32.xlu0 %v507, 32
  %v515 = vpop.permute.xlu0 %514
  %517 = vst.msk [vmem:[#allocation4 + $0x30] sm:$0xff] %vm204, %v515
  %v518 = vpack.c.bf16 %v483, %v483
  %520 = vrot.lane.b32.xlu0 %v518, 32
  %v521 = vpop.permute.xlu0 %520
  %v523 = vsel %vm204, %v521, 0
  %525 = vmatprep.subr.bf16.mxu0 0
  %526 = vmatpush1.bf16.msra.mxu0 %v200
  %527 = vmatprep.subr.bf16.mxu0 0
  %528 = vmatpush1.bf16.msra.mxu0 %v201
  %529 = vmatprep.subr.bf16.mxu0 0
  %530 = vmatpush1.bf16.msra.mxu0 0
  %531 = vmatprep.subr.bf16.mxu0 0
  %532 = vmatpush1.bf16.msra.mxu0 0
  %533 = vmatprep.subr.bf16.mxu0 0
  %534 = vmatpush1.bf16.msra.mxu0 0
  %535 = vmatprep.subr.bf16.mxu0 0
  %536 = vmatpush1.bf16.msra.mxu0 0
  %537 = vmatprep.subr.bf16.mxu0 0
  %538 = vmatpush1.bf16.msra.mxu0 0
  %539 = vmatprep.subr.bf16.mxu0 0
  %540 = vmatpush1.bf16.msra.mxu0 0
  %541 = vmatprep.subr.bf16.mxu0 0
  %542 = vmatpush1.bf16.msra.mxu0 0
  %543 = vmatprep.subr.bf16.mxu0 0
  %544 = vmatpush1.bf16.msra.mxu0 0
  %545 = vmatprep.subr.bf16.mxu0 0
  %546 = vmatpush1.bf16.msra.mxu0 0
  %547 = vmatprep.subr.bf16.mxu0 0
  %548 = vmatpush1.bf16.msra.mxu0 0
  %549 = vmatprep.subr.bf16.mxu0 0
  %550 = vmatpush1.bf16.msra.mxu0 0
  %551 = vmatprep.subr.bf16.mxu0 0
  %552 = vmatpush1.bf16.msra.mxu0 0
  %553 = vmatprep.subr.bf16.mxu0 0
  %554 = vmatpush1.bf16.msra.mxu0 0
  %555 = vmatprep.subr.bf16.mxu0 0
  %556 = vmatpush1.bf16.msra.mxu0 0
  %557 = vmatprep.mubr.bf16.mxu0 0
  %558 = vmatmul.mubr.bf16.gmra.mrb[0].mxu0 %v523
  %v559 = vpop.f32.mrb[0].mxu0
  %v560 = vadd.f32 0.0, %v559
  %v561 = vpop.f32.mrb[0].mxu0
  %v562 = vpop.f32.mrb[0].mxu0
  %v563 = vpop.f32.mrb[0].mxu0
  %564 = vdwg.mxu0
  %v565 = vpack.c.bf16 %v507, %v507
  %567 = vrot.lane.b32.xlu0 %v565, 32
  %v568 = vpop.permute.xlu0 %567
  %v570 = vsel %vm204, %v568, 0
  %572 = vmatprep.subr.bf16.mxu0 0
  %573 = vmatpush1.bf16.msra.mxu0 %v256
  %574 = vmatprep.subr.bf16.mxu0 0
  %575 = vmatpush1.bf16.msra.mxu0 %v257
  %576 = vmatprep.subr.bf16.mxu0 0
  %577 = vmatpush1.bf16.msra.mxu0 0
  %578 = vmatprep.subr.bf16.mxu0 0
  %579 = vmatpush1.bf16.msra.mxu0 0
  %580 = vmatprep.subr.bf16.mxu0 0
  %581 = vmatpush1.bf16.msra.mxu0 0
  %582 = vmatprep.subr.bf16.mxu0 0
  %583 = vmatpush1.bf16.msra.mxu0 0
  %584 = vmatprep.subr.bf16.mxu0 0
  %585 = vmatpush1.bf16.msra.mxu0 0
  %586 = vmatprep.subr.bf16.mxu0 0
  %587 = vmatpush1.bf16.msra.mxu0 0
  %588 = vmatprep.subr.bf16.mxu0 0
  %589 = vmatpush1.bf16.msra.mxu0 0
  %590 = vmatprep.subr.bf16.mxu0 0
  %591 = vmatpush1.bf16.msra.mxu0 0
  %592 = vmatprep.subr.bf16.mxu0 0
  %593 = vmatpush1.bf16.msra.mxu0 0
  %594 = vmatprep.subr.bf16.mxu0 0
  %595 = vmatpush1.bf16.msra.mxu0 0
  %596 = vmatprep.subr.bf16.mxu0 0
  %597 = vmatpush1.bf16.msra.mxu0 0
  %598 = vmatprep.subr.bf16.mxu0 0
  %599 = vmatpush1.bf16.msra.mxu0 0
  %600 = vmatprep.subr.bf16.mxu0 0
  %601 = vmatpush1.bf16.msra.mxu0 0
  %602 = vmatprep.subr.bf16.mxu0 0
  %603 = vmatpush1.bf16.msra.mxu0 0
  %604 = vmatprep.mubr.bf16.mxu0 0
  %605 = vmatmul.mubr.bf16.gmra.mrb[0].mxu0 %v570
  %v606 = vpop.f32.mrb[0].mxu0
  %v607 = vadd.f32 0.0, %v606
  %v608 = vpop.f32.mrb[0].mxu0
  %v609 = vpop.f32.mrb[0].mxu0
  %v610 = vpop.f32.mrb[0].mxu0
  %611 = vdwg.mxu0
  %v612 = vld [vmem:[#allocation2 + $0x20] sm:$0xff]
  %v613 = vadd.f32 %v612, %v560
  %v614 = vld [vmem:[#allocation2 + $0x58] sm:$0xff]
  %v615 = vadd.f32 %v614, %v607
  %v616 = vxor.u32 %v613, 2147483648
  %v617 = vmul.f32 %v616, 1.442695
  %v618 = vpow.pop %v617
  %v619 = vadd.f32 %v618, 1.0
  %v620 = vrcp.pop %v619
  %v621 = vmul.f32 1.0, %v620
  %v622 = vtanh.pop %v613
  %v623 = vmul.f32 %v621, %v477
  %625 = vrot.lane.b32.xlu0 %v622, 64
  %v626 = vpop.permute.xlu0 %625
  %v628 = vmul.f32 %v621, %v626
  %630 = vrot.lane.b32.xlu0 %v628, 32
  %v631 = vpop.permute.xlu0 %630
  %v633 = vadd.f32 %v623, %v631
  %v634 = vtanh.pop %v633
  %636 = vrot.lane.b32.xlu0 %v634, 64
  %v637 = vpop.permute.xlu0 %636
  %v639 = vmul.f32 %v621, %v637
  %v640 = vxor.u32 %v615, 2147483648
  %v641 = vmul.f32 %v640, 1.442695
  %v642 = vpow.pop %v641
  %v643 = vadd.f32 %v642, 1.0
  %v644 = vrcp.pop %v643
  %v645 = vmul.f32 1.0, %v644
  %v646 = vtanh.pop %v615
  %v647 = vmul.f32 %v645, %v501
  %649 = vrot.lane.b32.xlu0 %v646, 64
  %v650 = vpop.permute.xlu0 %649
  %v652 = vmul.f32 %v645, %v650
  %654 = vrot.lane.b32.xlu0 %v652, 32
  %v655 = vpop.permute.xlu0 %654
  %v657 = vadd.f32 %v647, %v655
  %v658 = vtanh.pop %v657
  %660 = vrot.lane.b32.xlu0 %v658, 64
  %v661 = vpop.permute.xlu0 %660
  %v663 = vmul.f32 %v645, %v661
  %665 = vrot.lane.b32.xlu0 %v639, 32
  %v666 = vpop.permute.xlu0 %665
  %668 = vst.msk [vmem:[#allocation3 + $0x10] sm:$0xff] %vm204, %v666
  %670 = vrot.lane.b32.xlu0 %v663, 32
  %v671 = vpop.permute.xlu0 %670
  %673 = vst.msk [vmem:[#allocation4 + $0x28] sm:$0xff] %vm204, %v671
  %v674 = vpack.c.bf16 %v639, %v639
  %676 = vrot.lane.b32.xlu0 %v674, 32
  %v677 = vpop.permute.xlu0 %676
  %v679 = vsel %vm204, %v677, 0
  %681 = vmatprep.subr.bf16.mxu0 0
  %682 = vmatpush1.bf16.msra.mxu0 %v200
  %683 = vmatprep.subr.bf16.mxu0 0
  %684 = vmatpush1.bf16.msra.mxu0 %v201
  %685 = vmatprep.subr.bf16.mxu0 0
  %686 = vmatpush1.bf16.msra.mxu0 0
  %687 = vmatprep.subr.bf16.mxu0 0
  %688 = vmatpush1.bf16.msra.mxu0 0
  %689 = vmatprep.subr.bf16.mxu0 0
  %690 = vmatpush1.bf16.msra.mxu0 0
  %691 = vmatprep.subr.bf16.mxu0 0
  %692 = vmatpush1.bf16.msra.mxu0 0
  %693 = vmatprep.subr.bf16.mxu0 0
  %694 = vmatpush1.bf16.msra.mxu0 0
  %695 = vmatprep.subr.bf16.mxu0 0
  %696 = vmatpush1.bf16.msra.mxu0 0
  %697 = vmatprep.subr.bf16.mxu0 0
  %698 = vmatpush1.bf16.msra.mxu0 0
  %699 = vmatprep.subr.bf16.mxu0 0
  %700 = vmatpush1.bf16.msra.mxu0 0
  %701 = vmatprep.subr.bf16.mxu0 0
  %702 = vmatpush1.bf16.msra.mxu0 0
  %703 = vmatprep.subr.bf16.mxu0 0
  %704 = vmatpush1.bf16.msra.mxu0 0
  %705 = vmatprep.subr.bf16.mxu0 0
  %706 = vmatpush1.bf16.msra.mxu0 0
  %707 = vmatprep.subr.bf16.mxu0 0
  %708 = vmatpush1.bf16.msra.mxu0 0
  %709 = vmatprep.subr.bf16.mxu0 0
  %710 = vmatpush1.bf16.msra.mxu0 0
  %711 = vmatprep.subr.bf16.mxu0 0
  %712 = vmatpush1.bf16.msra.mxu0 0
  %713 = vmatprep.mubr.bf16.mxu0 0
  %714 = vmatmul.mubr.bf16.gmra.mrb[0].mxu0 %v679
  %v715 = vpop.f32.mrb[0].mxu0
  %v716 = vadd.f32 0.0, %v715
  %v717 = vpop.f32.mrb[0].mxu0
  %v718 = vpop.f32.mrb[0].mxu0
  %v719 = vpop.f32.mrb[0].mxu0
  %720 = vdwg.mxu0
  %v721 = vpack.c.bf16 %v663, %v663
  %723 = vrot.lane.b32.xlu0 %v721, 32
  %v724 = vpop.permute.xlu0 %723
  %v726 = vsel %vm204, %v724, 0
  %728 = vmatprep.subr.bf16.mxu0 0
  %729 = vmatpush1.bf16.msra.mxu0 %v256
  %730 = vmatprep.subr.bf16.mxu0 0
  %731 = vmatpush1.bf16.msra.mxu0 %v257
  %732 = vmatprep.subr.bf16.mxu0 0
  %733 = vmatpush1.bf16.msra.mxu0 0
  %734 = vmatprep.subr.bf16.mxu0 0
  %735 = vmatpush1.bf16.msra.mxu0 0
  %736 = vmatprep.subr.bf16.mxu0 0
  %737 = vmatpush1.bf16.msra.mxu0 0
  %738 = vmatprep.subr.bf16.mxu0 0
  %739 = vmatpush1.bf16.msra.mxu0 0
  %740 = vmatprep.subr.bf16.mxu0 0
  %741 = vmatpush1.bf16.msra.mxu0 0
  %742 = vmatprep.subr.bf16.mxu0 0
  %743 = vmatpush1.bf16.msra.mxu0 0
  %744 = vmatprep.subr.bf16.mxu0 0
  %745 = vmatpush1.bf16.msra.mxu0 0
  %746 = vmatprep.subr.bf16.mxu0 0
  %747 = vmatpush1.bf16.msra.mxu0 0
  %748 = vmatprep.subr.bf16.mxu0 0
  %749 = vmatpush1.bf16.msra.mxu0 0
  %750 = vmatprep.subr.bf16.mxu0 0
  %751 = vmatpush1.bf16.msra.mxu0 0
  %752 = vmatprep.subr.bf16.mxu0 0
  %753 = vmatpush1.bf16.msra.mxu0 0
  %754 = vmatprep.subr.bf16.mxu0 0
  %755 = vmatpush1.bf16.msra.mxu0 0
  %756 = vmatprep.subr.bf16.mxu0 0
  %757 = vmatpush1.bf16.msra.mxu0 0
  %758 = vmatprep.subr.bf16.mxu0 0
  %759 = vmatpush1.bf16.msra.mxu0 0
  %760 = vmatprep.mubr.bf16.mxu0 0
  %761 = vmatmul.mubr.bf16.gmra.mrb[0].mxu0 %v726
  %v762 = vpop.f32.mrb[0].mxu0
  %v763 = vadd.f32 0.0, %v762
  %v764 = vpop.f32.mrb[0].mxu0
  %v765 = vpop.f32.mrb[0].mxu0
  %v766 = vpop.f32.mrb[0].mxu0
  %767 = vdwg.mxu0
  %v768 = vld [vmem:[#allocation2 + $0x30] sm:$0xff]
  %v769 = vadd.f32 %v768, %v716
  %v770 = vld [vmem:[#allocation2 + $0x48] sm:$0xff]
  %v771 = vadd.f32 %v770, %v763
  %v772 = vxor.u32 %v769, 2147483648
  %v773 = vmul.f32 %v772, 1.442695
  %v774 = vpow.pop %v773
  %v775 = vadd.f32 %v774, 1.0
  %v776 = vrcp.pop %v775
  %v777 = vmul.f32 1.0, %v776
  %v778 = vtanh.pop %v769
  %v779 = vmul.f32 %v777, %v633
  %781 = vrot.lane.b32.xlu0 %v778, 64
  %v782 = vpop.permute.xlu0 %781
  %v784 = vmul.f32 %v777, %v782
  %786 = vrot.lane.b32.xlu0 %v784, 32
  %v787 = vpop.permute.xlu0 %786
  %v789 = vadd.f32 %v779, %v787
  %v790 = vtanh.pop %v789
  %792 = vrot.lane.b32.xlu0 %v790, 64
  %v793 = vpop.permute.xlu0 %792
  %v795 = vmul.f32 %v777, %v793
  %v796 = vxor.u32 %v771, 2147483648
  %v797 = vmul.f32 %v796, 1.442695
  %v798 = vpow.pop %v797
  %v799 = vadd.f32 %v798, 1.0
  %v800 = vrcp.pop %v799
  %v801 = vmul.f32 1.0, %v800
  %v802 = vtanh.pop %v771
  %v803 = vmul.f32 %v801, %v657
  %805 = vrot.lane.b32.xlu0 %v802, 64
  %v806 = vpop.permute.xlu0 %805
  %v808 = vmul.f32 %v801, %v806
  %810 = vrot.lane.b32.xlu0 %v808, 32
  %v811 = vpop.permute.xlu0 %810
  %v813 = vadd.f32 %v803, %v811
  %v814 = vtanh.pop %v813
  %816 = vrot.lane.b32.xlu0 %v814, 64
  %v817 = vpop.permute.xlu0 %816
  %v819 = vmul.f32 %v801, %v817
  %821 = vrot.lane.b32.xlu0 %v795, 32
  %v822 = vpop.permute.xlu0 %821
  %824 = vst.msk [vmem:[#allocation3 + $0x18] sm:$0xff] %vm204, %v822
  %826 = vrot.lane.b32.xlu0 %v819, 32
  %v827 = vpop.permute.xlu0 %826
  %829 = vst.msk [vmem:[#allocation4 + $0x20] sm:$0xff] %vm204, %v827
  %v830 = vpack.c.bf16 %v795, %v795
  %832 = vrot.lane.b32.xlu0 %v830, 32
  %v833 = vpop.permute.xlu0 %832
  %v835 = vsel %vm204, %v833, 0
  %837 = vmatprep.subr.bf16.mxu0 0
  %838 = vmatpush1.bf16.msra.mxu0 %v200
  %839 = vmatprep.subr.bf16.mxu0 0
  %840 = vmatpush1.bf16.msra.mxu0 %v201
  %841 = vmatprep.subr.bf16.mxu0 0
  %842 = vmatpush1.bf16.msra.mxu0 0
  %843 = vmatprep.subr.bf16.mxu0 0
  %844 = vmatpush1.bf16.msra.mxu0 0
  %845 = vmatprep.subr.bf16.mxu0 0
  %846 = vmatpush1.bf16.msra.mxu0 0
  %847 = vmatprep.subr.bf16.mxu0 0
  %848 = vmatpush1.bf16.msra.mxu0 0
  %849 = vmatprep.subr.bf16.mxu0 0
  %850 = vmatpush1.bf16.msra.mxu0 0
  %851 = vmatprep.subr.bf16.mxu0 0
  %852 = vmatpush1.bf16.msra.mxu0 0
  %853 = vmatprep.subr.bf16.mxu0 0
  %854 = vmatpush1.bf16.msra.mxu0 0
  %855 = vmatprep.subr.bf16.mxu0 0
  %856 = vmatpush1.bf16.msra.mxu0 0
  %857 = vmatprep.subr.bf16.mxu0 0
  %858 = vmatpush1.bf16.msra.mxu0 0
  %859 = vmatprep.subr.bf16.mxu0 0
  %860 = vmatpush1.bf16.msra.mxu0 0
  %861 = vmatprep.subr.bf16.mxu0 0
  %862 = vmatpush1.bf16.msra.mxu0 0
  %863 = vmatprep.subr.bf16.mxu0 0
  %864 = vmatpush1.bf16.msra.mxu0 0
  %865 = vmatprep.subr.bf16.mxu0 0
  %866 = vmatpush1.bf16.msra.mxu0 0
  %867 = vmatprep.subr.bf16.mxu0 0
  %868 = vmatpush1.bf16.msra.mxu0 0
  %869 = vmatprep.mubr.bf16.mxu0 0
  %870 = vmatmul.mubr.bf16.gmra.mrb[0].mxu0 %v835
  %v871 = vpop.f32.mrb[0].mxu0
  %v872 = vadd.f32 0.0, %v871
  %v873 = vpop.f32.mrb[0].mxu0
  %v874 = vpop.f32.mrb[0].mxu0
  %v875 = vpop.f32.mrb[0].mxu0
  %876 = vdwg.mxu0
  %v877 = vpack.c.bf16 %v819, %v819
  %879 = vrot.lane.b32.xlu0 %v877, 32
  %v880 = vpop.permute.xlu0 %879
  %v882 = vsel %vm204, %v880, 0
  %884 = vmatprep.subr.bf16.mxu0 0
  %885 = vmatpush1.bf16.msra.mxu0 %v256
  %886 = vmatprep.subr.bf16.mxu0 0
  %887 = vmatpush1.bf16.msra.mxu0 %v257
  %888 = vmatprep.subr.bf16.mxu0 0
  %889 = vmatpush1.bf16.msra.mxu0 0
  %890 = vmatprep.subr.bf16.mxu0 0
  %891 = vmatpush1.bf16.msra.mxu0 0
  %892 = vmatprep.subr.bf16.mxu0 0
  %893 = vmatpush1.bf16.msra.mxu0 0
  %894 = vmatprep.subr.bf16.mxu0 0
  %895 = vmatpush1.bf16.msra.mxu0 0
  %896 = vmatprep.subr.bf16.mxu0 0
  %897 = vmatpush1.bf16.msra.mxu0 0
  %898 = vmatprep.subr.bf16.mxu0 0
  %899 = vmatpush1.bf16.msra.mxu0 0
  %900 = vmatprep.subr.bf16.mxu0 0
  %901 = vmatpush1.bf16.msra.mxu0 0
  %902 = vmatprep.subr.bf16.mxu0 0
  %903 = vmatpush1.bf16.msra.mxu0 0
  %904 = vmatprep.subr.bf16.mxu0 0
  %905 = vmatpush1.bf16.msra.mxu0 0
  %906 = vmatprep.subr.bf16.mxu0 0
  %907 = vmatpush1.bf16.msra.mxu0 0
  %908 = vmatprep.subr.bf16.mxu0 0
  %909 = vmatpush1.bf16.msra.mxu0 0
  %910 = vmatprep.subr.bf16.mxu0 0
  %911 = vmatpush1.bf16.msra.mxu0 0
  %912 = vmatprep.subr.bf16.mxu0 0
  %913 = vmatpush1.bf16.msra.mxu0 0
  %914 = vmatprep.subr.bf16.mxu0 0
  %915 = vmatpush1.bf16.msra.mxu0 0
  %916 = vmatprep.mubr.bf16.mxu0 0
  %917 = vmatmul.mubr.bf16.gmra.mrb[0].mxu0 %v882
  %v918 = vpop.f32.mrb[0].mxu0
  %v919 = vadd.f32 0.0, %v918
  %v920 = vpop.f32.mrb[0].mxu0
  %v921 = vpop.f32.mrb[0].mxu0
  %v922 = vpop.f32.mrb[0].mxu0
  %923 = vdwg.mxu0
  %v924 = vld [vmem:[#allocation2 + $0x40] sm:$0xff]
  %v925 = vadd.f32 %v924, %v872
  %v926 = vld [vmem:[#allocation2 + $0x38] sm:$0xff]
  %v927 = vadd.f32 %v926, %v919
  %v928 = vxor.u32 %v925, 2147483648
  %v929 = vmul.f32 %v928, 1.442695
  %v930 = vpow.pop %v929
  %v931 = vadd.f32 %v930, 1.0
  %v932 = vrcp.pop %v931
  %v933 = vmul.f32 1.0, %v932
  %v934 = vtanh.pop %v925
  %v935 = vmul.f32 %v933, %v789
  %937 = vrot.lane.b32.xlu0 %v934, 64
  %v938 = vpop.permute.xlu0 %937
  %v940 = vmul.f32 %v933, %v938
  %942 = vrot.lane.b32.xlu0 %v940, 32
  %v943 = vpop.permute.xlu0 %942
  %v945 = vadd.f32 %v935, %v943
  %v946 = vtanh.pop %v945
  %948 = vrot.lane.b32.xlu0 %v946, 64
  %v949 = vpop.permute.xlu0 %948
  %v951 = vmul.f32 %v933, %v949
  %v952 = vxor.u32 %v927, 2147483648
  %v953 = vmul.f32 %v952, 1.442695
  %v954 = vpow.pop %v953
  %v955 = vadd.f32 %v954, 1.0
  %v956 = vrcp.pop %v955
  %v957 = vmul.f32 1.0, %v956
  %v958 = vtanh.pop %v927
  %v959 = vmul.f32 %v957, %v813
  %961 = vrot.lane.b32.xlu0 %v958, 64
  %v962 = vpop.permute.xlu0 %961
  %v964 = vmul.f32 %v957, %v962
  %966 = vrot.lane.b32.xlu0 %v964, 32
  %v967 = vpop.permute.xlu0 %966
  %v969 = vadd.f32 %v959, %v967
  %v970 = vtanh.pop %v969
  %972 = vrot.lane.b32.xlu0 %v970, 64
  %v973 = vpop.permute.xlu0 %972
  %v975 = vmul.f32 %v957, %v973
  %977 = vrot.lane.b32.xlu0 %v951, 32
  %v978 = vpop.permute.xlu0 %977
  %980 = vst.msk [vmem:[#allocation3 + $0x20] sm:$0xff] %vm204, %v978
  %982 = vrot.lane.b32.xlu0 %v975, 32
  %v983 = vpop.permute.xlu0 %982
  %985 = vst.msk [vmem:[#allocation4 + $0x18] sm:$0xff] %vm204, %v983
  %v986 = vpack.c.bf16 %v951, %v951
  %988 = vrot.lane.b32.xlu0 %v986, 32
  %v989 = vpop.permute.xlu0 %988
  %v991 = vsel %vm204, %v989, 0
  %993 = vmatprep.subr.bf16.mxu0 0
  %994 = vmatpush1.bf16.msra.mxu0 %v200
  %995 = vmatprep.subr.bf16.mxu0 0
  %996 = vmatpush1.bf16.msra.mxu0 %v201
  %997 = vmatprep.subr.bf16.mxu0 0
  %998 = vmatpush1.bf16.msra.mxu0 0
  %999 = vmatprep.subr.bf16.mxu0 0
  %1000 = vmatpush1.bf16.msra.mxu0 0
  %1001 = vmatprep.subr.bf16.mxu0 0
  %1002 = vmatpush1.bf16.msra.mxu0 0
  %1003 = vmatprep.subr.bf16.mxu0 0
  %1004 = vmatpush1.bf16.msra.mxu0 0
  %1005 = vmatprep.subr.bf16.mxu0 0
  %1006 = vmatpush1.bf16.msra.mxu0 0
  %1007 = vmatprep.subr.bf16.mxu0 0
  %1008 = vmatpush1.bf16.msra.mxu0 0
  %1009 = vmatprep.subr.bf16.mxu0 0
  %1010 = vmatpush1.bf16.msra.mxu0 0
  %1011 = vmatprep.subr.bf16.mxu0 0
  %1012 = vmatpush1.bf16.msra.mxu0 0
  %1013 = vmatprep.subr.bf16.mxu0 0
  %1014 = vmatpush1.bf16.msra.mxu0 0
  %1015 = vmatprep.subr.bf16.mxu0 0
  %1016 = vmatpush1.bf16.msra.mxu0 0
  %1017 = vmatprep.subr.bf16.mxu0 0
  %1018 = vmatpush1.bf16.msra.mxu0 0
  %1019 = vmatprep.subr.bf16.mxu0 0
  %1020 = vmatpush1.bf16.msra.mxu0 0
  %1021 = vmatprep.subr.bf16.mxu0 0
  %1022 = vmatpush1.bf16.msra.mxu0 0
  %1023 = vmatprep.subr.bf16.mxu0 0
  %1024 = vmatpush1.bf16.msra.mxu0 0
  %1025 = vmatprep.mubr.bf16.mxu0 0
  %1026 = vmatmul.mubr.bf16.gmra.mrb[0].mxu0 %v991
  %v1027 = vpop.f32.mrb[0].mxu0
  %v1028 = vadd.f32 0.0, %v1027
  %v1029 = vpop.f32.mrb[0].mxu0
  %v1030 = vpop.f32.mrb[0].mxu0
  %v1031 = vpop.f32.mrb[0].mxu0
  %1032 = vdwg.mxu0
  %v1033 = vpack.c.bf16 %v975, %v975
  %1035 = vrot.lane.b32.xlu0 %v1033, 32
  %v1036 = vpop.permute.xlu0 %1035
  %v1038 = vsel %vm204, %v1036, 0
  %1040 = vmatprep.subr.bf16.mxu0 0
  %1041 = vmatpush1.bf16.msra.mxu0 %v256
  %1042 = vmatprep.subr.bf16.mxu0 0
  %1043 = vmatpush1.bf16.msra.mxu0 %v257
  %1044 = vmatprep.subr.bf16.mxu0 0
  %1045 = vmatpush1.bf16.msra.mxu0 0
  %1046 = vmatprep.subr.bf16.mxu0 0
  %1047 = vmatpush1.bf16.msra.mxu0 0
  %1048 = vmatprep.subr.bf16.mxu0 0
  %1049 = vmatpush1.bf16.msra.mxu0 0
  %1050 = vmatprep.subr.bf16.mxu0 0
  %1051 = vmatpush1.bf16.msra.mxu0 0
  %1052 = vmatprep.subr.bf16.mxu0 0
  %1053 = vmatpush1.bf16.msra.mxu0 0
  %1054 = vmatprep.subr.bf16.mxu0 0
  %1055 = vmatpush1.bf16.msra.mxu0 0
  %1056 = vmatprep.subr.bf16.mxu0 0
  %1057 = vmatpush1.bf16.msra.mxu0 0
  %1058 = vmatprep.subr.bf16.mxu0 0
  %1059 = vmatpush1.bf16.msra.mxu0 0
  %1060 = vmatprep.subr.bf16.mxu0 0
  %1061 = vmatpush1.bf16.msra.mxu0 0
  %1062 = vmatprep.subr.bf16.mxu0 0
  %1063 = vmatpush1.bf16.msra.mxu0 0
  %1064 = vmatprep.subr.bf16.mxu0 0
  %1065 = vmatpush1.bf16.msra.mxu0 0
  %1066 = vmatprep.subr.bf16.mxu0 0
  %1067 = vmatpush1.bf16.msra.mxu0 0
  %1068 = vmatprep.subr.bf16.mxu0 0
  %1069 = vmatpush1.bf16.msra.mxu0 0
  %1070 = vmatprep.subr.bf16.mxu0 0
  %1071 = vmatpush1.bf16.msra.mxu0 0
  %1072 = vmatprep.mubr.bf16.mxu0 0
  %1073 = vmatmul.mubr.bf16.gmra.mrb[0].mxu0 %v1038
  %v1074 = vpop.f32.mrb[0].mxu0
  %v1075 = vadd.f32 0.0, %v1074
  %v1076 = vpop.f32.mrb[0].mxu0
  %v1077 = vpop.f32.mrb[0].mxu0
  %v1078 = vpop.f32.mrb[0].mxu0
  %1079 = vdwg.mxu0
  %v1080 = vld [vmem:[#allocation2 + $0x50] sm:$0xff]
  %v1081 = vadd.f32 %v1080, %v1028
  %v1082 = vld [vmem:[#allocation2 + $0x28] sm:$0xff]
  %v1083 = vadd.f32 %v1082, %v1075
  %v1084 = vxor.u32 %v1081, 2147483648
  %v1085 = vmul.f32 %v1084, 1.442695
  %v1086 = vpow.pop %v1085
  %v1087 = vadd.f32 %v1086, 1.0
  %v1088 = vrcp.pop %v1087
  %v1089 = vmul.f32 1.0, %v1088
  %v1090 = vtanh.pop %v1081
  %v1091 = vmul.f32 %v1089, %v945
  %1093 = vrot.lane.b32.xlu0 %v1090, 64
  %v1094 = vpop.permute.xlu0 %1093
  %v1096 = vmul.f32 %v1089, %v1094
  %1098 = vrot.lane.b32.xlu0 %v1096, 32
  %v1099 = vpop.permute.xlu0 %1098
  %v1101 = vadd.f32 %v1091, %v1099
  %v1102 = vtanh.pop %v1101
  %1104 = vrot.lane.b32.xlu0 %v1102, 64
  %v1105 = vpop.permute.xlu0 %1104
  %v1107 = vmul.f32 %v1089, %v1105
  %v1108 = vxor.u32 %v1083, 2147483648
  %v1109 = vmul.f32 %v1108, 1.442695
  %v1110 = vpow.pop %v1109
  %v1111 = vadd.f32 %v1110, 1.0
  %v1112 = vrcp.pop %v1111
  %v1113 = vmul.f32 1.0, %v1112
  %v1114 = vtanh.pop %v1083
  %v1115 = vmul.f32 %v1113, %v969
  %1117 = vrot.lane.b32.xlu0 %v1114, 64
  %v1118 = vpop.permute.xlu0 %1117
  %v1120 = vmul.f32 %v1113, %v1118
  %1122 = vrot.lane.b32.xlu0 %v1120, 32
  %v1123 = vpop.permute.xlu0 %1122
  %v1125 = vadd.f32 %v1115, %v1123
  %v1126 = vtanh.pop %v1125
  %1128 = vrot.lane.b32.xlu0 %v1126, 64
  %v1129 = vpop.permute.xlu0 %1128
  %v1131 = vmul.f32 %v1113, %v1129
  %1133 = vrot.lane.b32.xlu0 %v1107, 32
  %v1134 = vpop.permute.xlu0 %1133
  %1136 = vst.msk [vmem:[#allocation3 + $0x28] sm:$0xff] %vm204, %v1134
  %1138 = vrot.lane.b32.xlu0 %v1131, 32
  %v1139 = vpop.permute.xlu0 %1138
  %1141 = vst.msk [vmem:[#allocation4 + $0x10] sm:$0xff] %vm204, %v1139
  %v1142 = vpack.c.bf16 %v1107, %v1107
  %1144 = vrot.lane.b32.xlu0 %v1142, 32
  %v1145 = vpop.permute.xlu0 %1144
  %v1147 = vsel %vm204, %v1145, 0
  %1149 = vmatprep.subr.bf16.mxu0 0
  %1150 = vmatpush1.bf16.msra.mxu0 %v200
  %1151 = vmatprep.subr.bf16.mxu0 0
  %1152 = vmatpush1.bf16.msra.mxu0 %v201
  %1153 = vmatprep.subr.bf16.mxu0 0
  %1154 = vmatpush1.bf16.msra.mxu0 0
  %1155 = vmatprep.subr.bf16.mxu0 0
  %1156 = vmatpush1.bf16.msra.mxu0 0
  %1157 = vmatprep.subr.bf16.mxu0 0
  %1158 = vmatpush1.bf16.msra.mxu0 0
  %1159 = vmatprep.subr.bf16.mxu0 0
  %1160 = vmatpush1.bf16.msra.mxu0 0
  %1161 = vmatprep.subr.bf16.mxu0 0
  %1162 = vmatpush1.bf16.msra.mxu0 0
  %1163 = vmatprep.subr.bf16.mxu0 0
  %1164 = vmatpush1.bf16.msra.mxu0 0
  %1165 = vmatprep.subr.bf16.mxu0 0
  %1166 = vmatpush1.bf16.msra.mxu0 0
  %1167 = vmatprep.subr.bf16.mxu0 0
  %1168 = vmatpush1.bf16.msra.mxu0 0
  %1169 = vmatprep.subr.bf16.mxu0 0
  %1170 = vmatpush1.bf16.msra.mxu0 0
  %1171 = vmatprep.subr.bf16.mxu0 0
  %1172 = vmatpush1.bf16.msra.mxu0 0
  %1173 = vmatprep.subr.bf16.mxu0 0
  %1174 = vmatpush1.bf16.msra.mxu0 0
  %1175 = vmatprep.subr.bf16.mxu0 0
  %1176 = vmatpush1.bf16.msra.mxu0 0
  %1177 = vmatprep.subr.bf16.mxu0 0
  %1178 = vmatpush1.bf16.msra.mxu0 0
  %1179 = vmatprep.subr.bf16.mxu0 0
  %1180 = vmatpush1.bf16.msra.mxu0 0
  %1181 = vmatprep.mubr.bf16.mxu0 0
  %1182 = vmatmul.mubr.bf16.gmra.mrb[0].mxu0 %v1147
  %v1183 = vpop.f32.mrb[0].mxu0
  %v1184 = vadd.f32 0.0, %v1183
  %v1185 = vpop.f32.mrb[0].mxu0
  %v1186 = vpop.f32.mrb[0].mxu0
  %v1187 = vpop.f32.mrb[0].mxu0
  %1188 = vdwg.mxu0
  %v1189 = vpack.c.bf16 %v1131, %v1131
  %1191 = vrot.lane.b32.xlu0 %v1189, 32
  %v1192 = vpop.permute.xlu0 %1191
  %v1194 = vsel %vm204, %v1192, 0
  %1196 = vmatprep.subr.bf16.mxu0 0
  %1197 = vmatpush1.bf16.msra.mxu0 %v256
  %1198 = vmatprep.subr.bf16.mxu0 0
  %1199 = vmatpush1.bf16.msra.mxu0 %v257
  %1200 = vmatprep.subr.bf16.mxu0 0
  %1201 = vmatpush1.bf16.msra.mxu0 0
  %1202 = vmatprep.subr.bf16.mxu0 0
  %1203 = vmatpush1.bf16.msra.mxu0 0
  %1204 = vmatprep.subr.bf16.mxu0 0
  %1205 = vmatpush1.bf16.msra.mxu0 0
  %1206 = vmatprep.subr.bf16.mxu0 0
  %1207 = vmatpush1.bf16.msra.mxu0 0
  %1208 = vmatprep.subr.bf16.mxu0 0
  %1209 = vmatpush1.bf16.msra.mxu0 0
  %1210 = vmatprep.subr.bf16.mxu0 0
  %1211 = vmatpush1.bf16.msra.mxu0 0
  %1212 = vmatprep.subr.bf16.mxu0 0
  %1213 = vmatpush1.bf16.msra.mxu0 0
  %1214 = vmatprep.subr.bf16.mxu0 0
  %1215 = vmatpush1.bf16.msra.mxu0 0
  %1216 = vmatprep.subr.bf16.mxu0 0
  %1217 = vmatpush1.bf16.msra.mxu0 0
  %1218 = vmatprep.subr.bf16.mxu0 0
  %1219 = vmatpush1.bf16.msra.mxu0 0
  %1220 = vmatprep.subr.bf16.mxu0 0
  %1221 = vmatpush1.bf16.msra.mxu0 0
  %1222 = vmatprep.subr.bf16.mxu0 0
  %1223 = vmatpush1.bf16.msra.mxu0 0
  %1224 = vmatprep.subr.bf16.mxu0 0
  %1225 = vmatpush1.bf16.msra.mxu0 0
  %1226 = vmatprep.subr.bf16.mxu0 0
  %1227 = vmatpush1.bf16.msra.mxu0 0
  %1228 = vmatprep.mubr.bf16.mxu0 0
  %1229 = vmatmul.mubr.bf16.gmra.mrb[0].mxu0 %v1194
  %v1230 = vpop.f32.mrb[0].mxu0
  %v1231 = vadd.f32 0.0, %v1230
  %v1232 = vpop.f32.mrb[0].mxu0
  %v1233 = vpop.f32.mrb[0].mxu0
  %v1234 = vpop.f32.mrb[0].mxu0
  %1235 = vdwg.mxu0
  %v1236 = vld [vmem:[#allocation2 + $0x60] sm:$0xff]
  %v1237 = vadd.f32 %v1236, %v1184
  %v1238 = vld [vmem:[#allocation2 + $0x18] sm:$0xff]
  %v1239 = vadd.f32 %v1238, %v1231
  %v1240 = vxor.u32 %v1237, 2147483648
  %v1241 = vmul.f32 %v1240, 1.442695
  %v1242 = vpow.pop %v1241
  %v1243 = vadd.f32 %v1242, 1.0
  %v1244 = vrcp.pop %v1243
  %v1245 = vmul.f32 1.0, %v1244
  %v1246 = vtanh.pop %v1237
  %v1247 = vmul.f32 %v1245, %v1101
  %1249 = vrot.lane.b32.xlu0 %v1246, 64
  %v1250 = vpop.permute.xlu0 %1249
  %v1252 = vmul.f32 %v1245, %v1250
  %1254 = vrot.lane.b32.xlu0 %v1252, 32
  %v1255 = vpop.permute.xlu0 %1254
  %v1257 = vadd.f32 %v1247, %v1255
  %v1258 = vtanh.pop %v1257
  %1260 = vrot.lane.b32.xlu0 %v1258, 64
  %v1261 = vpop.permute.xlu0 %1260
  %v1263 = vmul.f32 %v1245, %v1261
  %v1264 = vxor.u32 %v1239, 2147483648
  %v1265 = vmul.f32 %v1264, 1.442695
  %v1266 = vpow.pop %v1265
  %v1267 = vadd.f32 %v1266, 1.0
  %v1268 = vrcp.pop %v1267
  %v1269 = vmul.f32 1.0, %v1268
  %v1270 = vtanh.pop %v1239
  %v1271 = vmul.f32 %v1269, %v1125
  %1273 = vrot.lane.b32.xlu0 %v1270, 64
  %v1274 = vpop.permute.xlu0 %1273
  %v1276 = vmul.f32 %v1269, %v1274
  %1278 = vrot.lane.b32.xlu0 %v1276, 32
  %v1279 = vpop.permute.xlu0 %1278
  %v1281 = vadd.f32 %v1271, %v1279
  %v1282 = vtanh.pop %v1281
  %1284 = vrot.lane.b32.xlu0 %v1282, 64
  %v1285 = vpop.permute.xlu0 %1284
  %v1287 = vmul.f32 %v1269, %v1285
  %1289 = vrot.lane.b32.xlu0 %v1263, 32
  %v1290 = vpop.permute.xlu0 %1289
  %1292 = vst.msk [vmem:[#allocation3 + $0x30] sm:$0xff] %vm204, %v1290
  %1294 = vrot.lane.b32.xlu0 %v1287, 32
  %v1295 = vpop.permute.xlu0 %1294
  %1297 = vst.msk [vmem:[#allocation4 + $0x8] sm:$0xff] %vm204, %v1295
  %v1298 = vpack.c.bf16 %v1263, %v1263
  %1300 = vrot.lane.b32.xlu0 %v1298, 32
  %v1301 = vpop.permute.xlu0 %1300
  %v1303 = vsel %vm204, %v1301, 0
  %1305 = vmatprep.subr.bf16.mxu0 0
  %1306 = vmatpush1.bf16.msra.mxu0 %v200
  %1307 = vmatprep.subr.bf16.mxu0 0
  %1308 = vmatpush1.bf16.msra.mxu0 %v201
  %1309 = vmatprep.subr.bf16.mxu0 0
  %1310 = vmatpush1.bf16.msra.mxu0 0
  %1311 = vmatprep.subr.bf16.mxu0 0
  %1312 = vmatpush1.bf16.msra.mxu0 0
  %1313 = vmatprep.subr.bf16.mxu0 0
  %1314 = vmatpush1.bf16.msra.mxu0 0
  %1315 = vmatprep.subr.bf16.mxu0 0
  %1316 = vmatpush1.bf16.msra.mxu0 0
  %1317 = vmatprep.subr.bf16.mxu0 0
  %1318 = vmatpush1.bf16.msra.mxu0 0
  %1319 = vmatprep.subr.bf16.mxu0 0
  %1320 = vmatpush1.bf16.msra.mxu0 0
  %1321 = vmatprep.subr.bf16.mxu0 0
  %1322 = vmatpush1.bf16.msra.mxu0 0
  %1323 = vmatprep.subr.bf16.mxu0 0
  %1324 = vmatpush1.bf16.msra.mxu0 0
  %1325 = vmatprep.subr.bf16.mxu0 0
  %1326 = vmatpush1.bf16.msra.mxu0 0
  %1327 = vmatprep.subr.bf16.mxu0 0
  %1328 = vmatpush1.bf16.msra.mxu0 0
  %1329 = vmatprep.subr.bf16.mxu0 0
  %1330 = vmatpush1.bf16.msra.mxu0 0
  %1331 = vmatprep.subr.bf16.mxu0 0
  %1332 = vmatpush1.bf16.msra.mxu0 0
  %1333 = vmatprep.subr.bf16.mxu0 0
  %1334 = vmatpush1.bf16.msra.mxu0 0
  %1335 = vmatprep.subr.bf16.mxu0 0
  %1336 = vmatpush1.bf16.msra.mxu0 0
  %1337 = vmatprep.mubr.bf16.mxu0 0
  %1338 = vmatmul.mubr.bf16.gmra.mrb[0].mxu0 %v1303
  %v1339 = vpop.f32.mrb[0].mxu0
  %v1340 = vadd.f32 0.0, %v1339
  %v1341 = vpop.f32.mrb[0].mxu0
  %v1342 = vpop.f32.mrb[0].mxu0
  %v1343 = vpop.f32.mrb[0].mxu0
  %1344 = vdwg.mxu0
  %v1345 = vpack.c.bf16 %v1287, %v1287
  %1347 = vrot.lane.b32.xlu0 %v1345, 32
  %v1348 = vpop.permute.xlu0 %1347
  %v1350 = vsel %vm204, %v1348, 0
  %1352 = vmatprep.subr.bf16.mxu0 0
  %1353 = vmatpush1.bf16.msra.mxu0 %v256
  %1354 = vmatprep.subr.bf16.mxu0 0
  %1355 = vmatpush1.bf16.msra.mxu0 %v257
  %1356 = vmatprep.subr.bf16.mxu0 0
  %1357 = vmatpush1.bf16.msra.mxu0 0
  %1358 = vmatprep.subr.bf16.mxu0 0
  %1359 = vmatpush1.bf16.msra.mxu0 0
  %1360 = vmatprep.subr.bf16.mxu0 0
  %1361 = vmatpush1.bf16.msra.mxu0 0
  %1362 = vmatprep.subr.bf16.mxu0 0
  %1363 = vmatpush1.bf16.msra.mxu0 0
  %1364 = vmatprep.subr.bf16.mxu0 0
  %1365 = vmatpush1.bf16.msra.mxu0 0
  %1366 = vmatprep.subr.bf16.mxu0 0
  %1367 = vmatpush1.bf16.msra.mxu0 0
  %1368 = vmatprep.subr.bf16.mxu0 0
  %1369 = vmatpush1.bf16.msra.mxu0 0
  %1370 = vmatprep.subr.bf16.mxu0 0
  %1371 = vmatpush1.bf16.msra.mxu0 0
  %1372 = vmatprep.subr.bf16.mxu0 0
  %1373 = vmatpush1.bf16.msra.mxu0 0
  %1374 = vmatprep.subr.bf16.mxu0 0
  %1375 = vmatpush1.bf16.msra.mxu0 0
  %1376 = vmatprep.subr.bf16.mxu0 0
  %1377 = vmatpush1.bf16.msra.mxu0 0
  %1378 = vmatprep.subr.bf16.mxu0 0
  %1379 = vmatpush1.bf16.msra.mxu0 0
  %1380 = vmatprep.subr.bf16.mxu0 0
  %1381 = vmatpush1.bf16.msra.mxu0 0
  %1382 = vmatprep.subr.bf16.mxu0 0
  %1383 = vmatpush1.bf16.msra.mxu0 0
  %1384 = vmatprep.mubr.bf16.mxu0 0
  %1385 = vmatmul.mubr.bf16.gmra.mrb[0].mxu0 %v1350
  %v1386 = vpop.f32.mrb[0].mxu0
  %v1387 = vadd.f32 0.0, %v1386
  %v1388 = vpop.f32.mrb[0].mxu0
  %v1389 = vpop.f32.mrb[0].mxu0
  %v1390 = vpop.f32.mrb[0].mxu0
  %1391 = vdwg.mxu0
  %v1392 = vld [vmem:[#allocation2 + $0x70] sm:$0xff]
  %v1393 = vadd.f32 %v1392, %v1340
  %v1394 = vld [vmem:[#allocation2 + $0x8] sm:$0xff]
  %v1395 = vadd.f32 %v1394, %v1387
  %v1396 = vxor.u32 %v1393, 2147483648
  %v1397 = vmul.f32 %v1396, 1.442695
  %v1398 = vpow.pop %v1397
  %v1399 = vadd.f32 %v1398, 1.0
  %v1400 = vrcp.pop %v1399
  %v1401 = vmul.f32 1.0, %v1400
  %v1402 = vtanh.pop %v1393
  %v1403 = vmul.f32 %v1401, %v1257
  %1405 = vrot.lane.b32.xlu0 %v1402, 64
  %v1406 = vpop.permute.xlu0 %1405
  %v1408 = vmul.f32 %v1401, %v1406
  %1410 = vrot.lane.b32.xlu0 %v1408, 32
  %v1411 = vpop.permute.xlu0 %1410
  %v1413 = vadd.f32 %v1403, %v1411
  %v1414 = vtanh.pop %v1413
  %1416 = vrot.lane.b32.xlu0 %v1414, 64
  %v1417 = vpop.permute.xlu0 %1416
  %v1419 = vmul.f32 %v1401, %v1417
  %v1420 = vxor.u32 %v1395, 2147483648
  %v1421 = vmul.f32 %v1420, 1.442695
  %v1422 = vpow.pop %v1421
  %v1423 = vadd.f32 %v1422, 1.0
  %v1424 = vrcp.pop %v1423
  %v1425 = vmul.f32 1.0, %v1424
  %v1426 = vtanh.pop %v1395
  %v1427 = vmul.f32 %v1425, %v1281
  %1429 = vrot.lane.b32.xlu0 %v1426, 64
  %v1430 = vpop.permute.xlu0 %1429
  %v1432 = vmul.f32 %v1425, %v1430
  %1434 = vrot.lane.b32.xlu0 %v1432, 32
  %v1435 = vpop.permute.xlu0 %1434
  %v1437 = vadd.f32 %v1427, %v1435
  %v1438 = vtanh.pop %v1437
  %1440 = vrot.lane.b32.xlu0 %v1438, 64
  %v1441 = vpop.permute.xlu0 %1440
  %v1443 = vmul.f32 %v1425, %v1441
  %1445 = vrot.lane.b32.xlu0 %v1419, 32
  %v1446 = vpop.permute.xlu0 %1445
  %1448 = vst.msk [vmem:[#allocation3 + $0x38] sm:$0xff] %vm204, %v1446
  %1450 = vrot.lane.b32.xlu0 %v1443, 32
  %v1451 = vpop.permute.xlu0 %1450
  %1453 = vst.msk [vmem:[#allocation4] sm:$0xff] %vm204, %v1451
  %v1454 = vld [vmem:[%s5] sm:$0xff]
  %v1455 = vld [vmem:[%s5 + $0x8] sm:$0xff]
  %v1456 = vld [vmem:[%s5 + $0x10] sm:$0xff]
  %v1457 = vld [vmem:[%s5 + $0x18] sm:$0xff]
  %v1458 = vld [vmem:[%s5 + $0x20] sm:$0xff]
  %v1459 = vld [vmem:[%s5 + $0x28] sm:$0xff]
  %v1460 = vld [vmem:[%s5 + $0x30] sm:$0xff]
  %v1461 = vld [vmem:[%s5 + $0x38] sm:$0xff]
  %v1462 = vld [vmem:[#allocation3] sm:$0xff]
  %v1463 = vld [vmem:[#allocation3 + $0x8] sm:$0xff]
  %v1464 = vld [vmem:[#allocation3 + $0x10] sm:$0xff]
  %v1465 = vld [vmem:[#allocation3 + $0x18] sm:$0xff]
  %v1466 = vld [vmem:[#allocation3 + $0x20] sm:$0xff]
  %v1467 = vld [vmem:[#allocation3 + $0x28] sm:$0xff]
  %v1468 = vld [vmem:[#allocation3 + $0x30] sm:$0xff]
  %v1469 = vld [vmem:[#allocation3 + $0x38] sm:$0xff]
  %v1470 = vpack.c.bf16 %v1463, %v1462
  %v1471 = vpack.c.bf16 %v1465, %v1464
  %v1472 = vpack.c.bf16 %v1467, %v1466
  %v1473 = vpack.c.bf16 %v1469, %v1468
  %v1474 = vld [vmem:[#allocation4] sm:$0xff]
  %v1475 = vld [vmem:[#allocation4 + $0x8] sm:$0xff]
  %v1476 = vld [vmem:[#allocation4 + $0x10] sm:$0xff]
  %v1477 = vld [vmem:[#allocation4 + $0x18] sm:$0xff]
  %v1478 = vld [vmem:[#allocation4 + $0x20] sm:$0xff]
  %v1479 = vld [vmem:[#allocation4 + $0x28] sm:$0xff]
  %v1480 = vld [vmem:[#allocation4 + $0x30] sm:$0xff]
  %v1481 = vld [vmem:[#allocation4 + $0x38] sm:$0xff]
  %v1482 = vpack.c.bf16 %v1475, %v1474
  %v1483 = vpack.c.bf16 %v1477, %v1476
  %v1484 = vpack.c.bf16 %v1479, %v1478
  %v1485 = vpack.c.bf16 %v1481, %v1480
  %v1490 = vunpack.c.l.b16 %v1458
  %v1491 = vunpack.c.h.b16 %v1458
  %v1492 = vunpack.c.l.b16 %v1459
  %v1493 = vunpack.c.h.b16 %v1459
  %v1494 = vunpack.c.l.b16 %v1460
  %v1495 = vunpack.c.h.b16 %v1460
  %v1496 = vunpack.c.l.b16 %v1461
  %v1497 = vunpack.c.h.b16 %v1461
  %v1498 = vpack.c.b16 %v1492, %v1490
  %v1499 = vpack.c.b16 %v1493, %v1491
  %v1500 = vpack.c.b16 %v1496, %v1494
  %v1501 = vpack.c.b16 %v1497, %v1495
  %v1507 = vsel %vm204, %v1482, 0
  %v1510 = vsel %vm204, %v1483, 0
  %v1513 = vsel %vm204, %v1484, 0
  %v1516 = vsel %vm204, %v1485, 0
  %1518 = vmatprep.subr.bf16.mxu0 %v1499
  %1519 = vmatpush1.bf16.msra.mxu0 %v1498
  %1520 = vmatprep.subr.bf16.mxu0 %v1501
  %1521 = vmatpush1.bf16.msra.mxu0 %v1500
  %1522 = vmatprep.subr.bf16.mxu0 0
  %1523 = vmatpush1.bf16.msra.mxu0 0
  %1524 = vmatprep.subr.bf16.mxu0 0
  %1525 = vmatpush1.bf16.msra.mxu0 0
  %1526 = vmatprep.subr.bf16.mxu0 0
  %1527 = vmatpush1.bf16.msra.mxu0 0
  %1528 = vmatprep.subr.bf16.mxu0 0
  %1529 = vmatpush1.bf16.msra.mxu0 0
  %1530 = vmatprep.subr.bf16.mxu0 0
  %1531 = vmatpush1.bf16.msra.mxu0 0
  %1532 = vmatprep.subr.bf16.mxu0 0
  %1533 = vmatpush1.bf16.msra.mxu0 0
  %1534 = vmatprep.subr.bf16.mxu0 0
  %1535 = vmatpush1.bf16.msra.mxu0 0
  %1536 = vmatprep.subr.bf16.mxu0 0
  %1537 = vmatpush1.bf16.msra.mxu0 0
  %1538 = vmatprep.subr.bf16.mxu0 0
  %1539 = vmatpush1.bf16.msra.mxu0 0
  %1540 = vmatprep.subr.bf16.mxu0 0
  %1541 = vmatpush1.bf16.msra.mxu0 0
  %1542 = vmatprep.subr.bf16.mxu0 0
  %1543 = vmatpush1.bf16.msra.mxu0 0
  %1544 = vmatprep.subr.bf16.mxu0 0
  %1545 = vmatpush1.bf16.msra.mxu0 0
  %1546 = vmatprep.subr.bf16.mxu0 0
  %1547 = vmatpush1.bf16.msra.mxu0 0
  %1548 = vmatprep.subr.bf16.mxu0 0
  %1549 = vmatpush1.bf16.msra.mxu0 0
  %1550 = vmatprep.mubr.bf16.mxu0 0
  %1551 = vmatmul.mubr.bf16.gmra.mrb[0].mxu0 %v1507
  %v1552 = vpop.f32.mrb[0].mxu0
  %v1553 = vadd.f32 0.0, %v1552
  %v1554 = vpop.f32.mrb[0].mxu0
  %v1555 = vadd.f32 0.0, %v1554
  %v1556 = vpop.f32.mrb[0].mxu0
  %v1557 = vadd.f32 0.0, %v1556
  %v1558 = vpop.f32.mrb[0].mxu0
  %v1559 = vadd.f32 0.0, %v1558
  %1560 = vmatprep.mubr.bf16.mxu0 0
  %1561 = vmatmul.mubr.bf16.gmra.mrb[0].mxu0 %v1510
  %v1562 = vpop.f32.mrb[0].mxu0
  %v1563 = vadd.f32 0.0, %v1562
  %v1564 = vpop.f32.mrb[0].mxu0
  %v1565 = vadd.f32 0.0, %v1564
  %v1566 = vpop.f32.mrb[0].mxu0
  %v1567 = vadd.f32 0.0, %v1566
  %v1568 = vpop.f32.mrb[0].mxu0
  %v1569 = vadd.f32 0.0, %v1568
  %1570 = vmatprep.mubr.bf16.mxu0 0
  %1571 = vmatmul.mubr.bf16.gmra.mrb[0].mxu0 %v1513
  %v1572 = vpop.f32.mrb[0].mxu0
  %v1573 = vadd.f32 0.0, %v1572
  %v1574 = vpop.f32.mrb[0].mxu0
  %v1575 = vadd.f32 0.0, %v1574
  %v1576 = vpop.f32.mrb[0].mxu0
  %v1577 = vadd.f32 0.0, %v1576
  %v1578 = vpop.f32.mrb[0].mxu0
  %v1579 = vadd.f32 0.0, %v1578
  %1580 = vmatprep.mubr.bf16.mxu0 0
  %1581 = vmatmul.mubr.bf16.gmra.mrb[0].mxu0 %v1516
  %v1582 = vpop.f32.mrb[0].mxu0
  %v1583 = vadd.f32 0.0, %v1582
  %v1584 = vpop.f32.mrb[0].mxu0
  %v1585 = vadd.f32 0.0, %v1584
  %v1586 = vpop.f32.mrb[0].mxu0
  %v1587 = vadd.f32 0.0, %v1586
  %v1588 = vpop.f32.mrb[0].mxu0
  %v1589 = vadd.f32 0.0, %v1588
  %1590 = vdwg.mxu0
  %v1595 = vunpack.c.l.b16 %v1454
  %v1596 = vunpack.c.h.b16 %v1454
  %v1597 = vunpack.c.l.b16 %v1455
  %v1598 = vunpack.c.h.b16 %v1455
  %v1599 = vunpack.c.l.b16 %v1456
  %v1600 = vunpack.c.h.b16 %v1456
  %v1601 = vunpack.c.l.b16 %v1457
  %v1602 = vunpack.c.h.b16 %v1457
  %v1603 = vpack.c.b16 %v1597, %v1595
  %v1604 = vpack.c.b16 %v1598, %v1596
  %v1605 = vpack.c.b16 %v1601, %v1599
  %v1606 = vpack.c.b16 %v1602, %v1600
  %v1612 = vsel %vm204, %v1470, 0
  %v1615 = vsel %vm204, %v1471, 0
  %v1618 = vsel %vm204, %v1472, 0
  %v1621 = vsel %vm204, %v1473, 0
  %1623 = vmatprep.subr.bf16.mxu0 %v1604
  %1624 = vmatpush1.bf16.msra.mxu0 %v1603
  %1625 = vmatprep.subr.bf16.mxu0 %v1606
  %1626 = vmatpush1.bf16.msra.mxu0 %v1605
  %1627 = vmatprep.subr.bf16.mxu0 0
  %1628 = vmatpush1.bf16.msra.mxu0 0
  %1629 = vmatprep.subr.bf16.mxu0 0
  %1630 = vmatpush1.bf16.msra.mxu0 0
  %1631 = vmatprep.subr.bf16.mxu0 0
  %1632 = vmatpush1.bf16.msra.mxu0 0
  %1633 = vmatprep.subr.bf16.mxu0 0
  %1634 = vmatpush1.bf16.msra.mxu0 0
  %1635 = vmatprep.subr.bf16.mxu0 0
  %1636 = vmatpush1.bf16.msra.mxu0 0
  %1637 = vmatprep.subr.bf16.mxu0 0
  %1638 = vmatpush1.bf16.msra.mxu0 0
  %1639 = vmatprep.subr.bf16.mxu0 0
  %1640 = vmatpush1.bf16.msra.mxu0 0
  %1641 = vmatprep.subr.bf16.mxu0 0
  %1642 = vmatpush1.bf16.msra.mxu0 0
  %1643 = vmatprep.subr.bf16.mxu0 0
  %1644 = vmatpush1.bf16.msra.mxu0 0
  %1645 = vmatprep.subr.bf16.mxu0 0
  %1646 = vmatpush1.bf16.msra.mxu0 0
  %1647 = vmatprep.subr.bf16.mxu0 0
  %1648 = vmatpush1.bf16.msra.mxu0 0
  %1649 = vmatprep.subr.bf16.mxu0 0
  %1650 = vmatpush1.bf16.msra.mxu0 0
  %1651 = vmatprep.subr.bf16.mxu0 0
  %1652 = vmatpush1.bf16.msra.mxu0 0
  %1653 = vmatprep.subr.bf16.mxu0 0
  %1654 = vmatpush1.bf16.msra.mxu0 0
  %1655 = vmatprep.mubr.bf16.mxu0 0
  %1656 = vmatmul.mubr.bf16.gmra.mrb[0].mxu0 %v1612
  %v1657 = vpop.f32.mrb[0].mxu0
  %v1658 = vadd.f32 %v1553, %v1657
  %v1659 = vpop.f32.mrb[0].mxu0
  %v1660 = vadd.f32 %v1555, %v1659
  %v1661 = vpop.f32.mrb[0].mxu0
  %v1662 = vadd.f32 %v1557, %v1661
  %v1663 = vpop.f32.mrb[0].mxu0
  %v1664 = vadd.f32 %v1559, %v1663
  %1665 = vmatprep.mubr.bf16.mxu0 0
  %1666 = vmatmul.mubr.bf16.gmra.mrb[0].mxu0 %v1615
  %v1667 = vpop.f32.mrb[0].mxu0
  %v1668 = vadd.f32 %v1563, %v1667
  %v1669 = vpop.f32.mrb[0].mxu0
  %v1670 = vadd.f32 %v1565, %v1669
  %v1671 = vpop.f32.mrb[0].mxu0
  %v1672 = vadd.f32 %v1567, %v1671
  %v1673 = vpop.f32.mrb[0].mxu0
  %v1674 = vadd.f32 %v1569, %v1673
  %1675 = vmatprep.mubr.bf16.mxu0 0
  %1676 = vmatmul.mubr.bf16.gmra.mrb[0].mxu0 %v1618
  %v1677 = vpop.f32.mrb[0].mxu0
  %v1678 = vadd.f32 %v1573, %v1677
  %v1679 = vpop.f32.mrb[0].mxu0
  %v1680 = vadd.f32 %v1575, %v1679
  %v1681 = vpop.f32.mrb[0].mxu0
  %v1682 = vadd.f32 %v1577, %v1681
  %v1683 = vpop.f32.mrb[0].mxu0
  %v1684 = vadd.f32 %v1579, %v1683
  %1685 = vmatprep.mubr.bf16.mxu0 0
  %1686 = vmatmul.mubr.bf16.gmra.mrb[0].mxu0 %v1621
  %v1687 = vpop.f32.mrb[0].mxu0
  %v1688 = vadd.f32 %v1583, %v1687
  %v1689 = vpop.f32.mrb[0].mxu0
  %v1690 = vadd.f32 %v1585, %v1689
  %v1691 = vpop.f32.mrb[0].mxu0
  %v1692 = vadd.f32 %v1587, %v1691
  %v1693 = vpop.f32.mrb[0].mxu0
  %v1694 = vadd.f32 %v1589, %v1693
  %1695 = vdwg.mxu0
  %v1696 = vld [vmem:[%s6] sm:$0x3]
  %v1698 = vlaneseq
  %v1699 = vshrl.u32 %v1698, 7
  %v1700 = vsub.s32 0, %v1699
  %v1701 = vrot.slane %v1696, %v1700
  %v1702 = vlaneseq
  %v1703 = vshrl.u32 %v1702, 7
  %v1704 = vsub.s32 1, %v1703
  %v1705 = vrot.slane %v1696, %v1704
  %v1708 = vadd.f32 %v1658, %v1701
  %v1709 = vadd.f32 %v1660, %v1705
  %v1710 = vadd.f32 %v1662, %v1701
  %v1711 = vadd.f32 %v1664, %v1705
  %v1712 = vadd.f32 %v1668, %v1701
  %v1713 = vadd.f32 %v1670, %v1705
  %v1714 = vadd.f32 %v1672, %v1701
  %v1715 = vadd.f32 %v1674, %v1705
  %v1716 = vadd.f32 %v1678, %v1701
  %v1717 = vadd.f32 %v1680, %v1705
  %v1718 = vadd.f32 %v1682, %v1701
  %v1719 = vadd.f32 %v1684, %v1705
  %v1720 = vadd.f32 %v1688, %v1701
  %v1721 = vadd.f32 %v1690, %v1705
  %v1722 = vadd.f32 %v1692, %v1701
  %v1723 = vadd.f32 %v1694, %v1705
  %1724 = vst [vmem:[#allocation2] sm:$0xff] %v1708
  %1725 = vst [vmem:[#allocation2 + $0x8] sm:$0xff] %v1709
  %1726 = vst [vmem:[#allocation2 + $0x10] sm:$0xff] %v1710
  %1727 = vst [vmem:[#allocation2 + $0x18] sm:$0xff] %v1711
  %1728 = vst [vmem:[#allocation2 + $0x20] sm:$0xff] %v1712
  %1729 = vst [vmem:[#allocation2 + $0x28] sm:$0xff] %v1713
  %1730 = vst [vmem:[#allocation2 + $0x30] sm:$0xff] %v1714
  %1731 = vst [vmem:[#allocation2 + $0x38] sm:$0xff] %v1715
  %1732 = vst [vmem:[#allocation2 + $0x40] sm:$0xff] %v1716
  %1733 = vst [vmem:[#allocation2 + $0x48] sm:$0xff] %v1717
  %1734 = vst [vmem:[#allocation2 + $0x50] sm:$0xff] %v1718
  %1735 = vst [vmem:[#allocation2 + $0x58] sm:$0xff] %v1719
  %1736 = vst [vmem:[#allocation2 + $0x60] sm:$0xff] %v1720
  %1737 = vst [vmem:[#allocation2 + $0x68] sm:$0xff] %v1721
  %1738 = vst [vmem:[#allocation2 + $0x70] sm:$0xff] %v1722
  %1739 = vst [vmem:[#allocation2 + $0x78] sm:$0xff] %v1723
  %v1740 = vld [vmem:[%s7] sm:$0xf]
  %v1741 = vld [vmem:[%s7 + $0x4] sm:$0xf]
  %v1742 = vld [vmem:[%s7 + $0x8] sm:$0xf]
  %v1743 = vld [vmem:[%s7 + $0xc] sm:$0xf]
  %v1744 = vld [vmem:[%s8] sm:$0xf]
  %v1745 = vld [vmem:[%s8 + $0x4] sm:$0xf]
  %v1746 = vld [vmem:[%s8 + $0x8] sm:$0xf]
  %v1747 = vld [vmem:[%s8 + $0xc] sm:$0xf]
  %v1752 = vunpack.c.l.b16 %v1740
  %v1753 = vunpack.c.l.b16 %v1741
  %v1754 = vunpack.c.l.b16 %v1742
  %v1755 = vunpack.c.l.b16 %v1743
  %v1756 = vpack.c.b16 %v1753, %v1752
  %v1757 = vpack.c.b16 %v1755, %v1754
  %1760 = vmatprep.subr.bf16.mxu0 0
  %1761 = vmatpush1.bf16.msra.mxu0 %v1756
  %1762 = vmatprep.subr.bf16.mxu0 0
  %1763 = vmatpush1.bf16.msra.mxu0 %v1757
  %1764 = vmatprep.subr.bf16.mxu0 0
  %1765 = vmatpush1.bf16.msra.mxu0 0
  %1766 = vmatprep.subr.bf16.mxu0 0
  %1767 = vmatpush1.bf16.msra.mxu0 0
  %1768 = vmatprep.subr.bf16.mxu0 0
  %1769 = vmatpush1.bf16.msra.mxu0 0
  %1770 = vmatprep.subr.bf16.mxu0 0
  %1771 = vmatpush1.bf16.msra.mxu0 0
  %1772 = vmatprep.subr.bf16.mxu0 0
  %1773 = vmatpush1.bf16.msra.mxu0 0
  %1774 = vmatprep.subr.bf16.mxu0 0
  %1775 = vmatpush1.bf16.msra.mxu0 0
  %1776 = vmatprep.subr.bf16.mxu0 0
  %1777 = vmatpush1.bf16.msra.mxu0 0
  %1778 = vmatprep.subr.bf16.mxu0 0
  %1779 = vmatpush1.bf16.msra.mxu0 0
  %1780 = vmatprep.subr.bf16.mxu0 0
  %1781 = vmatpush1.bf16.msra.mxu0 0
  %1782 = vmatprep.subr.bf16.mxu0 0
  %1783 = vmatpush1.bf16.msra.mxu0 0
  %1784 = vmatprep.subr.bf16.mxu0 0
  %1785 = vmatpush1.bf16.msra.mxu0 0
  %1786 = vmatprep.subr.bf16.mxu0 0
  %1787 = vmatpush1.bf16.msra.mxu0 0
  %1788 = vmatprep.subr.bf16.mxu0 0
  %1789 = vmatpush1.bf16.msra.mxu0 0
  %1790 = vmatprep.subr.bf16.mxu0 0
  %1791 = vmatpush1.bf16.msra.mxu0 0
  %1792 = vmatprep.mubr.bf16.mxu0 0
  %1793 = vmatmul.mubr.bf16.gmra.mrb[0].mxu0 %v206
  %v1794 = vpop.f32.mrb[0].mxu0
  %v1795 = vadd.f32 0.0, %v1794
  %v1796 = vpop.f32.mrb[0].mxu0
  %v1797 = vpop.f32.mrb[0].mxu0
  %v1798 = vpop.f32.mrb[0].mxu0
  %1799 = vdwg.mxu0
  %v1804 = vunpack.c.l.b16 %v1744
  %v1805 = vunpack.c.l.b16 %v1745
  %v1806 = vunpack.c.l.b16 %v1746
  %v1807 = vunpack.c.l.b16 %v1747
  %v1808 = vpack.c.b16 %v1805, %v1804
  %v1809 = vpack.c.b16 %v1807, %v1806
  %1812 = vmatprep.subr.bf16.mxu0 0
  %1813 = vmatpush1.bf16.msra.mxu0 %v1808
  %1814 = vmatprep.subr.bf16.mxu0 0
  %1815 = vmatpush1.bf16.msra.mxu0 %v1809
  %1816 = vmatprep.subr.bf16.mxu0 0
  %1817 = vmatpush1.bf16.msra.mxu0 0
  %1818 = vmatprep.subr.bf16.mxu0 0
  %1819 = vmatpush1.bf16.msra.mxu0 0
  %1820 = vmatprep.subr.bf16.mxu0 0
  %1821 = vmatpush1.bf16.msra.mxu0 0
  %1822 = vmatprep.subr.bf16.mxu0 0
  %1823 = vmatpush1.bf16.msra.mxu0 0
  %1824 = vmatprep.subr.bf16.mxu0 0
  %1825 = vmatpush1.bf16.msra.mxu0 0
  %1826 = vmatprep.subr.bf16.mxu0 0
  %1827 = vmatpush1.bf16.msra.mxu0 0
  %1828 = vmatprep.subr.bf16.mxu0 0
  %1829 = vmatpush1.bf16.msra.mxu0 0
  %1830 = vmatprep.subr.bf16.mxu0 0
  %1831 = vmatpush1.bf16.msra.mxu0 0
  %1832 = vmatprep.subr.bf16.mxu0 0
  %1833 = vmatpush1.bf16.msra.mxu0 0
  %1834 = vmatprep.subr.bf16.mxu0 0
  %1835 = vmatpush1.bf16.msra.mxu0 0
  %1836 = vmatprep.subr.bf16.mxu0 0
  %1837 = vmatpush1.bf16.msra.mxu0 0
  %1838 = vmatprep.subr.bf16.mxu0 0
  %1839 = vmatpush1.bf16.msra.mxu0 0
  %1840 = vmatprep.subr.bf16.mxu0 0
  %1841 = vmatpush1.bf16.msra.mxu0 0
  %1842 = vmatprep.subr.bf16.mxu0 0
  %1843 = vmatpush1.bf16.msra.mxu0 0
  %1844 = vmatprep.mubr.bf16.mxu0 0
  %1845 = vmatmul.mubr.bf16.gmra.mrb[0].mxu0 %v206
  %v1846 = vpop.f32.mrb[0].mxu0
  %v1847 = vadd.f32 0.0, %v1846
  %v1848 = vpop.f32.mrb[0].mxu0
  %v1849 = vpop.f32.mrb[0].mxu0
  %v1850 = vpop.f32.mrb[0].mxu0
  %1851 = vdwg.mxu0
  %v1852 = vld [vmem:[#allocation2] sm:$0xff]
  %v1853 = vadd.f32 %v1852, %v1795
  %v1854 = vld [vmem:[#allocation2 + $0x78] sm:$0xff]
  %v1855 = vadd.f32 %v1854, %v1847
  %v1856 = vxor.u32 %v1853, 2147483648
  %v1857 = vmul.f32 %v1856, 1.442695
  %v1858 = vpow.pop %v1857
  %v1859 = vadd.f32 %v1858, 1.0
  %v1860 = vrcp.pop %v1859
  %v1861 = vmul.f32 1.0, %v1860
  %v1862 = vtanh.pop %v1853
  %v1863 = vmul.f32 %v1861, 0.0
  %1865 = vrot.lane.b32.xlu0 %v1862, 64
  %v1866 = vpop.permute.xlu0 %1865
  %v1868 = vmul.f32 %v1861, %v1866
  %1870 = vrot.lane.b32.xlu0 %v1868, 32
  %v1871 = vpop.permute.xlu0 %1870
  %v1873 = vadd.f32 %v1863, %v1871
  %v1874 = vtanh.pop %v1873
  %1876 = vrot.lane.b32.xlu0 %v1874, 64
  %v1877 = vpop.permute.xlu0 %1876
  %v1879 = vmul.f32 %v1861, %v1877
  %v1880 = vxor.u32 %v1855, 2147483648
  %v1881 = vmul.f32 %v1880, 1.442695
  %v1882 = vpow.pop %v1881
  %v1883 = vadd.f32 %v1882, 1.0
  %v1884 = vrcp.pop %v1883
  %v1885 = vmul.f32 1.0, %v1884
  %v1886 = vtanh.pop %v1855
  %v1887 = vmul.f32 %v1885, 0.0
  %1889 = vrot.lane.b32.xlu0 %v1886, 64
  %v1890 = vpop.permute.xlu0 %1889
  %v1892 = vmul.f32 %v1885, %v1890
  %1894 = vrot.lane.b32.xlu0 %v1892, 32
  %v1895 = vpop.permute.xlu0 %1894
  %v1897 = vadd.f32 %v1887, %v1895
  %v1898 = vtanh.pop %v1897
  %1900 = vrot.lane.b32.xlu0 %v1898, 64
  %v1901 = vpop.permute.xlu0 %1900
  %v1903 = vmul.f32 %v1885, %v1901
  %v1904 = vpack.c.bf16 %v1879, %v1879
  %1906 = vrot.lane.b32.xlu0 %v1904, 32
  %v1907 = vpop.permute.xlu0 %1906
  %v1909 = vsel %vm204, %v1907, 0
  %1911 = vmatprep.subr.bf16.mxu0 0
  %1912 = vmatpush1.bf16.msra.mxu0 %v1756
  %1913 = vmatprep.subr.bf16.mxu0 0
  %1914 = vmatpush1.bf16.msra.mxu0 %v1757
  %1915 = vmatprep.subr.bf16.mxu0 0
  %1916 = vmatpush1.bf16.msra.mxu0 0
  %1917 = vmatprep.subr.bf16.mxu0 0
  %1918 = vmatpush1.bf16.msra.mxu0 0
  %1919 = vmatprep.subr.bf16.mxu0 0
  %1920 = vmatpush1.bf16.msra.mxu0 0
  %1921 = vmatprep.subr.bf16.mxu0 0
  %1922 = vmatpush1.bf16.msra.mxu0 0
  %1923 = vmatprep.subr.bf16.mxu0 0
  %1924 = vmatpush1.bf16.msra.mxu0 0
  %1925 = vmatprep.subr.bf16.mxu0 0
  %1926 = vmatpush1.bf16.msra.mxu0 0
  %1927 = vmatprep.subr.bf16.mxu0 0
  %1928 = vmatpush1.bf16.msra.mxu0 0
  %1929 = vmatprep.subr.bf16.mxu0 0
  %1930 = vmatpush1.bf16.msra.mxu0 0
  %1931 = vmatprep.subr.bf16.mxu0 0
  %1932 = vmatpush1.bf16.msra.mxu0 0
  %1933 = vmatprep.subr.bf16.mxu0 0
  %1934 = vmatpush1.bf16.msra.mxu0 0
  %1935 = vmatprep.subr.bf16.mxu0 0
  %1936 = vmatpush1.bf16.msra.mxu0 0
  %1937 = vmatprep.subr.bf16.mxu0 0
  %1938 = vmatpush1.bf16.msra.mxu0 0
  %1939 = vmatprep.subr.bf16.mxu0 0
  %1940 = vmatpush1.bf16.msra.mxu0 0
  %1941 = vmatprep.subr.bf16.mxu0 0
  %1942 = vmatpush1.bf16.msra.mxu0 0
  %1943 = vmatprep.mubr.bf16.mxu0 0
  %1944 = vmatmul.mubr.bf16.gmra.mrb[0].mxu0 %v1909
  %v1945 = vpop.f32.mrb[0].mxu0
  %v1946 = vadd.f32 0.0, %v1945
  %v1947 = vpop.f32.mrb[0].mxu0
  %v1948 = vpop.f32.mrb[0].mxu0
  %v1949 = vpop.f32.mrb[0].mxu0
  %1950 = vdwg.mxu0
  %v1951 = vld [vmem:[#allocation2 + $0x10] sm:$0xff]
  %v1952 = vadd.f32 %v1951, %v1946
  %v1953 = vxor.u32 %v1952, 2147483648
  %v1954 = vmul.f32 %v1953, 1.442695
  %v1955 = vpow.pop %v1954
  %v1956 = vadd.f32 %v1955, 1.0
  %v1957 = vrcp.pop %v1956
  %v1958 = vmul.f32 1.0, %v1957
  %v1959 = vtanh.pop %v1952
  %v1960 = vmul.f32 %v1958, %v1873
  %1962 = vrot.lane.b32.xlu0 %v1959, 64
  %v1963 = vpop.permute.xlu0 %1962
  %v1965 = vmul.f32 %v1958, %v1963
  %1967 = vrot.lane.b32.xlu0 %v1965, 32
  %v1968 = vpop.permute.xlu0 %1967
  %v1970 = vadd.f32 %v1960, %v1968
  %v1971 = vtanh.pop %v1970
  %1973 = vrot.lane.b32.xlu0 %v1971, 64
  %v1974 = vpop.permute.xlu0 %1973
  %v1976 = vmul.f32 %v1958, %v1974
  %v1977 = vpack.c.bf16 %v1976, %v1976
  %1979 = vrot.lane.b32.xlu0 %v1977, 32
  %v1980 = vpop.permute.xlu0 %1979
  %v1982 = vsel %vm204, %v1980, 0
  %1984 = vmatprep.subr.bf16.mxu0 0
  %1985 = vmatpush1.bf16.msra.mxu0 %v1756
  %1986 = vmatprep.subr.bf16.mxu0 0
  %1987 = vmatpush1.bf16.msra.mxu0 %v1757
  %1988 = vmatprep.subr.bf16.mxu0 0
  %1989 = vmatpush1.bf16.msra.mxu0 0
  %1990 = vmatprep.subr.bf16.mxu0 0
  %1991 = vmatpush1.bf16.msra.mxu0 0
  %1992 = vmatprep.subr.bf16.mxu0 0
  %1993 = vmatpush1.bf16.msra.mxu0 0
  %1994 = vmatprep.subr.bf16.mxu0 0
  %1995 = vmatpush1.bf16.msra.mxu0 0
  %1996 = vmatprep.subr.bf16.mxu0 0
  %1997 = vmatpush1.bf16.msra.mxu0 0
  %1998 = vmatprep.subr.bf16.mxu0 0
  %1999 = vmatpush1.bf16.msra.mxu0 0
  %2000 = vmatprep.subr.bf16.mxu0 0
  %2001 = vmatpush1.bf16.msra.mxu0 0
  %2002 = vmatprep.subr.bf16.mxu0 0
  %2003 = vmatpush1.bf16.msra.mxu0 0
  %2004 = vmatprep.subr.bf16.mxu0 0
  %2005 = vmatpush1.bf16.msra.mxu0 0
  %2006 = vmatprep.subr.bf16.mxu0 0
  %2007 = vmatpush1.bf16.msra.mxu0 0
  %2008 = vmatprep.subr.bf16.mxu0 0
  %2009 = vmatpush1.bf16.msra.mxu0 0
  %2010 = vmatprep.subr.bf16.mxu0 0
  %2011 = vmatpush1.bf16.msra.mxu0 0
  %2012 = vmatprep.subr.bf16.mxu0 0
  %2013 = vmatpush1.bf16.msra.mxu0 0
  %2014 = vmatprep.subr.bf16.mxu0 0
  %2015 = vmatpush1.bf16.msra.mxu0 0
  %2016 = vmatprep.mubr.bf16.mxu0 0
  %2017 = vmatmul.mubr.bf16.gmra.mrb[0].mxu0 %v1982
  %v2018 = vpop.f32.mrb[0].mxu0
  %v2019 = vadd.f32 0.0, %v2018
  %v2020 = vpop.f32.mrb[0].mxu0
  %v2021 = vpop.f32.mrb[0].mxu0
  %v2022 = vpop.f32.mrb[0].mxu0
  %2023 = vdwg.mxu0
  %v2024 = vld [vmem:[#allocation2 + $0x20] sm:$0xff]
  %v2025 = vadd.f32 %v2024, %v2019
  %v2026 = vxor.u32 %v2025, 2147483648
  %v2027 = vmul.f32 %v2026, 1.442695
  %v2028 = vpow.pop %v2027
  %v2029 = vadd.f32 %v2028, 1.0
  %v2030 = vrcp.pop %v2029
  %v2031 = vmul.f32 1.0, %v2030
  %v2032 = vtanh.pop %v2025
  %v2033 = vmul.f32 %v2031, %v1970
  %2035 = vrot.lane.b32.xlu0 %v2032, 64
  %v2036 = vpop.permute.xlu0 %2035
  %v2038 = vmul.f32 %v2031, %v2036
  %2040 = vrot.lane.b32.xlu0 %v2038, 32
  %v2041 = vpop.permute.xlu0 %2040
  %v2043 = vadd.f32 %v2033, %v2041
  %v2044 = vtanh.pop %v2043
  %2046 = vrot.lane.b32.xlu0 %v2044, 64
  %v2047 = vpop.permute.xlu0 %2046
  %v2049 = vmul.f32 %v2031, %v2047
  %v2050 = vpack.c.bf16 %v2049, %v2049
  %2052 = vrot.lane.b32.xlu0 %v2050, 32
  %v2053 = vpop.permute.xlu0 %2052
  %v2055 = vsel %vm204, %v2053, 0
  %2057 = vmatprep.subr.bf16.mxu0 0
  %2058 = vmatpush1.bf16.msra.mxu0 %v1756
  %2059 = vmatprep.subr.bf16.mxu0 0
  %2060 = vmatpush1.bf16.msra.mxu0 %v1757
  %2061 = vmatprep.subr.bf16.mxu0 0
  %2062 = vmatpush1.bf16.msra.mxu0 0
  %2063 = vmatprep.subr.bf16.mxu0 0
  %2064 = vmatpush1.bf16.msra.mxu0 0
  %2065 = vmatprep.subr.bf16.mxu0 0
  %2066 = vmatpush1.bf16.msra.mxu0 0
  %2067 = vmatprep.subr.bf16.mxu0 0
  %2068 = vmatpush1.bf16.msra.mxu0 0
  %2069 = vmatprep.subr.bf16.mxu0 0
  %2070 = vmatpush1.bf16.msra.mxu0 0
  %2071 = vmatprep.subr.bf16.mxu0 0
  %2072 = vmatpush1.bf16.msra.mxu0 0
  %2073 = vmatprep.subr.bf16.mxu0 0
  %2074 = vmatpush1.bf16.msra.mxu0 0
  %2075 = vmatprep.subr.bf16.mxu0 0
  %2076 = vmatpush1.bf16.msra.mxu0 0
  %2077 = vmatprep.subr.bf16.mxu0 0
  %2078 = vmatpush1.bf16.msra.mxu0 0
  %2079 = vmatprep.subr.bf16.mxu0 0
  %2080 = vmatpush1.bf16.msra.mxu0 0
  %2081 = vmatprep.subr.bf16.mxu0 0
  %2082 = vmatpush1.bf16.msra.mxu0 0
  %2083 = vmatprep.subr.bf16.mxu0 0
  %2084 = vmatpush1.bf16.msra.mxu0 0
  %2085 = vmatprep.subr.bf16.mxu0 0
  %2086 = vmatpush1.bf16.msra.mxu0 0
  %2087 = vmatprep.subr.bf16.mxu0 0
  %2088 = vmatpush1.bf16.msra.mxu0 0
  %2089 = vmatprep.mubr.bf16.mxu0 0
  %2090 = vmatmul.mubr.bf16.gmra.mrb[0].mxu0 %v2055
  %v2091 = vpop.f32.mrb[0].mxu0
  %v2092 = vadd.f32 0.0, %v2091
  %v2093 = vpop.f32.mrb[0].mxu0
  %v2094 = vpop.f32.mrb[0].mxu0
  %v2095 = vpop.f32.mrb[0].mxu0
  %2096 = vdwg.mxu0
  %v2097 = vld [vmem:[#allocation2 + $0x30] sm:$0xff]
  %v2098 = vadd.f32 %v2097, %v2092
  %v2099 = vxor.u32 %v2098, 2147483648
  %v2100 = vmul.f32 %v2099, 1.442695
  %v2101 = vpow.pop %v2100
  %v2102 = vadd.f32 %v2101, 1.0
  %v2103 = vrcp.pop %v2102
  %v2104 = vmul.f32 1.0, %v2103
  %v2105 = vtanh.pop %v2098
  %v2106 = vmul.f32 %v2104, %v2043
  %2108 = vrot.lane.b32.xlu0 %v2105, 64
  %v2109 = vpop.permute.xlu0 %2108
  %v2111 = vmul.f32 %v2104, %v2109
  %2113 = vrot.lane.b32.xlu0 %v2111, 32
  %v2114 = vpop.permute.xlu0 %2113
  %v2116 = vadd.f32 %v2106, %v2114
  %v2117 = vtanh.pop %v2116
  %2119 = vrot.lane.b32.xlu0 %v2117, 64
  %v2120 = vpop.permute.xlu0 %2119
  %v2122 = vmul.f32 %v2104, %v2120
  %v2123 = vpack.c.bf16 %v2122, %v2122
  %2125 = vrot.lane.b32.xlu0 %v2123, 32
  %v2126 = vpop.permute.xlu0 %2125
  %v2128 = vsel %vm204, %v2126, 0
  %2130 = vmatprep.subr.bf16.mxu0 0
  %2131 = vmatpush1.bf16.msra.mxu0 %v1756
  %2132 = vmatprep.subr.bf16.mxu0 0
  %2133 = vmatpush1.bf16.msra.mxu0 %v1757
  %2134 = vmatprep.subr.bf16.mxu0 0
  %2135 = vmatpush1.bf16.msra.mxu0 0
  %2136 = vmatprep.subr.bf16.mxu0 0
  %2137 = vmatpush1.bf16.msra.mxu0 0
  %2138 = vmatprep.subr.bf16.mxu0 0
  %2139 = vmatpush1.bf16.msra.mxu0 0
  %2140 = vmatprep.subr.bf16.mxu0 0
  %2141 = vmatpush1.bf16.msra.mxu0 0
  %2142 = vmatprep.subr.bf16.mxu0 0
  %2143 = vmatpush1.bf16.msra.mxu0 0
  %2144 = vmatprep.subr.bf16.mxu0 0
  %2145 = vmatpush1.bf16.msra.mxu0 0
  %2146 = vmatprep.subr.bf16.mxu0 0
  %2147 = vmatpush1.bf16.msra.mxu0 0
  %2148 = vmatprep.subr.bf16.mxu0 0
  %2149 = vmatpush1.bf16.msra.mxu0 0
  %2150 = vmatprep.subr.bf16.mxu0 0
  %2151 = vmatpush1.bf16.msra.mxu0 0
  %2152 = vmatprep.subr.bf16.mxu0 0
  %2153 = vmatpush1.bf16.msra.mxu0 0
  %2154 = vmatprep.subr.bf16.mxu0 0
  %2155 = vmatpush1.bf16.msra.mxu0 0
  %2156 = vmatprep.subr.bf16.mxu0 0
  %2157 = vmatpush1.bf16.msra.mxu0 0
  %2158 = vmatprep.subr.bf16.mxu0 0
  %2159 = vmatpush1.bf16.msra.mxu0 0
  %2160 = vmatprep.subr.bf16.mxu0 0
  %2161 = vmatpush1.bf16.msra.mxu0 0
  %2162 = vmatprep.mubr.bf16.mxu0 0
  %2163 = vmatmul.mubr.bf16.gmra.mrb[0].mxu0 %v2128
  %v2164 = vpop.f32.mrb[0].mxu0
  %v2165 = vadd.f32 0.0, %v2164
  %v2166 = vpop.f32.mrb[0].mxu0
  %v2167 = vpop.f32.mrb[0].mxu0
  %v2168 = vpop.f32.mrb[0].mxu0
  %2169 = vdwg.mxu0
  %v2170 = vld [vmem:[#allocation2 + $0x40] sm:$0xff]
  %v2171 = vadd.f32 %v2170, %v2165
  %v2172 = vxor.u32 %v2171, 2147483648
  %v2173 = vmul.f32 %v2172, 1.442695
  %v2174 = vpow.pop %v2173
  %v2175 = vadd.f32 %v2174, 1.0
  %v2176 = vrcp.pop %v2175
  %v2177 = vmul.f32 1.0, %v2176
  %v2178 = vtanh.pop %v2171
  %v2179 = vmul.f32 %v2177, %v2116
  %2181 = vrot.lane.b32.xlu0 %v2178, 64
  %v2182 = vpop.permute.xlu0 %2181
  %v2184 = vmul.f32 %v2177, %v2182
  %2186 = vrot.lane.b32.xlu0 %v2184, 32
  %v2187 = vpop.permute.xlu0 %2186
  %v2189 = vadd.f32 %v2179, %v2187
  %v2190 = vtanh.pop %v2189
  %2192 = vrot.lane.b32.xlu0 %v2190, 64
  %v2193 = vpop.permute.xlu0 %2192
  %v2195 = vmul.f32 %v2177, %v2193
  %v2196 = vpack.c.bf16 %v2195, %v2195
  %2198 = vrot.lane.b32.xlu0 %v2196, 32
  %v2199 = vpop.permute.xlu0 %2198
  %v2201 = vsel %vm204, %v2199, 0
  %2203 = vmatprep.subr.bf16.mxu0 0
  %2204 = vmatpush1.bf16.msra.mxu0 %v1756
  %2205 = vmatprep.subr.bf16.mxu0 0
  %2206 = vmatpush1.bf16.msra.mxu0 %v1757
  %2207 = vmatprep.subr.bf16.mxu0 0
  %2208 = vmatpush1.bf16.msra.mxu0 0
  %2209 = vmatprep.subr.bf16.mxu0 0
  %2210 = vmatpush1.bf16.msra.mxu0 0
  %2211 = vmatprep.subr.bf16.mxu0 0
  %2212 = vmatpush1.bf16.msra.mxu0 0
  %2213 = vmatprep.subr.bf16.mxu0 0
  %2214 = vmatpush1.bf16.msra.mxu0 0
  %2215 = vmatprep.subr.bf16.mxu0 0
  %2216 = vmatpush1.bf16.msra.mxu0 0
  %2217 = vmatprep.subr.bf16.mxu0 0
  %2218 = vmatpush1.bf16.msra.mxu0 0
  %2219 = vmatprep.subr.bf16.mxu0 0
  %2220 = vmatpush1.bf16.msra.mxu0 0
  %2221 = vmatprep.subr.bf16.mxu0 0
  %2222 = vmatpush1.bf16.msra.mxu0 0
  %2223 = vmatprep.subr.bf16.mxu0 0
  %2224 = vmatpush1.bf16.msra.mxu0 0
  %2225 = vmatprep.subr.bf16.mxu0 0
  %2226 = vmatpush1.bf16.msra.mxu0 0
  %2227 = vmatprep.subr.bf16.mxu0 0
  %2228 = vmatpush1.bf16.msra.mxu0 0
  %2229 = vmatprep.subr.bf16.mxu0 0
  %2230 = vmatpush1.bf16.msra.mxu0 0
  %2231 = vmatprep.subr.bf16.mxu0 0
  %2232 = vmatpush1.bf16.msra.mxu0 0
  %2233 = vmatprep.subr.bf16.mxu0 0
  %2234 = vmatpush1.bf16.msra.mxu0 0
  %2235 = vmatprep.mubr.bf16.mxu0 0
  %2236 = vmatmul.mubr.bf16.gmra.mrb[0].mxu0 %v2201
  %v2237 = vpop.f32.mrb[0].mxu0
  %v2238 = vadd.f32 0.0, %v2237
  %v2239 = vpop.f32.mrb[0].mxu0
  %v2240 = vpop.f32.mrb[0].mxu0
  %v2241 = vpop.f32.mrb[0].mxu0
  %2242 = vdwg.mxu0
  %v2243 = vld [vmem:[#allocation2 + $0x50] sm:$0xff]
  %v2244 = vadd.f32 %v2243, %v2238
  %v2245 = vxor.u32 %v2244, 2147483648
  %v2246 = vmul.f32 %v2245, 1.442695
  %v2247 = vpow.pop %v2246
  %v2248 = vadd.f32 %v2247, 1.0
  %v2249 = vrcp.pop %v2248
  %v2250 = vmul.f32 1.0, %v2249
  %v2251 = vtanh.pop %v2244
  %v2252 = vmul.f32 %v2250, %v2189
  %2254 = vrot.lane.b32.xlu0 %v2251, 64
  %v2255 = vpop.permute.xlu0 %2254
  %v2257 = vmul.f32 %v2250, %v2255
  %2259 = vrot.lane.b32.xlu0 %v2257, 32
  %v2260 = vpop.permute.xlu0 %2259
  %v2262 = vadd.f32 %v2252, %v2260
  %v2263 = vtanh.pop %v2262
  %2265 = vrot.lane.b32.xlu0 %v2263, 64
  %v2266 = vpop.permute.xlu0 %2265
  %v2268 = vmul.f32 %v2250, %v2266
  %v2269 = vpack.c.bf16 %v2268, %v2268
  %2271 = vrot.lane.b32.xlu0 %v2269, 32
  %v2272 = vpop.permute.xlu0 %2271
  %v2274 = vsel %vm204, %v2272, 0
  %2276 = vmatprep.subr.bf16.mxu0 0
  %2277 = vmatpush1.bf16.msra.mxu0 %v1756
  %2278 = vmatprep.subr.bf16.mxu0 0
  %2279 = vmatpush1.bf16.msra.mxu0 %v1757
  %2280 = vmatprep.subr.bf16.mxu0 0
  %2281 = vmatpush1.bf16.msra.mxu0 0
  %2282 = vmatprep.subr.bf16.mxu0 0
  %2283 = vmatpush1.bf16.msra.mxu0 0
  %2284 = vmatprep.subr.bf16.mxu0 0
  %2285 = vmatpush1.bf16.msra.mxu0 0
  %2286 = vmatprep.subr.bf16.mxu0 0
  %2287 = vmatpush1.bf16.msra.mxu0 0
  %2288 = vmatprep.subr.bf16.mxu0 0
  %2289 = vmatpush1.bf16.msra.mxu0 0
  %2290 = vmatprep.subr.bf16.mxu0 0
  %2291 = vmatpush1.bf16.msra.mxu0 0
  %2292 = vmatprep.subr.bf16.mxu0 0
  %2293 = vmatpush1.bf16.msra.mxu0 0
  %2294 = vmatprep.subr.bf16.mxu0 0
  %2295 = vmatpush1.bf16.msra.mxu0 0
  %2296 = vmatprep.subr.bf16.mxu0 0
  %2297 = vmatpush1.bf16.msra.mxu0 0
  %2298 = vmatprep.subr.bf16.mxu0 0
  %2299 = vmatpush1.bf16.msra.mxu0 0
  %2300 = vmatprep.subr.bf16.mxu0 0
  %2301 = vmatpush1.bf16.msra.mxu0 0
  %2302 = vmatprep.subr.bf16.mxu0 0
  %2303 = vmatpush1.bf16.msra.mxu0 0
  %2304 = vmatprep.subr.bf16.mxu0 0
  %2305 = vmatpush1.bf16.msra.mxu0 0
  %2306 = vmatprep.subr.bf16.mxu0 0
  %2307 = vmatpush1.bf16.msra.mxu0 0
  %2308 = vmatprep.mubr.bf16.mxu0 0
  %2309 = vmatmul.mubr.bf16.gmra.mrb[0].mxu0 %v2274
  %v2310 = vpop.f32.mrb[0].mxu0
  %v2311 = vadd.f32 0.0, %v2310
  %v2312 = vpop.f32.mrb[0].mxu0
  %v2313 = vpop.f32.mrb[0].mxu0
  %v2314 = vpop.f32.mrb[0].mxu0
  %2315 = vdwg.mxu0
  %v2316 = vld [vmem:[#allocation2 + $0x60] sm:$0xff]
  %v2317 = vadd.f32 %v2316, %v2311
  %v2318 = vxor.u32 %v2317, 2147483648
  %v2319 = vmul.f32 %v2318, 1.442695
  %v2320 = vpow.pop %v2319
  %v2321 = vadd.f32 %v2320, 1.0
  %v2322 = vrcp.pop %v2321
  %v2323 = vmul.f32 1.0, %v2322
  %v2324 = vtanh.pop %v2317
  %v2325 = vmul.f32 %v2323, %v2262
  %2327 = vrot.lane.b32.xlu0 %v2324, 64
  %v2328 = vpop.permute.xlu0 %2327
  %v2330 = vmul.f32 %v2323, %v2328
  %2332 = vrot.lane.b32.xlu0 %v2330, 32
  %v2333 = vpop.permute.xlu0 %2332
  %v2335 = vadd.f32 %v2325, %v2333
  %v2336 = vtanh.pop %v2335
  %2338 = vrot.lane.b32.xlu0 %v2336, 64
  %v2339 = vpop.permute.xlu0 %2338
  %v2341 = vmul.f32 %v2323, %v2339
  %v2342 = vpack.c.bf16 %v2341, %v2341
  %2344 = vrot.lane.b32.xlu0 %v2342, 32
  %v2345 = vpop.permute.xlu0 %2344
  %v2347 = vsel %vm204, %v2345, 0
  %2349 = vmatprep.subr.bf16.mxu0 0
  %2350 = vmatpush1.bf16.msra.mxu0 %v1756
  %2351 = vmatprep.subr.bf16.mxu0 0
  %2352 = vmatpush1.bf16.msra.mxu0 %v1757
  %2353 = vmatprep.subr.bf16.mxu0 0
  %2354 = vmatpush1.bf16.msra.mxu0 0
  %2355 = vmatprep.subr.bf16.mxu0 0
  %2356 = vmatpush1.bf16.msra.mxu0 0
  %2357 = vmatprep.subr.bf16.mxu0 0
  %2358 = vmatpush1.bf16.msra.mxu0 0
  %2359 = vmatprep.subr.bf16.mxu0 0
  %2360 = vmatpush1.bf16.msra.mxu0 0
  %2361 = vmatprep.subr.bf16.mxu0 0
  %2362 = vmatpush1.bf16.msra.mxu0 0
  %2363 = vmatprep.subr.bf16.mxu0 0
  %2364 = vmatpush1.bf16.msra.mxu0 0
  %2365 = vmatprep.subr.bf16.mxu0 0
  %2366 = vmatpush1.bf16.msra.mxu0 0
  %2367 = vmatprep.subr.bf16.mxu0 0
  %2368 = vmatpush1.bf16.msra.mxu0 0
  %2369 = vmatprep.subr.bf16.mxu0 0
  %2370 = vmatpush1.bf16.msra.mxu0 0
  %2371 = vmatprep.subr.bf16.mxu0 0
  %2372 = vmatpush1.bf16.msra.mxu0 0
  %2373 = vmatprep.subr.bf16.mxu0 0
  %2374 = vmatpush1.bf16.msra.mxu0 0
  %2375 = vmatprep.subr.bf16.mxu0 0
  %2376 = vmatpush1.bf16.msra.mxu0 0
  %2377 = vmatprep.subr.bf16.mxu0 0
  %2378 = vmatpush1.bf16.msra.mxu0 0
  %2379 = vmatprep.subr.bf16.mxu0 0
  %2380 = vmatpush1.bf16.msra.mxu0 0
  %2381 = vmatprep.mubr.bf16.mxu0 0
  %2382 = vmatmul.mubr.bf16.gmra.mrb[0].mxu0 %v2347
  %v2383 = vpop.f32.mrb[0].mxu0
  %v2384 = vadd.f32 0.0, %v2383
  %v2385 = vpop.f32.mrb[0].mxu0
  %v2386 = vpop.f32.mrb[0].mxu0
  %v2387 = vpop.f32.mrb[0].mxu0
  %2388 = vdwg.mxu0
  %v2389 = vld [vmem:[#allocation2 + $0x70] sm:$0xff]
  %v2390 = vadd.f32 %v2389, %v2384
  %v2391 = vxor.u32 %v2390, 2147483648
  %v2392 = vmul.f32 %v2391, 1.442695
  %v2393 = vpow.pop %v2392
  %v2394 = vadd.f32 %v2393, 1.0
  %v2395 = vrcp.pop %v2394
  %v2396 = vmul.f32 1.0, %v2395
  %v2397 = vtanh.pop %v2390
  %v2398 = vmul.f32 %v2396, %v2335
  %2400 = vrot.lane.b32.xlu0 %v2397, 64
  %v2401 = vpop.permute.xlu0 %2400
  %v2403 = vmul.f32 %v2396, %v2401
  %2405 = vrot.lane.b32.xlu0 %v2403, 32
  %v2406 = vpop.permute.xlu0 %2405
  %v2408 = vadd.f32 %v2398, %v2406
  %v2409 = vtanh.pop %v2408
  %2411 = vrot.lane.b32.xlu0 %v2409, 64
  %v2412 = vpop.permute.xlu0 %2411
  %v2414 = vmul.f32 %v2396, %v2412
  %v2415 = vld [vmem:[%s9] sm:$0xf]
  %v2416 = vld [vmem:[%s9 + $0x4] sm:$0xf]
  %v2417 = vld [vmem:[%s9 + $0x8] sm:$0xf]
  %v2418 = vld [vmem:[%s9 + $0xc] sm:$0xf]
  %v2419 = vld [vmem:[%s9 + $0x10] sm:$0xf]
  %v2420 = vld [vmem:[%s9 + $0x14] sm:$0xf]
  %v2421 = vld [vmem:[%s9 + $0x18] sm:$0xf]
  %v2422 = vld [vmem:[%s9 + $0x1c] sm:$0xf]
  %v2423 = vpack.c.bf16 %v2414, %v2414
  %v2424 = vpack.c.bf16 %v1903, %v1903
  %2426 = vrot.lane.b32.xlu0 %v2424, 32
  %v2427 = vpop.permute.xlu0 %2426
  %v2432 = vunpack.c.l.b16 %v2419
  %v2433 = vunpack.c.l.b16 %v2420
  %v2434 = vunpack.c.l.b16 %v2421
  %v2435 = vunpack.c.l.b16 %v2422
  %v2436 = vpack.c.b16 %v2433, %v2432
  %v2437 = vpack.c.b16 %v2435, %v2434
  %v2441 = vsel %vm204, %v2427, 0
  %2443 = vmatprep.subr.bf16.mxu0 0
  %2444 = vmatpush1.bf16.msra.mxu0 %v2436
  %2445 = vmatprep.subr.bf16.mxu0 0
  %2446 = vmatpush1.bf16.msra.mxu0 %v2437
  %2447 = vmatprep.subr.bf16.mxu0 0
  %2448 = vmatpush1.bf16.msra.mxu0 0
  %2449 = vmatprep.subr.bf16.mxu0 0
  %2450 = vmatpush1.bf16.msra.mxu0 0
  %2451 = vmatprep.subr.bf16.mxu0 0
  %2452 = vmatpush1.bf16.msra.mxu0 0
  %2453 = vmatprep.subr.bf16.mxu0 0
  %2454 = vmatpush1.bf16.msra.mxu0 0
  %2455 = vmatprep.subr.bf16.mxu0 0
  %2456 = vmatpush1.bf16.msra.mxu0 0
  %2457 = vmatprep.subr.bf16.mxu0 0
  %2458 = vmatpush1.bf16.msra.mxu0 0
  %2459 = vmatprep.subr.bf16.mxu0 0
  %2460 = vmatpush1.bf16.msra.mxu0 0
  %2461 = vmatprep.subr.bf16.mxu0 0
  %2462 = vmatpush1.bf16.msra.mxu0 0
  %2463 = vmatprep.subr.bf16.mxu0 0
  %2464 = vmatpush1.bf16.msra.mxu0 0
  %2465 = vmatprep.subr.bf16.mxu0 0
  %2466 = vmatpush1.bf16.msra.mxu0 0
  %2467 = vmatprep.subr.bf16.mxu0 0
  %2468 = vmatpush1.bf16.msra.mxu0 0
  %2469 = vmatprep.subr.bf16.mxu0 0
  %2470 = vmatpush1.bf16.msra.mxu0 0
  %2471 = vmatprep.subr.bf16.mxu0 0
  %2472 = vmatpush1.bf16.msra.mxu0 0
  %2473 = vmatprep.subr.bf16.mxu0 0
  %2474 = vmatpush1.bf16.msra.mxu0 0
  %2475 = vmatprep.mubr.bf16.mxu0 0
  %2476 = vmatmul.mubr.bf16.gmra.mrb[0].mxu0 %v2441
  %v2477 = vpop.f32.mrb[0].mxu0
  %v2478 = vadd.f32 0.0, %v2477
  %v2479 = vpop.f32.mrb[0].mxu0
  %v2480 = vpop.f32.mrb[0].mxu0
  %v2481 = vpop.f32.mrb[0].mxu0
  %2482 = vdwg.mxu0
  %2484 = vrot.lane.b32.xlu0 %v2423, 32
  %v2485 = vpop.permute.xlu0 %2484
  %v2490 = vunpack.c.l.b16 %v2415
  %v2491 = vunpack.c.l.b16 %v2416
  %v2492 = vunpack.c.l.b16 %v2417
  %v2493 = vunpack.c.l.b16 %v2418
  %v2494 = vpack.c.b16 %v2491, %v2490
  %v2495 = vpack.c.b16 %v2493, %v2492
  %v2499 = vsel %vm204, %v2485, 0
  %2501 = vmatprep.subr.bf16.mxu0 0
  %2502 = vmatpush1.bf16.msra.mxu0 %v2494
  %2503 = vmatprep.subr.bf16.mxu0 0
  %2504 = vmatpush1.bf16.msra.mxu0 %v2495
  %2505 = vmatprep.subr.bf16.mxu0 0
  %2506 = vmatpush1.bf16.msra.mxu0 0
  %2507 = vmatprep.subr.bf16.mxu0 0
  %2508 = vmatpush1.bf16.msra.mxu0 0
  %2509 = vmatprep.subr.bf16.mxu0 0
  %2510 = vmatpush1.bf16.msra.mxu0 0
  %2511 = vmatprep.subr.bf16.mxu0 0
  %2512 = vmatpush1.bf16.msra.mxu0 0
  %2513 = vmatprep.subr.bf16.mxu0 0
  %2514 = vmatpush1.bf16.msra.mxu0 0
  %2515 = vmatprep.subr.bf16.mxu0 0
  %2516 = vmatpush1.bf16.msra.mxu0 0
  %2517 = vmatprep.subr.bf16.mxu0 0
  %2518 = vmatpush1.bf16.msra.mxu0 0
  %2519 = vmatprep.subr.bf16.mxu0 0
  %2520 = vmatpush1.bf16.msra.mxu0 0
  %2521 = vmatprep.subr.bf16.mxu0 0
  %2522 = vmatpush1.bf16.msra.mxu0 0
  %2523 = vmatprep.subr.bf16.mxu0 0
  %2524 = vmatpush1.bf16.msra.mxu0 0
  %2525 = vmatprep.subr.bf16.mxu0 0
  %2526 = vmatpush1.bf16.msra.mxu0 0
  %2527 = vmatprep.subr.bf16.mxu0 0
  %2528 = vmatpush1.bf16.msra.mxu0 0
  %2529 = vmatprep.subr.bf16.mxu0 0
  %2530 = vmatpush1.bf16.msra.mxu0 0
  %2531 = vmatprep.subr.bf16.mxu0 0
  %2532 = vmatpush1.bf16.msra.mxu0 0
  %2533 = vmatprep.mubr.bf16.mxu0 0
  %2534 = vmatmul.mubr.bf16.gmra.mrb[0].mxu0 %v2499
  %v2535 = vpop.f32.mrb[0].mxu0
  %v2536 = vadd.f32 %v2478, %v2535
  %v2537 = vpop.f32.mrb[0].mxu0
  %v2538 = vpop.f32.mrb[0].mxu0
  %v2539 = vpop.f32.mrb[0].mxu0
  %2540 = vdwg.mxu0
  %v2541 = vld [vmem:[%s10] sm:$0x1]
  %v2543 = vlaneseq
  %v2544 = vshrl.u32 %v2543, 7
  %v2545 = vsub.s32 0, %v2544
  %v2546 = vrot.slane %v2541, %v2545
  %v2548 = vadd.f32 %v2536, %v2546
  %v2549 = vmax.f32 %v2548, 0.0
  %v2550 = vpack.c.bf16 %v2549, %v2549
  %v2551 = vld [vmem:[%s11] sm:$0xf]
  %v2552 = vld [vmem:[%s11 + $0x4] sm:$0xf]
  %v2553 = vld [vmem:[%s11 + $0x8] sm:$0xf]
  %v2554 = vld [vmem:[%s11 + $0xc] sm:$0xf]
  %v2555 = vld [vmem:[%s12] sm:$0x1]
  %v2557 = vlaneseq
  %v2558 = vshrl.u32 %v2557, 7
  %v2559 = vsub.s32 0, %v2558
  %v2560 = vrot.slane %v2555, %v2559
  %v2566 = vunpack.c.l.b16 %v2551
  %v2567 = vunpack.c.l.b16 %v2552
  %v2568 = vunpack.c.l.b16 %v2553
  %v2569 = vunpack.c.l.b16 %v2554
  %v2570 = vpack.c.b16 %v2567, %v2566
  %v2571 = vpack.c.b16 %v2569, %v2568
  %v2575 = vsel %vm204, %v2550, 0
  %2577 = vmatprep.subr.bf16.mxu0 0
  %2578 = vmatpush1.bf16.msra.mxu0 %v2570
  %2579 = vmatprep.subr.bf16.mxu0 0
  %2580 = vmatpush1.bf16.msra.mxu0 %v2571
  %2581 = vmatprep.subr.bf16.mxu0 0
  %2582 = vmatpush1.bf16.msra.mxu0 0
  %2583 = vmatprep.subr.bf16.mxu0 0
  %2584 = vmatpush1.bf16.msra.mxu0 0
  %2585 = vmatprep.subr.bf16.mxu0 0
  %2586 = vmatpush1.bf16.msra.mxu0 0
  %2587 = vmatprep.subr.bf16.mxu0 0
  %2588 = vmatpush1.bf16.msra.mxu0 0
  %2589 = vmatprep.subr.bf16.mxu0 0
  %2590 = vmatpush1.bf16.msra.mxu0 0
  %2591 = vmatprep.subr.bf16.mxu0 0
  %2592 = vmatpush1.bf16.msra.mxu0 0
  %2593 = vmatprep.subr.bf16.mxu0 0
  %2594 = vmatpush1.bf16.msra.mxu0 0
  %2595 = vmatprep.subr.bf16.mxu0 0
  %2596 = vmatpush1.bf16.msra.mxu0 0
  %2597 = vmatprep.subr.bf16.mxu0 0
  %2598 = vmatpush1.bf16.msra.mxu0 0
  %2599 = vmatprep.subr.bf16.mxu0 0
  %2600 = vmatpush1.bf16.msra.mxu0 0
  %2601 = vmatprep.subr.bf16.mxu0 0
  %2602 = vmatpush1.bf16.msra.mxu0 0
  %2603 = vmatprep.subr.bf16.mxu0 0
  %2604 = vmatpush1.bf16.msra.mxu0 0
  %2605 = vmatprep.subr.bf16.mxu0 0
  %2606 = vmatpush1.bf16.msra.mxu0 0
  %2607 = vmatprep.subr.bf16.mxu0 0
  %2608 = vmatpush1.bf16.msra.mxu0 0
  %2609 = vmatprep.mubr.bf16.mxu0 0
  %2610 = vmatmul.mubr.bf16.gmra.mrb[0].mxu0 %v2575
  %v2611 = vpop.f32.mrb[0].mxu0
  %v2612 = vadd.f32 %v2560, %v2611
  %v2613 = vpop.f32.mrb[0].mxu0
  %v2614 = vpop.f32.mrb[0].mxu0
  %v2615 = vpop.f32.mrb[0].mxu0
  %2616 = vdwg.mxu0
  %vm2617 = vcmask 23552
  %2618 = vst.msk [vmem:[%s13] sm:$0xff] %vm2617, %v2612
  // Predicated region
  $region54: #{lstm_model_forward.1} parent=0 // pred_check
    _
  $region55: #{lstm_model_forward.1} parent=0 // pred_check_branch
    %2620 = sbr.rel (0) target = $region57
  $region56: #{lstm_model_forward.1} parent=0 // pred_region
    _
  $region57: #{lstm_model_forward.1} parent=0 // pred_fallthru
    _
  // Predicated region
  $region58: #{lstm_model_forward.1} parent=0 // pred_check
    _
  $region59: #{lstm_model_forward.1} parent=0 // pred_check_branch
    %2622 = sbr.rel (0) target = $region61
  $region60: #{lstm_model_forward.1} parent=0 // pred_region
    _
  $region61: #{lstm_model_forward.1} parent=0 // pred_fallthru
    _

</llo_original>
